<compile_context>
chip_gen: v7x
topology: tpu7x:2x2x1
jax: 0.10.0
libtpu: 0.0.40
codegen_flags: <defaults>
</compile_context>

<pallas_src>
import functools

import jax
import jax.numpy as jnp
from jax.experimental import pallas as pl
from jax.experimental.pallas import tpu as pltpu

EPS = 1e-5                      # nn.BatchNorm2d default eps
SLOPE = 0.1                     # LeakyReLU negative slope
COMPUTE_DTYPE = jnp.bfloat16    # MXU operand dtype (accumulation is f32)


def _default_vmem_limit():
    """Generation-aware scoped-VMEM budget: ~75% of physical, capped."""
    try:
        cap = int(pltpu.get_tpu_info().vmem_capacity_bytes)
    except Exception:
        cap = 64 * 1024 * 1024          # conservative fallback (v7x physical)
    # 128 MiB (v5e/v6e) -> 96 MiB budget; 64 MiB (v7x) -> 48 MiB budget.
    return max(32 * 1024 * 1024, min((cap * 3) // 4, 100 * 1024 * 1024))


VMEM_LIMIT = _default_vmem_limit()


def _leaky(x):
    return jnp.where(x >= 0, x, SLOPE * x)


def _spatial_tile(s, max_tile=2048):
    """Largest multiple of 128 dividing s (capped), else the full extent."""
    if s % 128 != 0:
        # TODO(synk): lane-pad ragged spatial extents (e.g. 52x52 / 26x26 YOLO
        # maps) to a multiple of 128 instead of one full-image block per step.
        return s
    t = min(max_tile, s)
    t -= t % 128
    while t >= 128:
        if s % t == 0:
            return t
        t -= 128
    return s


def _row_tile(h, w, c_hidden, c_out, vmem_budget, soft_cap_elems=32768):
    """Row-band height TH for stage 2: divisor of h, multiple of 8 (or h)."""
    cands = [t for t in range(h, 0, -1) if h % t == 0 and t % 8 == 0] or [h]

    def est(th):
        s = th * w
        scratch = c_hidden * (th + 2) * (w + 2) * 2 + 9 * c_hidden * s * 2  # bf16
        blocks = 2 * c_hidden * s * 4                # y1 band (f32, x2 buffered)
        blocks += 4 * c_hidden * min(8, h) * w * 4   # two halo blocks, x2 buffered
        blocks += 2 * c_out * s * 4                  # y2 band out (f32, x2 buffered)
        weights = 2 * c_out * 9 * c_hidden * 2
        return scratch + blocks + weights + (1 << 20)

    budget = int(vmem_budget * 0.8)
    for th in cands:                                  # largest that fits + soft cap
        if est(th) <= budget and th * w <= soft_cap_elems:
            return th
    for th in cands:                                  # relax soft cap
        if est(th) <= budget:
            return th
    return cands[-1]


# ---------------------------------------------------------------------------
# Stage 1: 1x1 conv (raw) + lane-dense per-tile BatchNorm partial statistics.
#   x_ref: (1, C, TS) f32   w_ref: (Ch, C) bf16
#   y_ref: (1, Ch, TS) f32  p_ref: (1, 1, 2, Ch) f32  rows = [sum, sum_sq]
# ---------------------------------------------------------------------------
def conv1x1_stats_kernel(x_ref, w_ref, y_ref, p_ref):
    x = x_ref[0].astype(COMPUTE_DTYPE)              # in-kernel bf16 cast of x
    y = jnp.dot(w_ref[...], x, preferred_element_type=jnp.float32)   # (Ch, TS)
    y_ref[0] = y
    p_ref[0, 0, 0:1, :] = jnp.sum(y, axis=1)[None, :]
    p_ref[0, 0, 1:2, :] = jnp.sum(y * y, axis=1)[None, :]


# ---------------------------------------------------------------------------
# Stage 2: BN1 + LeakyReLU on a row band of the conv1 output, then the 3x3
# conv (pad=1) as ONE K = 9*Cin MXU contraction over a bf16 im2col panel built
# from a bf16 zero-padded halo band living only in VMEM.  The 1-row halos come
# from clamped 8-row BlockSpecs on the same y1 array and are zeroed at the
# image borders.  Also emits lane-dense per-band BN partial statistics.
# ---------------------------------------------------------------------------
def conv3x3_stats_kernel(y1_ref, top_ref, bot_ref, sc_ref, sh_ref, w_ref,
                         y2_ref, p_ref, hpad_ref, col_ref,
                         *, th, w, c_in, c_out, hb):
    r = pl.program_id(1)
    s = th * w
    scale = sc_ref[...]                              # (Ch, 1) f32
    shift = sh_ref[...]

    # BN1 + LeakyReLU on the band; cast to bf16 once before the padded writes.
    band = y1_ref[0]                                 # (Ch, TH, W) f32
    act = _leaky(band * scale[:, :, None] + shift[:, :, None]).astype(COMPUTE_DTYPE)

    # Halo rows: last row of the previous band / first row of the next band,
    # with BN1+LReLU applied; zeroed (conv zero-padding) at the image borders.
    top = _leaky(top_ref[0, :, hb - 1:hb, :][:, 0, :] * scale + shift)
    bot = _leaky(bot_ref[0, :, 0:1, :][:, 0, :] * scale + shift)
    top = jnp.where(r == 0, 0.0, top).astype(COMPUTE_DTYPE)
    bot = jnp.where(r == pl.num_programs(1) - 1, 0.0, bot).astype(COMPUTE_DTYPE)

    # Zero only the 1-px side border columns; rows 0 / TH+1 and the interior
    # are fully overwritten below (no full-buffer zeroing pass).
    hpad_ref[:, :, 0:1] = jnp.zeros((c_in, th + 2, 1), COMPUTE_DTYPE)
    hpad_ref[:, :, w + 1:w + 2] = jnp.zeros((c_in, th + 2, 1), COMPUTE_DTYPE)
    hpad_ref[:, 0:1, 1:w + 1] = top[:, None, :]
    hpad_ref[:, th + 1:th + 2, 1:w + 1] = bot[:, None, :]
    hpad_ref[:, 1:th + 1, 1:w + 1] = act

    # bf16 im2col panel: 9 shifted taps stacked along the contraction dim.
    # TODO(synk): the dx in {1,2} shifted slices are lane-misaligned; a
    # pltpu.roll-based variant would move those shifts onto the XLU slot.
    for t in range(9):
        dy, dx = divmod(t, 3)
        col_ref[t * c_in:(t + 1) * c_in, :] = (
            hpad_ref[:, dy:dy + th, dx:dx + w].reshape(c_in, s))

    # Single MXU contraction with K = 9*Cin (bf16 operands, f32 accumulation).
    y2 = jnp.dot(w_ref[...], col_ref[...], preferred_element_type=jnp.float32)
    y2_ref[0] = y2.reshape(c_out, th, w)

    # Lane-dense BN partials: rows = [sum, sum_sq], lanes = channels.
    # TODO(synk): switch to Welford (count, mean, M2) partials if very large
    # N*H*W with |mean| >> std is in scope (sum_sq can cancel catastrophically).
    p_ref[0, 0, 0:1, :] = jnp.sum(y2, axis=1)[None, :]
    p_ref[0, 0, 1:2, :] = jnp.sum(y2 * y2, axis=1)[None, :]


# ---------------------------------------------------------------------------
# Stage 3: BN2 + LeakyReLU + residual add (element-wise, lane-dense).
# ---------------------------------------------------------------------------
def bn_act_residual_kernel(y2_ref, sc_ref, sh_ref, x_ref, o_ref):
    o_ref[0] = _leaky(y2_ref[0] * sc_ref[...] + sh_ref[...]) + x_ref[0]


def _bn_affine(part, gamma, beta, count):
    """Combine lane-dense per-tile [sum, sum_sq] partials into BN scale/shift."""
    tot = part.reshape(-1, 2, part.shape[-1]).sum(axis=0)         # (2, Cc)
    mean = tot[0] / count
    var = jnp.maximum(tot[1] / count - mean * mean, 0.0)
    scale = gamma * jax.lax.rsqrt(var + EPS)
    shift = beta - mean * scale
    return scale[:, None], shift[:, None]                         # (Cc, 1)


@functools.partial(jax.jit, static_argnames=("row_tile",))
def residual_block(x_nchw, params, *, row_tile=None):
    """Pallas forward pass of ResidualBlock.  x_nchw: (N, C, H, W) float32."""
    N, C, H, W = x_nchw.shape
    Ch = params["w1"].shape[0]                  # hidden_dim = dim // 2
    S = H * W
    TS = _spatial_tile(S)
    n_s = S // TS
    M = N * S                                   # BatchNorm reduction count

    x_f32 = x_nchw.reshape(N, C, S).astype(jnp.float32)

    w1 = params["w1"][:, :, 0, 0].astype(COMPUTE_DTYPE)                 # (Ch, C)
    # torch (Cout, Cin, 3, 3) -> (Cout, 9*Cin) with column order (tap, cin).
    w2 = jnp.transpose(params["w2"], (2, 3, 1, 0)).reshape(9 * Ch, C).T
    w2 = w2.astype(COMPUTE_DTYPE)

    # --- stage 1: 1x1 conv + BN1 partial statistics --------------------------
    y1_raw, part1 = pl.pallas_call(
        conv1x1_stats_kernel,
        grid=(N, n_s),
        in_specs=[
            pl.BlockSpec((1, C, TS), lambda n, s: (n, 0, s)),
            pl.BlockSpec((Ch, C), lambda n, s: (0, 0)),
        ],
        out_specs=[
            pl.BlockSpec((1, Ch, TS), lambda n, s: (n, 0, s)),
            pl.BlockSpec((1, 1, 2, Ch), lambda n, s: (n, s, 0, 0)),
        ],
        out_shape=[
            jax.ShapeDtypeStruct((N, Ch, S), jnp.float32),
            jax.ShapeDtypeStruct((N, n_s, 2, Ch), jnp.float32),
        ],
        compiler_params=pltpu.CompilerParams(
            dimension_semantics=("parallel", "parallel"),
            vmem_limit_bytes=VMEM_LIMIT),
    )(x_f32, w1)
    scale1, shift1 = _bn_affine(part1, params["g1"], params["b1"], M)

    # --- stage 2: BN1+LReLU, 3x3 conv over row bands, BN2 partial stats ------
    TH = row_tile if row_tile is not None else _row_tile(H, W, Ch, C, VMEM_LIMIT)
    assert H % TH == 0 and (TH % 8 == 0 or TH == H), (H, TH)
    n_h = H // TH
    HB = 8 if H % 8 == 0 else H                 # halo BlockSpec row height
    y1_4d = y1_raw.reshape(N, Ch, H, W)

    band_map = lambda n, r: (n, 0, r, 0)
    top_map = lambda n, r: (n, 0, jnp.maximum(r * (TH // HB) - 1, 0), 0)
    bot_map = lambda n, r: (n, 0, jnp.minimum((r + 1) * (TH // HB), H // HB - 1), 0)

    y2_raw, part2 = pl.pallas_call(
        functools.partial(conv3x3_stats_kernel,
                          th=TH, w=W, c_in=Ch, c_out=C, hb=HB),
        grid=(N, n_h),
        in_specs=[
            pl.BlockSpec((1, Ch, TH, W), band_map),
            pl.BlockSpec((1, Ch, HB, W), top_map),
            pl.BlockSpec((1, Ch, HB, W), bot_map),
            pl.BlockSpec((Ch, 1), lambda n, r: (0, 0)),
            pl.BlockSpec((Ch, 1), lambda n, r: (0, 0)),
            pl.BlockSpec((C, 9 * Ch), lambda n, r: (0, 0)),
        ],
        out_specs=[
            pl.BlockSpec((1, C, TH, W), band_map),
            pl.BlockSpec((1, 1, 2, C), lambda n, r: (n, r, 0, 0)),
        ],
        out_shape=[
            jax.ShapeDtypeStruct((N, C, H, W), jnp.float32),
            jax.ShapeDtypeStruct((N, n_h, 2, C), jnp.float32),
        ],
        scratch_shapes=[
            pltpu.VMEM((Ch, TH + 2, W + 2), COMPUTE_DTYPE),   # padded halo band
            pltpu.VMEM((9 * Ch, TH * W), COMPUTE_DTYPE),      # im2col panel
        ],
        compiler_params=pltpu.CompilerParams(
            dimension_semantics=("parallel", "parallel"),
            vmem_limit_bytes=VMEM_LIMIT),
    )(y1_4d, y1_4d, y1_4d, scale1, shift1, w2)
    scale2, shift2 = _bn_affine(part2, params["g2"], params["b2"], M)

    # --- stage 3: BN2 + LeakyReLU + residual add ------------------------------
    y2_flat = y2_raw.reshape(N, C, S)
    out = pl.pallas_call(
        bn_act_residual_kernel,
        grid=(N, n_s),
        in_specs=[
            pl.BlockSpec((1, C, TS), lambda n, s: (n, 0, s)),
            pl.BlockSpec((C, 1), lambda n, s: (0, 0)),
            pl.BlockSpec((C, 1), lambda n, s: (0, 0)),
            pl.BlockSpec((1, C, TS), lambda n, s: (n, 0, s)),
        ],
        out_specs=pl.BlockSpec((1, C, TS), lambda n, s: (n, 0, s)),
        out_shape=jax.ShapeDtypeStruct((N, C, S), jnp.float32),
        compiler_params=pltpu.CompilerParams(
            dimension_semantics=("parallel", "parallel"),
            vmem_limit_bytes=VMEM_LIMIT),
    )(y2_flat, scale2, shift2, x_f32)

    return out.reshape(N, C, H, W)


def ref_residual_block(x, p):
    """Pure-JAX reference (NCHW) using the same bf16 MXU operands + f32 accum."""
    def conv(x, w, pad):
        return jax.lax.conv_general_dilated(
            x.astype(COMPUTE_DTYPE), w.astype(COMPUTE_DTYPE),
            window_strides=(1, 1), padding=[(pad, pad), (pad, pad)],
            dimension_numbers=("NCHW", "OIHW", "NCHW"),
            preferred_element_type=jnp.float32)

    def bn_lrelu(y, g, b):
        mean = y.mean(axis=(0, 2, 3), keepdims=True)
        var = ((y - mean) ** 2).mean(axis=(0, 2, 3), keepdims=True)
        yn = (y - mean) * jax.lax.rsqrt(var + EPS)
        yn = yn * g.reshape(1, -1, 1, 1) + b.reshape(1, -1, 1, 1)
        return jnp.where(yn >= 0, yn, SLOPE * yn)

    h = bn_lrelu(conv(x.astype(jnp.float32), p["w1"], 0), p["g1"], p["b1"])
    y = bn_lrelu(conv(h, p["w2"], 1), p["g2"], p["b2"])
    return y + x


if __name__ == "__main__":
    N, C, H, W = 2, 4, 16, 16          # dim=4 (even) -> hidden_dim = 2
    Ch = C // 2

    key = jax.random.PRNGKey(0)
    kx, k1, k2, kg1, kb1, kg2, kb2 = jax.random.split(key, 7)
    x = jax.random.normal(kx, (N, C, H, W), jnp.float32)
    params = {
        "w1": 0.1 * jax.random.normal(k1, (Ch, C, 1, 1), jnp.float32),
        "w2": 0.1 * jax.random.normal(k2, (C, Ch, 3, 3), jnp.float32),
        "g1": 1.0 + 0.1 * jax.random.normal(kg1, (Ch,), jnp.float32),
        "b1": 0.1 * jax.random.normal(kb1, (Ch,), jnp.float32),
        "g2": 1.0 + 0.1 * jax.random.normal(kg2, (C,), jnp.float32),
        "b2": 0.1 * jax.random.normal(kb2, (C,), jnp.float32),
    }

    ref = jax.block_until_ready(ref_residual_block(x, params))

    # Default tiling (single row band at this tiny size).
    out = jax.block_until_ready(residual_block(x, params))
    assert out.shape == (N, C, H, W)
    err = float(jnp.max(jnp.abs(out - ref)))
    assert jnp.allclose(out, ref, atol=2e-2, rtol=2e-2), f"max abs err {err}"

    # Forced two-row-band tiling to exercise the halo path of stage 2.
    out_tiled = jax.block_until_ready(residual_block(x, params, row_tile=8))
    err_t = float(jnp.max(jnp.abs(out_tiled - ref)))
    assert jnp.allclose(out_tiled, ref, atol=2e-2, rtol=2e-2), f"max abs err {err_t}"

    print("KERNEL_OK")
</pallas_src>

<mosaic_0001>
module attributes {stable_mosaic.version = 11 : i64} {
  func.func @conv1x1_stats_kernel(%arg0: i32, %arg1: i32, %arg2: memref<1x4x256xf32, #tpu.memory_space<vmem>>, %arg3: memref<2x4xbf16, #tpu.memory_space<vmem>>, %arg4: memref<1x2x256xf32, #tpu.memory_space<vmem>>, %arg5: memref<1x1x2x2xf32, #tpu.memory_space<vmem>>) attributes {dimension_semantics = [#tpu.dimension_semantics<parallel>, #tpu.dimension_semantics<parallel>], iteration_bounds = array<i64: 2, 1>, scalar_prefetch = 0 : i64, scratch_operands = 0 : i64, tpu.core_type = #tpu.core_type<tc>, window_params = [{transform_indices = @transform_0, window_bounds = array<i64: 1, 4, 256>}, {pipeline_mode = #tpu.pipeline_mode<synchronous>, transform_indices = @transform_1, window_bounds = array<i64: 2, 4>}, {transform_indices = @transform_2, window_bounds = array<i64: 1, 2, 256>}, {transform_indices = @transform_3, window_bounds = array<i64: 1, 1, 2, 2>}]} {
    %c0 = arith.constant 0 : index
    %c0_0 = arith.constant 0 : index
    %c0_1 = arith.constant 0 : index
    %0 = vector.load %arg2[%c0, %c0_0, %c0_1] : memref<1x4x256xf32, #tpu.memory_space<vmem>>, vector<1x4x256xf32>
    %1 = vector.shape_cast %0 : vector<1x4x256xf32> to vector<4x256xf32>
    %2 = arith.truncf %1 : vector<4x256xf32> to vector<4x256xbf16>
    %c0_2 = arith.constant 0 : index
    %c0_3 = arith.constant 0 : index
    %3 = vector.load %arg3[%c0_2, %c0_3] : memref<2x4xbf16, #tpu.memory_space<vmem>>, vector<2x4xbf16>
    %cst = arith.constant dense<0.000000e+00> : vector<2x256xf32>
    %4 = tpu.matmul %3, %2, %cst {dimension_numbers = #tpu.dot_dimension_numbers<[1], [0], [0], [1], [0, 0, 1, 1], [], []>} : vector<2x4xbf16>, vector<4x256xbf16>, vector<2x256xf32> -> vector<2x256xf32>
    %c0_4 = arith.constant 0 : index
    %c0_5 = arith.constant 0 : index
    %c0_6 = arith.constant 0 : index
    %5 = vector.load %arg4[%c0_4, %c0_5, %c0_6] : memref<1x2x256xf32, #tpu.memory_space<vmem>>, vector<1x2x256xf32>
    %6 = vector.shape_cast %5 : vector<1x2x256xf32> to vector<2x256xf32>
    %7 = vector.shape_cast %4 : vector<2x256xf32> to vector<1x2x256xf32>
    tpu.vector_store %arg4[%c0_4, %c0_5, %c0_6], %7 {strides = array<i32>} : memref<1x2x256xf32, #tpu.memory_space<vmem>>, vector<1x2x256xf32>,
    %cst_7 = arith.constant dense<0.000000e+00> : vector<2xf32>
    %8 = vector.multi_reduction <add>, %4, %cst_7 [1] : vector<2x256xf32> to vector<2xf32>
    %9 = vector.shape_cast %8 : vector<2xf32> to vector<1x2xf32>
    %c0_8 = arith.constant 0 : index
    %c0_9 = arith.constant 0 : index
    %c0_10 = arith.constant 0 : index
    %c0_11 = arith.constant 0 : index
    %10 = vector.load %arg5[%c0_8, %c0_9, %c0_10, %c0_11] : memref<1x1x2x2xf32, #tpu.memory_space<vmem>>, vector<1x1x1x2xf32>
    %11 = vector.shape_cast %10 : vector<1x1x1x2xf32> to vector<1x2xf32>
    %12 = vector.shape_cast %9 : vector<1x2xf32> to vector<1x1x1x2xf32>
    tpu.vector_store %arg5[%c0_8, %c0_9, %c0_10, %c0_11], %12 {strides = array<i32>} : memref<1x1x2x2xf32, #tpu.memory_space<vmem>>, vector<1x1x1x2xf32>,
    %13 = arith.mulf %4, %4 : vector<2x256xf32>
    %cst_12 = arith.constant dense<0.000000e+00> : vector<2xf32>
    %14 = vector.multi_reduction <add>, %13, %cst_12 [1] : vector<2x256xf32> to vector<2xf32>
    %15 = vector.shape_cast %14 : vector<2xf32> to vector<1x2xf32>
    %c0_13 = arith.constant 0 : index
    %c0_14 = arith.constant 0 : index
    %c1 = arith.constant 1 : index
    %c0_15 = arith.constant 0 : index
    %16 = vector.load %arg5[%c0_13, %c0_14, %c1, %c0_15] : memref<1x1x2x2xf32, #tpu.memory_space<vmem>>, vector<1x1x1x2xf32>
    %17 = vector.shape_cast %16 : vector<1x1x1x2xf32> to vector<1x2xf32>
    %18 = vector.shape_cast %15 : vector<1x2xf32> to vector<1x1x1x2xf32>
    tpu.vector_store %arg5[%c0_13, %c0_14, %c1, %c0_15], %18 {strides = array<i32>} : memref<1x1x2x2xf32, #tpu.memory_space<vmem>>, vector<1x1x1x2xf32>,
    return
  }
  func.func @transform_0(%arg0: i32, %arg1: i32) -> (i32, i32, i32) {
    %c0_i32 = arith.constant 0 : i32
    %c0_i32_0 = arith.constant 0 : i32
    return %arg0, %c0_i32, %arg1 : i32, i32, i32
  }
  func.func @transform_1(%arg0: i32, %arg1: i32) -> (i32, i32) {
    %c0_i32 = arith.constant 0 : i32
    %c0_i32_0 = arith.constant 0 : i32
    %c0_i32_1 = arith.constant 0 : i32
    return %c0_i32, %c0_i32_0 : i32, i32
  }
  func.func @transform_2(%arg0: i32, %arg1: i32) -> (i32, i32, i32) {
    %c0_i32 = arith.constant 0 : i32
    %c0_i32_0 = arith.constant 0 : i32
    return %arg0, %c0_i32, %arg1 : i32, i32, i32
  }
  func.func @transform_3(%arg0: i32, %arg1: i32) -> (i32, i32, i32, i32) {
    %c0_i32 = arith.constant 0 : i32
    %c0_i32_0 = arith.constant 0 : i32
    %c0_i32_1 = arith.constant 0 : i32
    return %arg0, %arg1, %c0_i32, %c0_i32_0 : i32, i32, i32, i32
  }
}

module attributes {stable_mosaic.version = 11 : i64} {
  func.func @conv3x3_stats_kernel(%arg0: i32, %arg1: i32, %arg2: memref<1x2x16x16xf32, #tpu.memory_space<vmem>>, %arg3: memref<1x2x8x16xf32, #tpu.memory_space<vmem>>, %arg4: memref<1x2x8x16xf32, #tpu.memory_space<vmem>>, %arg5: memref<2x1xf32, #tpu.memory_space<vmem>>, %arg6: memref<2x1xf32, #tpu.memory_space<vmem>>, %arg7: memref<4x18xbf16, #tpu.memory_space<vmem>>, %arg8: memref<1x4x16x16xf32, #tpu.memory_space<vmem>>, %arg9: memref<1x1x2x4xf32, #tpu.memory_space<vmem>>, %arg10: memref<2x18x18xbf16, #tpu.memory_space<vmem>>, %arg11: memref<18x256xbf16, #tpu.memory_space<vmem>>) attributes {dimension_semantics = [#tpu.dimension_semantics<parallel>, #tpu.dimension_semantics<parallel>], iteration_bounds = array<i64: 2, 1>, scalar_prefetch = 0 : i64, scratch_operands = 2 : i64, tpu.core_type = #tpu.core_type<tc>, window_params = [{transform_indices = @transform_0, window_bounds = array<i64: 1, 2, 16, 16>}, {transform_indices = @transform_1, window_bounds = array<i64: 1, 2, 8, 16>}, {transform_indices = @transform_2, window_bounds = array<i64: 1, 2, 8, 16>}, {pipeline_mode = #tpu.pipeline_mode<synchronous>, transform_indices = @transform_3, window_bounds = array<i64: 2, 1>}, {pipeline_mode = #tpu.pipeline_mode<synchronous>, transform_indices = @transform_4, window_bounds = array<i64: 2, 1>}, {pipeline_mode = #tpu.pipeline_mode<synchronous>, transform_indices = @transform_5, window_bounds = array<i64: 4, 18>}, {transform_indices = @transform_6, window_bounds = array<i64: 1, 4, 16, 16>}, {transform_indices = @transform_7, window_bounds = array<i64: 1, 1, 2, 4>}]} {
    %c0 = arith.constant 0 : index
    %c0_0 = arith.constant 0 : index
    %0 = vector.load %arg5[%c0, %c0_0] : memref<2x1xf32, #tpu.memory_space<vmem>>, vector<2x1xf32>
    %c0_1 = arith.constant 0 : index
    %c0_2 = arith.constant 0 : index
    %1 = vector.load %arg6[%c0_1, %c0_2] : memref<2x1xf32, #tpu.memory_space<vmem>>, vector<2x1xf32>
    %c0_3 = arith.constant 0 : index
    %c0_4 = arith.constant 0 : index
    %c0_5 = arith.constant 0 : index
    %c0_6 = arith.constant 0 : index
    %2 = vector.load %arg2[%c0_3, %c0_4, %c0_5, %c0_6] : memref<1x2x16x16xf32, #tpu.memory_space<vmem>>, vector<1x2x16x16xf32>
    %3 = vector.shape_cast %2 : vector<1x2x16x16xf32> to vector<2x16x16xf32>
    %4 = vector.shape_cast %0 : vector<2x1xf32> to vector<2x1x1xf32>
    %5 = vector.broadcast %4 : vector<2x1x1xf32> to vector<2x16x16xf32>
    %6 = arith.mulf %3, %5 : vector<2x16x16xf32>
    %7 = vector.shape_cast %1 : vector<2x1xf32> to vector<2x1x1xf32>
    %8 = vector.broadcast %7 : vector<2x1x1xf32> to vector<2x16x16xf32>
    %9 = arith.addf %6, %8 : vector<2x16x16xf32>
    %cst = arith.constant 0.000000e+00 : f32
    %10 = vector.broadcast %cst : f32 to vector<2x16x16xf32>
    %11 = arith.cmpf oge, %9, %10 : vector<2x16x16xf32>
    %cst_7 = arith.constant 1.000000e-01 : f32
    %12 = vector.broadcast %cst_7 : f32 to vector<2x16x16xf32>
    %13 = arith.mulf %12, %9 : vector<2x16x16xf32>
    %14 = arith.select %11, %9, %13 : vector<2x16x16xi1>, vector<2x16x16xf32>
    %15 = arith.truncf %14 : vector<2x16x16xf32> to vector<2x16x16xbf16>
    %c0_8 = arith.constant 0 : index
    %c0_9 = arith.constant 0 : index
    %c7 = arith.constant 7 : index
    %c0_10 = arith.constant 0 : index
    %16 = vector.load %arg3[%c0_8, %c0_9, %c7, %c0_10] : memref<1x2x8x16xf32, #tpu.memory_space<vmem>>, vector<1x2x1x16xf32>
    %17 = vector.shape_cast %16 : vector<1x2x1x16xf32> to vector<2x1x16xf32>
    %18 = vector.shape_cast %17 : vector<2x1x16xf32> to vector<2x16xf32>
    %19 = vector.broadcast %0 : vector<2x1xf32> to vector<2x16xf32>
    %20 = arith.mulf %18, %19 : vector<2x16xf32>
    %21 = vector.broadcast %1 : vector<2x1xf32> to vector<2x16xf32>
    %22 = arith.addf %20, %21 : vector<2x16xf32>
    %cst_11 = arith.constant 0.000000e+00 : f32
    %23 = vector.broadcast %cst_11 : f32 to vector<2x16xf32>
    %24 = arith.cmpf oge, %22, %23 : vector<2x16xf32>
    %cst_12 = arith.constant 1.000000e-01 : f32
    %25 = vector.broadcast %cst_12 : f32 to vector<2x16xf32>
    %26 = arith.mulf %25, %22 : vector<2x16xf32>
    %27 = arith.select %24, %22, %26 : vector<2x16xi1>, vector<2x16xf32>
    %c0_13 = arith.constant 0 : index
    %c0_14 = arith.constant 0 : index
    %c0_15 = arith.constant 0 : index
    %c0_16 = arith.constant 0 : index
    %28 = vector.load %arg4[%c0_13, %c0_14, %c0_15, %c0_16] : memref<1x2x8x16xf32, #tpu.memory_space<vmem>>, vector<1x2x1x16xf32>
    %29 = vector.shape_cast %28 : vector<1x2x1x16xf32> to vector<2x1x16xf32>
    %30 = vector.shape_cast %29 : vector<2x1x16xf32> to vector<2x16xf32>
    %31 = vector.broadcast %0 : vector<2x1xf32> to vector<2x16xf32>
    %32 = arith.mulf %30, %31 : vector<2x16xf32>
    %33 = vector.broadcast %1 : vector<2x1xf32> to vector<2x16xf32>
    %34 = arith.addf %32, %33 : vector<2x16xf32>
    %cst_17 = arith.constant 0.000000e+00 : f32
    %35 = vector.broadcast %cst_17 : f32 to vector<2x16xf32>
    %36 = arith.cmpf oge, %34, %35 : vector<2x16xf32>
    %cst_18 = arith.constant 1.000000e-01 : f32
    %37 = vector.broadcast %cst_18 : f32 to vector<2x16xf32>
    %38 = arith.mulf %37, %34 : vector<2x16xf32>
    %39 = arith.select %36, %34, %38 : vector<2x16xi1>, vector<2x16xf32>
    %c0_i32 = arith.constant 0 : i32
    %40 = arith.cmpi eq, %arg1, %c0_i32 : i32
    %cst_19 = arith.constant 0.000000e+00 : f32
    %41 = vector.broadcast %cst_19 : f32 to vector<2x16xf32>
    %42 = arith.select %40, %41, %27 : vector<2x16xf32>
    %43 = arith.truncf %42 : vector<2x16xf32> to vector<2x16xbf16>
    %c0_i32_20 = arith.constant 0 : i32
    %44 = arith.cmpi eq, %arg1, %c0_i32_20 : i32
    %cst_21 = arith.constant 0.000000e+00 : f32
    %45 = vector.broadcast %cst_21 : f32 to vector<2x16xf32>
    %46 = arith.select %44, %45, %39 : vector<2x16xf32>
    %47 = arith.truncf %46 : vector<2x16xf32> to vector<2x16xbf16>
    %cst_22 = arith.constant 0.000000e+00 : bf16
    %48 = vector.broadcast %cst_22 : bf16 to vector<2x18x1xbf16>
    %c0_23 = arith.constant 0 : index
    %c0_24 = arith.constant 0 : index
    %c0_25 = arith.constant 0 : index
    %49 = vector.load %arg10[%c0_23, %c0_24, %c0_25] : memref<2x18x18xbf16, #tpu.memory_space<vmem>>, vector<2x18x1xbf16>
    tpu.vector_store %arg10[%c0_23, %c0_24, %c0_25], %48 {strides = array<i32>} : memref<2x18x18xbf16, #tpu.memory_space<vmem>>, vector<2x18x1xbf16>,
    %cst_26 = arith.constant 0.000000e+00 : bf16
    %50 = vector.broadcast %cst_26 : bf16 to vector<2x18x1xbf16>
    %c0_27 = arith.constant 0 : index
    %c0_28 = arith.constant 0 : index
    %c17 = arith.constant 17 : index
    %51 = vector.load %arg10[%c0_27, %c0_28, %c17] : memref<2x18x18xbf16, #tpu.memory_space<vmem>>, vector<2x18x1xbf16>
    tpu.vector_store %arg10[%c0_27, %c0_28, %c17], %50 {strides = array<i32>} : memref<2x18x18xbf16, #tpu.memory_space<vmem>>, vector<2x18x1xbf16>,
    %52 = vector.shape_cast %43 : vector<2x16xbf16> to vector<2x1x16xbf16>
    %c0_29 = arith.constant 0 : index
    %c0_30 = arith.constant 0 : index
    %c1 = arith.constant 1 : index
    %53 = vector.load %arg10[%c0_29, %c0_30, %c1] : memref<2x18x18xbf16, #tpu.memory_space<vmem>>, vector<2x1x16xbf16>
    tpu.vector_store %arg10[%c0_29, %c0_30, %c1], %52 {strides = array<i32>} : memref<2x18x18xbf16, #tpu.memory_space<vmem>>, vector<2x1x16xbf16>,
    %54 = vector.shape_cast %47 : vector<2x16xbf16> to vector<2x1x16xbf16>
    %c0_31 = arith.constant 0 : index
    %c17_32 = arith.constant 17 : index
    %c1_33 = arith.constant 1 : index
    %55 = vector.load %arg10[%c0_31, %c17_32, %c1_33] : memref<2x18x18xbf16, #tpu.memory_space<vmem>>, vector<2x1x16xbf16>
    tpu.vector_store %arg10[%c0_31, %c17_32, %c1_33], %54 {strides = array<i32>} : memref<2x18x18xbf16, #tpu.memory_space<vmem>>, vector<2x1x16xbf16>,
    %c0_34 = arith.constant 0 : index
    %c1_35 = arith.constant 1 : index
    %c1_36 = arith.constant 1 : index
    %56 = vector.load %arg10[%c0_34, %c1_35, %c1_36] : memref<2x18x18xbf16, #tpu.memory_space<vmem>>, vector<2x16x16xbf16>
    tpu.vector_store %arg10[%c0_34, %c1_35, %c1_36], %15 {strides = array<i32>} : memref<2x18x18xbf16, #tpu.memory_space<vmem>>, vector<2x16x16xbf16>,
    %c0_37 = arith.constant 0 : index
    %c0_38 = arith.constant 0 : index
    %c0_39 = arith.constant 0 : index
    %57 = vector.load %arg10[%c0_37, %c0_38, %c0_39] : memref<2x18x18xbf16, #tpu.memory_space<vmem>>, vector<2x16x16xbf16>
    %58 = vector.shape_cast %57 : vector<2x16x16xbf16> to vector<2x256xbf16>
    %c0_40 = arith.constant 0 : index
    %c0_41 = arith.constant 0 : index
    %59 = vector.load %arg11[%c0_40, %c0_41] : memref<18x256xbf16, #tpu.memory_space<vmem>>, vector<2x256xbf16>
    tpu.vector_store %arg11[%c0_40, %c0_41], %58 {strides = array<i32>} : memref<18x256xbf16, #tpu.memory_space<vmem>>, vector<2x256xbf16>,
    %c0_42 = arith.constant 0 : index
    %c0_43 = arith.constant 0 : index
    %c1_44 = arith.constant 1 : index
    %60 = vector.load %arg10[%c0_42, %c0_43, %c1_44] : memref<2x18x18xbf16, #tpu.memory_space<vmem>>, vector<2x16x16xbf16>
    %61 = vector.shape_cast %60 : vector<2x16x16xbf16> to vector<2x256xbf16>
    %c2 = arith.constant 2 : index
    %c0_45 = arith.constant 0 : index
    %62 = vector.load %arg11[%c2, %c0_45] : memref<18x256xbf16, #tpu.memory_space<vmem>>, vector<2x256xbf16>
    tpu.vector_store %arg11[%c2, %c0_45], %61 {strides = array<i32>} : memref<18x256xbf16, #tpu.memory_space<vmem>>, vector<2x256xbf16>,
    %c0_46 = arith.constant 0 : index
    %c0_47 = arith.constant 0 : index
    %c2_48 = arith.constant 2 : index
    %63 = vector.load %arg10[%c0_46, %c0_47, %c2_48] : memref<2x18x18xbf16, #tpu.memory_space<vmem>>, vector<2x16x16xbf16>
    %64 = vector.shape_cast %63 : vector<2x16x16xbf16> to vector<2x256xbf16>
    %c4 = arith.constant 4 : index
    %c0_49 = arith.constant 0 : index
    %65 = vector.load %arg11[%c4, %c0_49] : memref<18x256xbf16, #tpu.memory_space<vmem>>, vector<2x256xbf16>
    tpu.vector_store %arg11[%c4, %c0_49], %64 {strides = array<i32>} : memref<18x256xbf16, #tpu.memory_space<vmem>>, vector<2x256xbf16>,
    %c0_50 = arith.constant 0 : index
    %c1_51 = arith.constant 1 : index
    %c0_52 = arith.constant 0 : index
    %66 = vector.load %arg10[%c0_50, %c1_51, %c0_52] : memref<2x18x18xbf16, #tpu.memory_space<vmem>>, vector<2x16x16xbf16>
    %67 = vector.shape_cast %66 : vector<2x16x16xbf16> to vector<2x256xbf16>
    %c6 = arith.constant 6 : index
    %c0_53 = arith.constant 0 : index
    %68 = vector.load %arg11[%c6, %c0_53] : memref<18x256xbf16, #tpu.memory_space<vmem>>, vector<2x256xbf16>
    tpu.vector_store %arg11[%c6, %c0_53], %67 {strides = array<i32>} : memref<18x256xbf16, #tpu.memory_space<vmem>>, vector<2x256xbf16>,
    %c0_54 = arith.constant 0 : index
    %c1_55 = arith.constant 1 : index
    %c1_56 = arith.constant 1 : index
    %69 = vector.load %arg10[%c0_54, %c1_55, %c1_56] : memref<2x18x18xbf16, #tpu.memory_space<vmem>>, vector<2x16x16xbf16>
    %70 = vector.shape_cast %69 : vector<2x16x16xbf16> to vector<2x256xbf16>
    %c8 = arith.constant 8 : index
    %c0_57 = arith.constant 0 : index
    %71 = vector.load %arg11[%c8, %c0_57] : memref<18x256xbf16, #tpu.memory_space<vmem>>, vector<2x256xbf16>
    tpu.vector_store %arg11[%c8, %c0_57], %70 {strides = array<i32>} : memref<18x256xbf16, #tpu.memory_space<vmem>>, vector<2x256xbf16>,
    %c0_58 = arith.constant 0 : index
    %c1_59 = arith.constant 1 : index
    %c2_60 = arith.constant 2 : index
    %72 = vector.load %arg10[%c0_58, %c1_59, %c2_60] : memref<2x18x18xbf16, #tpu.memory_space<vmem>>, vector<2x16x16xbf16>
    %73 = vector.shape_cast %72 : vector<2x16x16xbf16> to vector<2x256xbf16>
    %c10 = arith.constant 10 : index
    %c0_61 = arith.constant 0 : index
    %74 = vector.load %arg11[%c10, %c0_61] : memref<18x256xbf16, #tpu.memory_space<vmem>>, vector<2x256xbf16>
    tpu.vector_store %arg11[%c10, %c0_61], %73 {strides = array<i32>} : memref<18x256xbf16, #tpu.memory_space<vmem>>, vector<2x256xbf16>,
    %c0_62 = arith.constant 0 : index
    %c2_63 = arith.constant 2 : index
    %c0_64 = arith.constant 0 : index
    %75 = vector.load %arg10[%c0_62, %c2_63, %c0_64] : memref<2x18x18xbf16, #tpu.memory_space<vmem>>, vector<2x16x16xbf16>
    %76 = vector.shape_cast %75 : vector<2x16x16xbf16> to vector<2x256xbf16>
    %c12 = arith.constant 12 : index
    %c0_65 = arith.constant 0 : index
    %77 = vector.load %arg11[%c12, %c0_65] : memref<18x256xbf16, #tpu.memory_space<vmem>>, vector<2x256xbf16>
    tpu.vector_store %arg11[%c12, %c0_65], %76 {strides = array<i32>} : memref<18x256xbf16, #tpu.memory_space<vmem>>, vector<2x256xbf16>,
    %c0_66 = arith.constant 0 : index
    %c2_67 = arith.constant 2 : index
    %c1_68 = arith.constant 1 : index
    %78 = vector.load %arg10[%c0_66, %c2_67, %c1_68] : memref<2x18x18xbf16, #tpu.memory_space<vmem>>, vector<2x16x16xbf16>
    %79 = vector.shape_cast %78 : vector<2x16x16xbf16> to vector<2x256xbf16>
    %c14 = arith.constant 14 : index
    %c0_69 = arith.constant 0 : index
    %80 = vector.load %arg11[%c14, %c0_69] : memref<18x256xbf16, #tpu.memory_space<vmem>>, vector<2x256xbf16>
    tpu.vector_store %arg11[%c14, %c0_69], %79 {strides = array<i32>} : memref<18x256xbf16, #tpu.memory_space<vmem>>, vector<2x256xbf16>,
    %c0_70 = arith.constant 0 : index
    %c2_71 = arith.constant 2 : index
    %c2_72 = arith.constant 2 : index
    %81 = vector.load %arg10[%c0_70, %c2_71, %c2_72] : memref<2x18x18xbf16, #tpu.memory_space<vmem>>, vector<2x16x16xbf16>
    %82 = vector.shape_cast %81 : vector<2x16x16xbf16> to vector<2x256xbf16>
    %c16 = arith.constant 16 : index
    %c0_73 = arith.constant 0 : index
    %83 = vector.load %arg11[%c16, %c0_73] : memref<18x256xbf16, #tpu.memory_space<vmem>>, vector<2x256xbf16>
    tpu.vector_store %arg11[%c16, %c0_73], %82 {strides = array<i32>} : memref<18x256xbf16, #tpu.memory_space<vmem>>, vector<2x256xbf16>,
    %c0_74 = arith.constant 0 : index
    %c0_75 = arith.constant 0 : index
    %84 = vector.load %arg7[%c0_74, %c0_75] : memref<4x18xbf16, #tpu.memory_space<vmem>>, vector<4x18xbf16>
    %c0_76 = arith.constant 0 : index
    %c0_77 = arith.constant 0 : index
    %85 = vector.load %arg11[%c0_76, %c0_77] : memref<18x256xbf16, #tpu.memory_space<vmem>>, vector<18x256xbf16>
    %cst_78 = arith.constant dense<0.000000e+00> : vector<4x256xf32>
    %86 = tpu.matmul %84, %85, %cst_78 {dimension_numbers = #tpu.dot_dimension_numbers<[1], [0], [0], [1], [0, 0, 1, 1], [], []>} : vector<4x18xbf16>, vector<18x256xbf16>, vector<4x256xf32> -> vector<4x256xf32>
    %87 = vector.shape_cast %86 : vector<4x256xf32> to vector<4x16x16xf32>
    %c0_79 = arith.constant 0 : index
    %c0_80 = arith.constant 0 : index
    %c0_81 = arith.constant 0 : index
    %c0_82 = arith.constant 0 : index
    %88 = vector.load %arg8[%c0_79, %c0_80, %c0_81, %c0_82] : memref<1x4x16x16xf32, #tpu.memory_space<vmem>>, vector<1x4x16x16xf32>
    %89 = vector.shape_cast %88 : vector<1x4x16x16xf32> to vector<4x16x16xf32>
    %90 = vector.shape_cast %87 : vector<4x16x16xf32> to vector<1x4x16x16xf32>
    tpu.vector_store %arg8[%c0_79, %c0_80, %c0_81, %c0_82], %90 {strides = array<i32>} : memref<1x4x16x16xf32, #tpu.memory_space<vmem>>, vector<1x4x16x16xf32>,
    %cst_83 = arith.constant dense<0.000000e+00> : vector<4xf32>
    %91 = vector.multi_reduction <add>, %86, %cst_83 [1] : vector<4x256xf32> to vector<4xf32>
    %92 = vector.shape_cast %91 : vector<4xf32> to vector<1x4xf32>
    %c0_84 = arith.constant 0 : index
    %c0_85 = arith.constant 0 : index
    %c0_86 = arith.constant 0 : index
    %c0_87 = arith.constant 0 : index
    %93 = vector.load %arg9[%c0_84, %c0_85, %c0_86, %c0_87] : memref<1x1x2x4xf32, #tpu.memory_space<vmem>>, vector<1x1x1x4xf32>
    %94 = vector.shape_cast %93 : vector<1x1x1x4xf32> to vector<1x4xf32>
    %95 = vector.shape_cast %92 : vector<1x4xf32> to vector<1x1x1x4xf32>
    tpu.vector_store %arg9[%c0_84, %c0_85, %c0_86, %c0_87], %95 {strides = array<i32>} : memref<1x1x2x4xf32, #tpu.memory_space<vmem>>, vector<1x1x1x4xf32>,
    %96 = arith.mulf %86, %86 : vector<4x256xf32>
    %cst_88 = arith.constant dense<0.000000e+00> : vector<4xf32>
    %97 = vector.multi_reduction <add>, %96, %cst_88 [1] : vector<4x256xf32> to vector<4xf32>
    %98 = vector.shape_cast %97 : vector<4xf32> to vector<1x4xf32>
    %c0_89 = arith.constant 0 : index
    %c0_90 = arith.constant 0 : index
    %c1_91 = arith.constant 1 : index
    %c0_92 = arith.constant 0 : index
    %99 = vector.load %arg9[%c0_89, %c0_90, %c1_91, %c0_92] : memref<1x1x2x4xf32, #tpu.memory_space<vmem>>, vector<1x1x1x4xf32>
    %100 = vector.shape_cast %99 : vector<1x1x1x4xf32> to vector<1x4xf32>
    %101 = vector.shape_cast %98 : vector<1x4xf32> to vector<1x1x1x4xf32>
    tpu.vector_store %arg9[%c0_89, %c0_90, %c1_91, %c0_92], %101 {strides = array<i32>} : memref<1x1x2x4xf32, #tpu.memory_space<vmem>>, vector<1x1x1x4xf32>,
    return
  }
  func.func @transform_0(%arg0: i32, %arg1: i32) -> (i32, i32, i32, i32) {
    %c0_i32 = arith.constant 0 : i32
    %c0_i32_0 = arith.constant 0 : i32
    %c0_i32_1 = arith.constant 0 : i32
    return %arg0, %c0_i32, %arg1, %c0_i32_0 : i32, i32, i32, i32
  }
  func.func @transform_1(%arg0: i32, %arg1: i32) -> (i32, i32, i32, i32) {
    %c2_i32 = arith.constant 2 : i32
    %0 = arith.muli %arg1, %c2_i32 : i32
    %c1_i32 = arith.constant 1 : i32
    %1 = arith.subi %0, %c1_i32 : i32
    %c0_i32 = arith.constant 0 : i32
    %2 = arith.maxsi %1, %c0_i32 : i32
    %c0_i32_0 = arith.constant 0 : i32
    %c0_i32_1 = arith.constant 0 : i32
    %c0_i32_2 = arith.constant 0 : i32
    return %arg0, %c0_i32_0, %2, %c0_i32_1 : i32, i32, i32, i32
  }
  func.func @transform_2(%arg0: i32, %arg1: i32) -> (i32, i32, i32, i32) {
    %c1_i32 = arith.constant 1 : i32
    %0 = arith.addi %arg1, %c1_i32 : i32
    %c2_i32 = arith.constant 2 : i32
    %1 = arith.muli %0, %c2_i32 : i32
    %c1_i32_0 = arith.constant 1 : i32
    %2 = arith.minsi %1, %c1_i32_0 : i32
    %c0_i32 = arith.constant 0 : i32
    %c0_i32_1 = arith.constant 0 : i32
    %c0_i32_2 = arith.constant 0 : i32
    return %arg0, %c0_i32, %2, %c0_i32_1 : i32, i32, i32, i32
  }
  func.func @transform_3(%arg0: i32, %arg1: i32) -> (i32, i32) {
    %c0_i32 = arith.constant 0 : i32
    %c0_i32_0 = arith.constant 0 : i32
    %c0_i32_1 = arith.constant 0 : i32
    return %c0_i32, %c0_i32_0 : i32, i32
  }
  func.func @transform_4(%arg0: i32, %arg1: i32) -> (i32, i32) {
    %c0_i32 = arith.constant 0 : i32
    %c0_i32_0 = arith.constant 0 : i32
    %c0_i32_1 = arith.constant 0 : i32
    return %c0_i32, %c0_i32_0 : i32, i32
  }
  func.func @transform_5(%arg0: i32, %arg1: i32) -> (i32, i32) {
    %c0_i32 = arith.constant 0 : i32
    %c0_i32_0 = arith.constant 0 : i32
    %c0_i32_1 = arith.constant 0 : i32
    return %c0_i32, %c0_i32_0 : i32, i32
  }
  func.func @transform_6(%arg0: i32, %arg1: i32) -> (i32, i32, i32, i32) {
    %c0_i32 = arith.constant 0 : i32
    %c0_i32_0 = arith.constant 0 : i32
    %c0_i32_1 = arith.constant 0 : i32
    return %arg0, %c0_i32, %arg1, %c0_i32_0 : i32, i32, i32, i32
  }
  func.func @transform_7(%arg0: i32, %arg1: i32) -> (i32, i32, i32, i32) {
    %c0_i32 = arith.constant 0 : i32
    %c0_i32_0 = arith.constant 0 : i32
    %c0_i32_1 = arith.constant 0 : i32
    return %arg0, %arg1, %c0_i32, %c0_i32_0 : i32, i32, i32, i32
  }
}

module attributes {stable_mosaic.version = 11 : i64} {
  func.func @bn_act_residual_kernel(%arg0: i32, %arg1: i32, %arg2: memref<1x4x256xf32, #tpu.memory_space<vmem>>, %arg3: memref<4x1xf32, #tpu.memory_space<vmem>>, %arg4: memref<4x1xf32, #tpu.memory_space<vmem>>, %arg5: memref<1x4x256xf32, #tpu.memory_space<vmem>>, %arg6: memref<1x4x256xf32, #tpu.memory_space<vmem>>) attributes {dimension_semantics = [#tpu.dimension_semantics<parallel>, #tpu.dimension_semantics<parallel>], iteration_bounds = array<i64: 2, 1>, scalar_prefetch = 0 : i64, scratch_operands = 0 : i64, tpu.core_type = #tpu.core_type<tc>, window_params = [{transform_indices = @transform_0, window_bounds = array<i64: 1, 4, 256>}, {pipeline_mode = #tpu.pipeline_mode<synchronous>, transform_indices = @transform_1, window_bounds = array<i64: 4, 1>}, {pipeline_mode = #tpu.pipeline_mode<synchronous>, transform_indices = @transform_2, window_bounds = array<i64: 4, 1>}, {transform_indices = @transform_3, window_bounds = array<i64: 1, 4, 256>}, {transform_indices = @transform_4, window_bounds = array<i64: 1, 4, 256>}]} {
    %c0 = arith.constant 0 : index
    %c0_0 = arith.constant 0 : index
    %c0_1 = arith.constant 0 : index
    %0 = vector.load %arg2[%c0, %c0_0, %c0_1] : memref<1x4x256xf32, #tpu.memory_space<vmem>>, vector<1x4x256xf32>
    %1 = vector.shape_cast %0 : vector<1x4x256xf32> to vector<4x256xf32>
    %c0_2 = arith.constant 0 : index
    %c0_3 = arith.constant 0 : index
    %2 = vector.load %arg3[%c0_2, %c0_3] : memref<4x1xf32, #tpu.memory_space<vmem>>, vector<4x1xf32>
    %3 = vector.broadcast %2 : vector<4x1xf32> to vector<4x256xf32>
    %4 = arith.mulf %1, %3 : vector<4x256xf32>
    %c0_4 = arith.constant 0 : index
    %c0_5 = arith.constant 0 : index
    %5 = vector.load %arg4[%c0_4, %c0_5] : memref<4x1xf32, #tpu.memory_space<vmem>>, vector<4x1xf32>
    %6 = vector.broadcast %5 : vector<4x1xf32> to vector<4x256xf32>
    %7 = arith.addf %4, %6 : vector<4x256xf32>
    %cst = arith.constant 0.000000e+00 : f32
    %8 = vector.broadcast %cst : f32 to vector<4x256xf32>
    %9 = arith.cmpf oge, %7, %8 : vector<4x256xf32>
    %cst_6 = arith.constant 1.000000e-01 : f32
    %10 = vector.broadcast %cst_6 : f32 to vector<4x256xf32>
    %11 = arith.mulf %10, %7 : vector<4x256xf32>
    %12 = arith.select %9, %7, %11 : vector<4x256xi1>, vector<4x256xf32>
    %c0_7 = arith.constant 0 : index
    %c0_8 = arith.constant 0 : index
    %c0_9 = arith.constant 0 : index
    %13 = vector.load %arg5[%c0_7, %c0_8, %c0_9] : memref<1x4x256xf32, #tpu.memory_space<vmem>>, vector<1x4x256xf32>
    %14 = vector.shape_cast %13 : vector<1x4x256xf32> to vector<4x256xf32>
    %15 = arith.addf %12, %14 : vector<4x256xf32>
    %c0_10 = arith.constant 0 : index
    %c0_11 = arith.constant 0 : index
    %c0_12 = arith.constant 0 : index
    %16 = vector.load %arg6[%c0_10, %c0_11, %c0_12] : memref<1x4x256xf32, #tpu.memory_space<vmem>>, vector<1x4x256xf32>
    %17 = vector.shape_cast %16 : vector<1x4x256xf32> to vector<4x256xf32>
    %18 = vector.shape_cast %15 : vector<4x256xf32> to vector<1x4x256xf32>
    tpu.vector_store %arg6[%c0_10, %c0_11, %c0_12], %18 {strides = array<i32>} : memref<1x4x256xf32, #tpu.memory_space<vmem>>, vector<1x4x256xf32>,
    return
  }
  func.func @transform_0(%arg0: i32, %arg1: i32) -> (i32, i32, i32) {
    %c0_i32 = arith.constant 0 : i32
    %c0_i32_0 = arith.constant 0 : i32
    return %arg0, %c0_i32, %arg1 : i32, i32, i32
  }
  func.func @transform_1(%arg0: i32, %arg1: i32) -> (i32, i32) {
    %c0_i32 = arith.constant 0 : i32
    %c0_i32_0 = arith.constant 0 : i32
    %c0_i32_1 = arith.constant 0 : i32
    return %c0_i32, %c0_i32_0 : i32, i32
  }
  func.func @transform_2(%arg0: i32, %arg1: i32) -> (i32, i32) {
    %c0_i32 = arith.constant 0 : i32
    %c0_i32_0 = arith.constant 0 : i32
    %c0_i32_1 = arith.constant 0 : i32
    return %c0_i32, %c0_i32_0 : i32, i32
  }
  func.func @transform_3(%arg0: i32, %arg1: i32) -> (i32, i32, i32) {
    %c0_i32 = arith.constant 0 : i32
    %c0_i32_0 = arith.constant 0 : i32
    return %arg0, %c0_i32, %arg1 : i32, i32, i32
  }
  func.func @transform_4(%arg0: i32, %arg1: i32) -> (i32, i32, i32) {
    %c0_i32 = arith.constant 0 : i32
    %c0_i32_0 = arith.constant 0 : i32
    return %arg0, %c0_i32, %arg1 : i32, i32, i32
  }
}

</mosaic_0001>

<llo_original>
// kernel: residual_block.3
$region0: #{residual_block.3}
  #allocation0 [shape = 'u32[]', space=smem, size = 0x4, offset = 0x4, fixed_abs, tag = 'smem constant byte address 0x4 - core index']
  #allocation1 [shape = 'u32[144,128]{1,0:T(1,128)}', space=vmem, size = 0x12000, scoped, tag = 'internal scratch']
  %s0 = inlined_call_operand.vmem [shape: f32[2,4,256], index: 0, kind: input, shape index: {}]
  %s1 = inlined_call_operand.vmem [shape: bf16[2,4], index: 1, kind: input, shape index: {}]
  %s2 = inlined_call_operand.vmem [shape: f32[2,2,256], index: 2, kind: output, shape index: {0}]
  %s3 = inlined_call_operand.vmem [shape: f32[2,1,2,2], index: 3, kind: output, shape index: {1}]
  %4 = xla_tuple %s2, %s3
  %s5 = sld [smem:[#allocation0]]
  $region49: #{residual_block.3} parent=0
    _
  %s7 = ssub.s32 1, %s5
  %s8 = scalar_select 0, %s7, %s5
  loop: start=0, step=1, limit=4
  $region2: #{residual_block.3} parent=0 // loop_pre_header
    _
  $region3: #{residual_block.3} parent=0 // loop_header
    %s10 = sphi 0, %s14
    %p11 = scmp.ge.s32.totalorder %s10, 4
    %s17 = sphi 0, %s29
    %s18 = sphi 0, %s25
    %s19 = sphi 0, %s17
    %s20 = sphi 0, %s18
    %s21 = sphi 0, %s19
    %s22 = sphi 0, %s20
    %s34 = sphi 0, %s36
    %s37 = sphi 0, %s34
    %s38 = sphi 0, %s37
    %s54 = sphi 0, %s38
    %s58 = sphi 0, %s58
    %s60 = sphi 0, %s58
    %s61 = sphi 0, %s60
    %s75 = sphi 0, %s61
    %s83 = sphi 0, %s85
    %s86 = sphi 0, %s83
    %s87 = sphi 0, %s86
    %s103 = sphi 0, %s87
    %s111 = sphi 0, %s113
    %s114 = sphi 0, %s111
    %s115 = sphi 0, %s114
    %s131 = sphi 0, %s115
  $region4: #{residual_block.3} parent=0 // loop_header_branch
    %13 = sbr.rel (%p11) target = $region8
  $region5: #{residual_block.3} parent=0 // loop_body
    %s15 = ssub.s32 %s10, 1
    %s16 = ssub.s32 %s10, 2
    %s23 = sadd.s32 1, %s18
    %p24 = scmp.ge.s32.totalorder %s23, 1
    %s25 = scalar_select %p24, 0, %s23
    %s26 = sadd.s32 1, %s17
    %s27 = scalar_select %p24, %s26, %s17
    %p28 = scmp.ge.s32.totalorder %s27, 2
    %s29 = scalar_select %p28, 0, %s27
    %s30 = ssub.s32 %s17, %s29
    %s31 = ssub.s32 %s18, %s25
    %s32 = sor.u32 %s30, %s31
    %p33 = scmp.eq.s32.totalorder %s32, 0
    %s35 = sadd.s32 %s34, 1
    %s36 = scalar_select %p33, %s34, %s35
    %p39 = pneg %p33
    %p40 = scmp.eq.s32.totalorder %s10, 1
    %p41 = por %p39, %p40
    %p42 = scmp.ne.s32.totalorder %s34, %s37
    %p43 = scmp.eq.s32.totalorder %s10, 0
    %p44 = por %p42, %p43
    %p45 = scmp.ne.s32.totalorder %s34, %s37
    %p46 = scmp.eq.s32.totalorder %s15, 1
    %p47 = por %p45, %p46
    %p48 = scmp.ne.s32.totalorder %s37, %s38
    %p49 = scmp.eq.s32.totalorder %s15, 0
    %p50 = por %p48, %p49
    %p51 = scmp.ne.s32.totalorder %s37, %s38
    %p52 = scmp.eq.s32.totalorder %s16, 1
    %p53 = por %p51, %p52
    %p55 = scmp.ne.s32.totalorder %s38, %s54
    %p56 = scmp.eq.s32.totalorder %s16, 0
    %p57 = por %p55, %p56
    %s59 = sadd.s32 %s58, 1
    %p62 = scmp.eq.s32.totalorder %s10, 1
    %p63 = scmp.ne.s32.totalorder %s58, %s60
    %p64 = scmp.eq.s32.totalorder %s10, 0
    %p65 = por %p63, %p64
    %p66 = scmp.ne.s32.totalorder %s58, %s60
    %p67 = scmp.eq.s32.totalorder %s15, 1
    %p68 = por %p66, %p67
    %p69 = scmp.ne.s32.totalorder %s60, %s61
    %p70 = scmp.eq.s32.totalorder %s15, 0
    %p71 = por %p69, %p70
    %p72 = scmp.ne.s32.totalorder %s60, %s61
    %p73 = scmp.eq.s32.totalorder %s16, 1
    %p74 = por %p72, %p73
    %p76 = scmp.ne.s32.totalorder %s61, %s75
    %p77 = scmp.eq.s32.totalorder %s16, 0
    %p78 = por %p76, %p77
    %s79 = ssub.s32 %s17, %s29
    %s80 = ssub.s32 %s18, %s25
    %s81 = sor.u32 %s79, %s80
    %p82 = scmp.eq.s32.totalorder %s81, 0
    %s84 = sadd.s32 %s83, 1
    %s85 = scalar_select %p82, %s83, %s84
    %p88 = pneg %p82
    %p89 = scmp.eq.s32.totalorder %s10, 1
    %p90 = por %p88, %p89
    %p91 = scmp.ne.s32.totalorder %s83, %s86
    %p92 = scmp.eq.s32.totalorder %s10, 0
    %p93 = por %p91, %p92
    %p94 = scmp.ne.s32.totalorder %s83, %s86
    %p95 = scmp.eq.s32.totalorder %s15, 1
    %p96 = por %p94, %p95
    %p97 = scmp.ne.s32.totalorder %s86, %s87
    %p98 = scmp.eq.s32.totalorder %s15, 0
    %p99 = por %p97, %p98
    %p100 = scmp.ne.s32.totalorder %s86, %s87
    %p101 = scmp.eq.s32.totalorder %s16, 1
    %p102 = por %p100, %p101
    %p104 = scmp.ne.s32.totalorder %s87, %s103
    %p105 = scmp.eq.s32.totalorder %s16, 0
    %p106 = por %p104, %p105
    %s107 = ssub.s32 %s17, %s29
    %s108 = ssub.s32 %s18, %s25
    %s109 = sor.u32 %s107, %s108
    %p110 = scmp.eq.s32.totalorder %s109, 0
    %s112 = sadd.s32 %s111, 1
    %s113 = scalar_select %p110, %s111, %s112
    %p116 = pneg %p110
    %p117 = scmp.eq.s32.totalorder %s10, 1
    %p118 = por %p116, %p117
    %p119 = scmp.ne.s32.totalorder %s111, %s114
    %p120 = scmp.eq.s32.totalorder %s10, 0
    %p121 = por %p119, %p120
    %p122 = scmp.ne.s32.totalorder %s111, %s114
    %p123 = scmp.eq.s32.totalorder %s15, 1
    %p124 = por %p122, %p123
    %p125 = scmp.ne.s32.totalorder %s114, %s115
    %p126 = scmp.eq.s32.totalorder %s15, 0
    %p127 = por %p125, %p126
    %p128 = scmp.ne.s32.totalorder %s114, %s115
    %p129 = scmp.eq.s32.totalorder %s16, 1
    %p130 = por %p128, %p129
    %p132 = scmp.ne.s32.totalorder %s115, %s131
    %p133 = scmp.eq.s32.totalorder %s16, 0
    %p134 = por %p132, %p133
    %p135 = scmp.le.s32.totalorder 1, %s10
    %p136 = scmp.lt.s32.totalorder %s10, 3
    %p137 = pnand %p135, %p136
    %p138 = pneg %p137
    // Predicated region
    $region9: #{residual_block.3} parent=5 // pred_check
      _
    $region10: #{residual_block.3} parent=5 // pred_check_branch
      %140 = sbr.rel (%p137) target = $region12
    $region11: #{residual_block.3} parent=5 // pred_region
      %s141 = ssub.s32 %s10, 1
      // Predicated region
      $region13: #{residual_block.3} parent=11 // pred_check
        %p142 = pneg %p71
      $region14: #{residual_block.3} parent=11 // pred_check_branch
        %144 = sbr.rel (%p142) target = $region16
      $region15: #{residual_block.3} parent=11 // pred_region
        _
      $region16: #{residual_block.3} parent=11 // pred_fallthru
        _
    $region12: #{residual_block.3} parent=5 // pred_fallthru
      _
    %p145 = scmp.lt.s32.totalorder %s10, 2
    // Predicated region
    $region17: #{residual_block.3} parent=5 // pred_check
      %p146 = pneg %p145
    $region18: #{residual_block.3} parent=5 // pred_check_branch
      %148 = sbr.rel (%p146) target = $region20
    $region19: #{residual_block.3} parent=5 // pred_region
      // Predicated region
      $region21: #{residual_block.3} parent=19 // pred_check
        %p149 = pneg %p44
      $region22: #{residual_block.3} parent=19 // pred_check_branch
        %151 = sbr.rel (%p149) target = $region24
      $region23: #{residual_block.3} parent=19 // pred_region
        %s152 = smul.u32 2, %s18
        %p153 = scmp.lt.s32.totalorder %s17, 1
        %s154 = scalar_select %p153, %s17, 1
        %p155 = scmp.lt.s32.totalorder %s152, 1
        %s156 = scalar_select %p155, %s152, 1
        %s157 = smul.addr %s154, 2
        %s158 = sadd.s32 %s156, %s157
        %s159 = smul.addr %s158, 4
        %s160 = scalar_lea.vmem %s0, %s159
        %s161 = smul.u32 2, %s18
      $region24: #{residual_block.3} parent=19 // pred_fallthru
        _
    $region20: #{residual_block.3} parent=5 // pred_fallthru
      _
    %p162 = scmp.le.s32.totalorder 1, %s10
    %p163 = scmp.lt.s32.totalorder %s10, 3
    %p164 = pnand %p162, %p163
    %p165 = pneg %p164
    // Predicated region
    $region25: #{residual_block.3} parent=5 // pred_check
      _
    $region26: #{residual_block.3} parent=5 // pred_check_branch
      %167 = sbr.rel (%p164) target = $region28
    $region27: #{residual_block.3} parent=5 // pred_region
      %s168 = ssub.s32 %s10, 1
      %s169 = smul.u32 2, %s20
      %p170 = scmp.lt.s32.totalorder %s19, 1
      %s171 = scalar_select %p170, %s19, 1
      %p172 = scmp.lt.s32.totalorder %s169, 1
      %s173 = scalar_select %p172, %s169, 1
      %s174 = smul.addr %s171, 2
      %s175 = sadd.s32 %s173, %s174
      %s176 = smul.addr %s175, 4
      %s177 = scalar_lea.vmem %s0, %s176
      %p178 = pneg %p50
      %p179 = pneg %p47
      %p180 = pneg %p71
      %p181 = pneg %p68
      %p182 = pneg %p99
      %p183 = pneg %p96
      %s184 = smul.u32 2, %s20
      %p185 = scmp.lt.s32.totalorder %s19, 1
      %s186 = scalar_select %p185, %s19, 1
      %p187 = scmp.lt.s32.totalorder %s184, 1
      %s188 = scalar_select %p187, %s184, 1
      %s189 = smul.addr %s186, 2
      %s190 = sadd.s32 %s188, %s189
      %s191 = smul.addr %s190, 2
      %s192 = scalar_lea.vmem %s2, %s191
      %p193 = pneg %p127
      %p194 = pneg %p124
      %p195 = scmp.lt.s32.totalorder %s19, 1
      %s196 = scalar_select %p195, %s19, 1
      %p197 = scmp.lt.s32.totalorder %s20, 0
      %s198 = scalar_select %p197, %s20, 0
      %s199 = sadd.s32 %s198, %s196
      %s200 = smul.addr %s199, 2
      %s201 = scalar_lea.vmem %s3, %s200
      %s202 = smul.u32 2, %s20
      %p203 = scmp.lt.s32.totalorder %s19, 1
      %s204 = scalar_select %p203, %s19, 1
      %p205 = scmp.lt.s32.totalorder %s202, 1
      %s206 = scalar_select %p205, %s202, 1
      %s207 = smul.addr %s204, 2
      %s208 = sadd.s32 %s206, %s207
      %s209 = smul.addr %s208, 4
      %s210 = scalar_lea.vmem %s0, %s209
      %s211 = smul.u32 2, %s20
      %s212 = smul.u32 2, %s20
      %p213 = scmp.lt.s32.totalorder %s19, 1
      %s214 = scalar_select %p213, %s19, 1
      %p215 = scmp.lt.s32.totalorder %s212, 1
      %s216 = scalar_select %p215, %s212, 1
      %s217 = smul.addr %s214, 2
      %s218 = sadd.s32 %s216, %s217
      %s219 = smul.addr %s218, 2
      %s220 = scalar_lea.vmem %s2, %s219
      %s221 = smul.u32 2, %s20
      %p222 = scmp.lt.s32.totalorder %s19, 1
      %s223 = scalar_select %p222, %s19, 1
      %p224 = scmp.lt.s32.totalorder %s20, 0
      %s225 = scalar_select %p224, %s20, 0
      %s226 = sadd.s32 %s225, %s223
      %s227 = smul.addr %s226, 2
      %s228 = scalar_lea.vmem %s3, %s227
      %v230 = vld [vmem:[%s210] sm:$0xff]
      %v232 = vcombine.high %v230, %v230
      %v234 = vpack.c.bf16 %v230, %v230
      %v235 = vpack.c.bf16 %v232, %v232
      %v236 = vld [vmem:[%s1] sm:$0x1]
      %vm237 = vcmask 31744
      %v239 = vsel %vm237, %v236, 0
      %vm241 = vcmask 1041408
      %v243 = vsel %vm241, %v234, 0
      %v246 = vsel %vm241, %v235, 0
      %248 = vmatprep.subr.bf16.mxu0 %v246
      %249 = vmatpush1.bf16.msra.mxu0 %v243
      %250 = vmatprep.subr.bf16.mxu0 0
      %251 = vmatpush1.bf16.msra.mxu0 0
      %252 = vmatprep.subr.bf16.mxu0 0
      %253 = vmatpush1.bf16.msra.mxu0 0
      %254 = vmatprep.subr.bf16.mxu0 0
      %255 = vmatpush1.bf16.msra.mxu0 0
      %256 = vmatprep.subr.bf16.mxu0 0
      %257 = vmatpush1.bf16.msra.mxu0 0
      %258 = vmatprep.subr.bf16.mxu0 0
      %259 = vmatpush1.bf16.msra.mxu0 0
      %260 = vmatprep.subr.bf16.mxu0 0
      %261 = vmatpush1.bf16.msra.mxu0 0
      %262 = vmatprep.subr.bf16.mxu0 0
      %263 = vmatpush1.bf16.msra.mxu0 0
      %264 = vmatprep.subr.bf16.mxu0 0
      %265 = vmatpush1.bf16.msra.mxu0 0
      %266 = vmatprep.subr.bf16.mxu0 0
      %267 = vmatpush1.bf16.msra.mxu0 0
      %268 = vmatprep.subr.bf16.mxu0 0
      %269 = vmatpush1.bf16.msra.mxu0 0
      %270 = vmatprep.subr.bf16.mxu0 0
      %271 = vmatpush1.bf16.msra.mxu0 0
      %272 = vmatprep.subr.bf16.mxu0 0
      %273 = vmatpush1.bf16.msra.mxu0 0
      %274 = vmatprep.subr.bf16.mxu0 0
      %275 = vmatpush1.bf16.msra.mxu0 0
      %276 = vmatprep.subr.bf16.mxu0 0
      %277 = vmatpush1.bf16.msra.mxu0 0
      %278 = vmatprep.subr.bf16.mxu0 0
      %279 = vmatpush1.bf16.msra.mxu0 0
      %280 = vmatprep.mubr.bf16.mxu0 0
      %281 = vmatmul.mubr.bf16.gmra.mrb[0].mxu0 %v239
      %v282 = vpop.f32.mrb[0].mxu0
      %v283 = vadd.f32 0.0, %v282
      %v284 = vpop.f32.mrb[0].mxu0
      %v285 = vadd.f32 0.0, %v284
      %v286 = vpop.f32.mrb[0].mxu0
      %v287 = vpop.f32.mrb[0].mxu0
      %288 = vdwg.mxu0
      %v291 = vcombine.low %v283, %v285
      %v293 = vunpack.c.l.s4 1983009808
      %v294 = vunpack.c.0.s8 %v293
      %v295 = vlaneseq
      %v296 = vshrl.u32 %v295, 7
      %v297 = vsub.s32 %v294, %v296
      %v298 = vrot.slane %v291, %v297
      %300 = vst [vmem:[%s220] sm:$0xf] %v298
      %v301 = vsel %vm241, %v283, 0.0
      %v302 = vsel %vm241, %v285, 0.0
      %v303 = vadd.f32 %v301, %v302
      %304 = vadd.xlane.f32.xlu0 %v303
      %v305 = vpop.xlane.xlu0 %304
      %v307 = vlaneseq
      %v308 = vand.u32 %v307, 127
      %v309 = vlaneseq
      %v310 = vshrl.u32 %v309, 7
      %v311 = vsub.s32 %v308, %v310
      %v312 = vrot.slane %v305, %v311
      %vm314 = vcmask 8192
      %315 = vst.msk [vmem:[%s228] sm:$0x1] %vm314, %v312
      %v316 = vmul.f32 %v283, %v283
      %v317 = vmul.f32 %v285, %v285
      %v318 = vsel %vm241, %v316, 0.0
      %v319 = vsel %vm241, %v317, 0.0
      %v320 = vadd.f32 %v318, %v319
      %321 = vadd.xlane.f32.xlu0 %v320
      %v322 = vpop.xlane.xlu0 %321
      %v324 = vlaneseq
      %v325 = vshrl.u32 %v324, 7
      %v326 = vsub.s32 %v308, %v325
      %v327 = vrot.slane %v322, %v326
      %329 = vst.msk [vmem:[%s228 + $0x1] sm:$0x1] %vm314, %v327
      %s330 = smul.u32 2, %s20
      %p331 = scmp.lt.s32.totalorder %s19, 1
      %s332 = scalar_select %p331, %s19, 1
      %p333 = scmp.lt.s32.totalorder %s330, 1
      %s334 = scalar_select %p333, %s330, 1
      %s335 = smul.addr %s332, 2
      %s336 = sadd.s32 %s334, %s335
      %s337 = smul.addr %s336, 2
      %s338 = scalar_lea.vmem %s2, %s337
      %p339 = scmp.lt.s32.totalorder %s19, 1
      %s340 = scalar_select %p339, %s19, 1
      %p341 = scmp.lt.s32.totalorder %s20, 0
      %s342 = scalar_select %p341, %s20, 0
      %s343 = sadd.s32 %s342, %s340
      %s344 = smul.addr %s343, 2
      %s345 = scalar_lea.vmem %s3, %s344
      // Predicated region
      $region29: #{residual_block.3} parent=27 // pred_check
        %p346 = pneg %p96
      $region30: #{residual_block.3} parent=27 // pred_check_branch
        %348 = sbr.rel (%p346) target = $region32
      $region31: #{residual_block.3} parent=27 // pred_region
        %s349 = smul.u32 2, %s20
      $region32: #{residual_block.3} parent=27 // pred_fallthru
        _
      // Predicated region
      $region33: #{residual_block.3} parent=27 // pred_check
        %p350 = pneg %p124
      $region34: #{residual_block.3} parent=27 // pred_check_branch
        %352 = sbr.rel (%p350) target = $region36
      $region35: #{residual_block.3} parent=27 // pred_region
        _
      $region36: #{residual_block.3} parent=27 // pred_fallthru
        _
    $region28: #{residual_block.3} parent=5 // pred_fallthru
      _
    %p353 = scmp.le.s32.totalorder 2, %s10
    // Predicated region
    $region37: #{residual_block.3} parent=5 // pred_check
      %p354 = pneg %p353
    $region38: #{residual_block.3} parent=5 // pred_check_branch
      %356 = sbr.rel (%p354) target = $region40
    $region39: #{residual_block.3} parent=5 // pred_region
      %s357 = ssub.s32 %s10, 2
      // Predicated region
      $region41: #{residual_block.3} parent=39 // pred_check
        %p358 = pneg %p102
      $region42: #{residual_block.3} parent=39 // pred_check_branch
        %360 = sbr.rel (%p358) target = $region44
      $region43: #{residual_block.3} parent=39 // pred_region
        %s361 = smul.u32 2, %s22
        %p362 = scmp.lt.s32.totalorder %s21, 1
        %s363 = scalar_select %p362, %s21, 1
        %p364 = scmp.lt.s32.totalorder %s361, 1
        %s365 = scalar_select %p364, %s361, 1
        %s366 = smul.addr %s363, 2
        %s367 = sadd.s32 %s365, %s366
        %s368 = smul.addr %s367, 2
        %s369 = scalar_lea.vmem %s2, %s368
      $region44: #{residual_block.3} parent=39 // pred_fallthru
        _
      // Predicated region
      $region45: #{residual_block.3} parent=39 // pred_check
        %p370 = pneg %p130
      $region46: #{residual_block.3} parent=39 // pred_check_branch
        %372 = sbr.rel (%p370) target = $region48
      $region47: #{residual_block.3} parent=39 // pred_region
        %p373 = scmp.lt.s32.totalorder %s21, 1
        %s374 = scalar_select %p373, %s21, 1
        %p375 = scmp.lt.s32.totalorder %s22, 0
        %s376 = scalar_select %p375, %s22, 0
        %s377 = sadd.s32 %s376, %s374
        %s378 = smul.addr %s377, 2
        %s379 = scalar_lea.vmem %s3, %s378
      $region48: #{residual_block.3} parent=39 // pred_fallthru
        _
    $region40: #{residual_block.3} parent=5 // pred_fallthru
      _
  $region6: #{residual_block.3} parent=0 // loop_footer
    %s14 = sadd.s32 1, %s10
  $region7: #{residual_block.3} parent=0 // loop_footer_branch
    %9 = sbr.rel target = $region3
  $region8: #{residual_block.3} parent=0 // loop_exit
    _

// kernel: residual_block.5
$region0: #{residual_block.5}
  #allocation0 [shape = 'u32[]', space=smem, size = 0x4, offset = 0x4, fixed_abs, tag = 'smem constant byte address 0x4 - core index']
  #allocation1 [shape = 'u32[144,128]{1,0:T(1,128)}', space=vmem, size = 0x12000, scoped, tag = 'internal scratch']
  %s0 = inlined_call_operand.vmem [shape: f32[2,4,256], index: 0, kind: input, shape index: {}]
  %s1 = inlined_call_operand.vmem [shape: f32[4,1], index: 1, kind: input, shape index: {}]
  %s2 = inlined_call_operand.vmem [shape: f32[4,1], index: 2, kind: input, shape index: {}]
  %s3 = inlined_call_operand.vmem [shape: f32[2,4,256], index: 3, kind: input, shape index: {}]
  %s4 = inlined_call_operand.vmem [shape: f32[2,4,256], index: 4, kind: output, shape index: {}]
  %s5 = sld [smem:[#allocation0]]
  $region49: #{residual_block.5} parent=0
    _
  %s7 = ssub.s32 1, %s5
  %s8 = scalar_select 0, %s7, %s5
  loop: start=0, step=1, limit=4
  $region2: #{residual_block.5} parent=0 // loop_pre_header
    _
  $region3: #{residual_block.5} parent=0 // loop_header
    %s10 = sphi 0, %s14
    %p11 = scmp.ge.s32.totalorder %s10, 4
    %s17 = sphi 0, %s29
    %s18 = sphi 0, %s25
    %s19 = sphi 0, %s17
    %s20 = sphi 0, %s18
    %s21 = sphi 0, %s19
    %s22 = sphi 0, %s20
    %s34 = sphi 0, %s36
    %s37 = sphi 0, %s34
    %s38 = sphi 0, %s37
    %s54 = sphi 0, %s38
    %s58 = sphi 0, %s58
    %s60 = sphi 0, %s58
    %s61 = sphi 0, %s60
    %s75 = sphi 0, %s61
    %s79 = sphi 0, %s79
    %s81 = sphi 0, %s79
    %s82 = sphi 0, %s81
    %s96 = sphi 0, %s82
    %s104 = sphi 0, %s106
    %s107 = sphi 0, %s104
    %s108 = sphi 0, %s107
    %s124 = sphi 0, %s108
    %s132 = sphi 0, %s134
    %s135 = sphi 0, %s132
    %s136 = sphi 0, %s135
    %s152 = sphi 0, %s136
  $region4: #{residual_block.5} parent=0 // loop_header_branch
    %13 = sbr.rel (%p11) target = $region8
  $region5: #{residual_block.5} parent=0 // loop_body
    %s15 = ssub.s32 %s10, 1
    %s16 = ssub.s32 %s10, 2
    %s23 = sadd.s32 1, %s18
    %p24 = scmp.ge.s32.totalorder %s23, 1
    %s25 = scalar_select %p24, 0, %s23
    %s26 = sadd.s32 1, %s17
    %s27 = scalar_select %p24, %s26, %s17
    %p28 = scmp.ge.s32.totalorder %s27, 2
    %s29 = scalar_select %p28, 0, %s27
    %s30 = ssub.s32 %s17, %s29
    %s31 = ssub.s32 %s18, %s25
    %s32 = sor.u32 %s30, %s31
    %p33 = scmp.eq.s32.totalorder %s32, 0
    %s35 = sadd.s32 %s34, 1
    %s36 = scalar_select %p33, %s34, %s35
    %p39 = pneg %p33
    %p40 = scmp.eq.s32.totalorder %s10, 1
    %p41 = por %p39, %p40
    %p42 = scmp.ne.s32.totalorder %s34, %s37
    %p43 = scmp.eq.s32.totalorder %s10, 0
    %p44 = por %p42, %p43
    %p45 = scmp.ne.s32.totalorder %s34, %s37
    %p46 = scmp.eq.s32.totalorder %s15, 1
    %p47 = por %p45, %p46
    %p48 = scmp.ne.s32.totalorder %s37, %s38
    %p49 = scmp.eq.s32.totalorder %s15, 0
    %p50 = por %p48, %p49
    %p51 = scmp.ne.s32.totalorder %s37, %s38
    %p52 = scmp.eq.s32.totalorder %s16, 1
    %p53 = por %p51, %p52
    %p55 = scmp.ne.s32.totalorder %s38, %s54
    %p56 = scmp.eq.s32.totalorder %s16, 0
    %p57 = por %p55, %p56
    %s59 = sadd.s32 %s58, 1
    %p62 = scmp.eq.s32.totalorder %s10, 1
    %p63 = scmp.ne.s32.totalorder %s58, %s60
    %p64 = scmp.eq.s32.totalorder %s10, 0
    %p65 = por %p63, %p64
    %p66 = scmp.ne.s32.totalorder %s58, %s60
    %p67 = scmp.eq.s32.totalorder %s15, 1
    %p68 = por %p66, %p67
    %p69 = scmp.ne.s32.totalorder %s60, %s61
    %p70 = scmp.eq.s32.totalorder %s15, 0
    %p71 = por %p69, %p70
    %p72 = scmp.ne.s32.totalorder %s60, %s61
    %p73 = scmp.eq.s32.totalorder %s16, 1
    %p74 = por %p72, %p73
    %p76 = scmp.ne.s32.totalorder %s61, %s75
    %p77 = scmp.eq.s32.totalorder %s16, 0
    %p78 = por %p76, %p77
    %s80 = sadd.s32 %s79, 1
    %p83 = scmp.eq.s32.totalorder %s10, 1
    %p84 = scmp.ne.s32.totalorder %s79, %s81
    %p85 = scmp.eq.s32.totalorder %s10, 0
    %p86 = por %p84, %p85
    %p87 = scmp.ne.s32.totalorder %s79, %s81
    %p88 = scmp.eq.s32.totalorder %s15, 1
    %p89 = por %p87, %p88
    %p90 = scmp.ne.s32.totalorder %s81, %s82
    %p91 = scmp.eq.s32.totalorder %s15, 0
    %p92 = por %p90, %p91
    %p93 = scmp.ne.s32.totalorder %s81, %s82
    %p94 = scmp.eq.s32.totalorder %s16, 1
    %p95 = por %p93, %p94
    %p97 = scmp.ne.s32.totalorder %s82, %s96
    %p98 = scmp.eq.s32.totalorder %s16, 0
    %p99 = por %p97, %p98
    %s100 = ssub.s32 %s17, %s29
    %s101 = ssub.s32 %s18, %s25
    %s102 = sor.u32 %s100, %s101
    %p103 = scmp.eq.s32.totalorder %s102, 0
    %s105 = sadd.s32 %s104, 1
    %s106 = scalar_select %p103, %s104, %s105
    %p109 = pneg %p103
    %p110 = scmp.eq.s32.totalorder %s10, 1
    %p111 = por %p109, %p110
    %p112 = scmp.ne.s32.totalorder %s104, %s107
    %p113 = scmp.eq.s32.totalorder %s10, 0
    %p114 = por %p112, %p113
    %p115 = scmp.ne.s32.totalorder %s104, %s107
    %p116 = scmp.eq.s32.totalorder %s15, 1
    %p117 = por %p115, %p116
    %p118 = scmp.ne.s32.totalorder %s107, %s108
    %p119 = scmp.eq.s32.totalorder %s15, 0
    %p120 = por %p118, %p119
    %p121 = scmp.ne.s32.totalorder %s107, %s108
    %p122 = scmp.eq.s32.totalorder %s16, 1
    %p123 = por %p121, %p122
    %p125 = scmp.ne.s32.totalorder %s108, %s124
    %p126 = scmp.eq.s32.totalorder %s16, 0
    %p127 = por %p125, %p126
    %s128 = ssub.s32 %s17, %s29
    %s129 = ssub.s32 %s18, %s25
    %s130 = sor.u32 %s128, %s129
    %p131 = scmp.eq.s32.totalorder %s130, 0
    %s133 = sadd.s32 %s132, 1
    %s134 = scalar_select %p131, %s132, %s133
    %p137 = pneg %p131
    %p138 = scmp.eq.s32.totalorder %s10, 1
    %p139 = por %p137, %p138
    %p140 = scmp.ne.s32.totalorder %s132, %s135
    %p141 = scmp.eq.s32.totalorder %s10, 0
    %p142 = por %p140, %p141
    %p143 = scmp.ne.s32.totalorder %s132, %s135
    %p144 = scmp.eq.s32.totalorder %s15, 1
    %p145 = por %p143, %p144
    %p146 = scmp.ne.s32.totalorder %s135, %s136
    %p147 = scmp.eq.s32.totalorder %s15, 0
    %p148 = por %p146, %p147
    %p149 = scmp.ne.s32.totalorder %s135, %s136
    %p150 = scmp.eq.s32.totalorder %s16, 1
    %p151 = por %p149, %p150
    %p153 = scmp.ne.s32.totalorder %s136, %s152
    %p154 = scmp.eq.s32.totalorder %s16, 0
    %p155 = por %p153, %p154
    %p156 = scmp.le.s32.totalorder 1, %s10
    %p157 = scmp.lt.s32.totalorder %s10, 3
    %p158 = pnand %p156, %p157
    %p159 = pneg %p158
    // Predicated region
    $region9: #{residual_block.5} parent=5 // pred_check
      _
    $region10: #{residual_block.5} parent=5 // pred_check_branch
      %161 = sbr.rel (%p158) target = $region12
    $region11: #{residual_block.5} parent=5 // pred_region
      %s162 = ssub.s32 %s10, 1
      // Predicated region
      $region13: #{residual_block.5} parent=11 // pred_check
        %p163 = pneg %p71
      $region14: #{residual_block.5} parent=11 // pred_check_branch
        %165 = sbr.rel (%p163) target = $region16
      $region15: #{residual_block.5} parent=11 // pred_region
        _
      $region16: #{residual_block.5} parent=11 // pred_fallthru
        _
      // Predicated region
      $region17: #{residual_block.5} parent=11 // pred_check
        %p166 = pneg %p92
      $region18: #{residual_block.5} parent=11 // pred_check_branch
        %168 = sbr.rel (%p166) target = $region20
      $region19: #{residual_block.5} parent=11 // pred_region
        _
      $region20: #{residual_block.5} parent=11 // pred_fallthru
        _
    $region12: #{residual_block.5} parent=5 // pred_fallthru
      _
    %p169 = scmp.lt.s32.totalorder %s10, 2
    // Predicated region
    $region21: #{residual_block.5} parent=5 // pred_check
      %p170 = pneg %p169
    $region22: #{residual_block.5} parent=5 // pred_check_branch
      %172 = sbr.rel (%p170) target = $region24
    $region23: #{residual_block.5} parent=5 // pred_region
      // Predicated region
      $region25: #{residual_block.5} parent=23 // pred_check
        %p173 = pneg %p44
      $region26: #{residual_block.5} parent=23 // pred_check_branch
        %175 = sbr.rel (%p173) target = $region28
      $region27: #{residual_block.5} parent=23 // pred_region
        %s176 = smul.u32 2, %s18
        %p177 = scmp.lt.s32.totalorder %s17, 1
        %s178 = scalar_select %p177, %s17, 1
        %p179 = scmp.lt.s32.totalorder %s176, 1
        %s180 = scalar_select %p179, %s176, 1
        %s181 = smul.addr %s178, 2
        %s182 = sadd.s32 %s180, %s181
        %s183 = smul.addr %s182, 4
        %s184 = scalar_lea.vmem %s0, %s183
        %s185 = smul.u32 2, %s18
      $region28: #{residual_block.5} parent=23 // pred_fallthru
        _
      // Predicated region
      $region29: #{residual_block.5} parent=23 // pred_check
        %p186 = pneg %p114
      $region30: #{residual_block.5} parent=23 // pred_check_branch
        %188 = sbr.rel (%p186) target = $region32
      $region31: #{residual_block.5} parent=23 // pred_region
        %s189 = smul.u32 2, %s18
        %p190 = scmp.lt.s32.totalorder %s17, 1
        %s191 = scalar_select %p190, %s17, 1
        %p192 = scmp.lt.s32.totalorder %s189, 1
        %s193 = scalar_select %p192, %s189, 1
        %s194 = smul.addr %s191, 2
        %s195 = sadd.s32 %s193, %s194
        %s196 = smul.addr %s195, 4
        %s197 = scalar_lea.vmem %s3, %s196
        %s198 = smul.u32 2, %s18
      $region32: #{residual_block.5} parent=23 // pred_fallthru
        _
    $region24: #{residual_block.5} parent=5 // pred_fallthru
      _
    %p199 = scmp.le.s32.totalorder 1, %s10
    %p200 = scmp.lt.s32.totalorder %s10, 3
    %p201 = pnand %p199, %p200
    %p202 = pneg %p201
    // Predicated region
    $region33: #{residual_block.5} parent=5 // pred_check
      _
    $region34: #{residual_block.5} parent=5 // pred_check_branch
      %204 = sbr.rel (%p201) target = $region36
    $region35: #{residual_block.5} parent=5 // pred_region
      %s205 = ssub.s32 %s10, 1
      %s206 = smul.u32 2, %s20
      %p207 = scmp.lt.s32.totalorder %s19, 1
      %s208 = scalar_select %p207, %s19, 1
      %p209 = scmp.lt.s32.totalorder %s206, 1
      %s210 = scalar_select %p209, %s206, 1
      %s211 = smul.addr %s208, 2
      %s212 = sadd.s32 %s210, %s211
      %s213 = smul.addr %s212, 4
      %s214 = scalar_lea.vmem %s0, %s213
      %p215 = pneg %p50
      %p216 = pneg %p47
      %p217 = pneg %p71
      %p218 = pneg %p68
      %p219 = pneg %p92
      %p220 = pneg %p89
      %s221 = smul.u32 2, %s20
      %p222 = scmp.lt.s32.totalorder %s19, 1
      %s223 = scalar_select %p222, %s19, 1
      %p224 = scmp.lt.s32.totalorder %s221, 1
      %s225 = scalar_select %p224, %s221, 1
      %s226 = smul.addr %s223, 2
      %s227 = sadd.s32 %s225, %s226
      %s228 = smul.addr %s227, 4
      %s229 = scalar_lea.vmem %s3, %s228
      %p230 = pneg %p120
      %p231 = pneg %p117
      %p232 = pneg %p148
      %p233 = pneg %p145
      %s234 = smul.u32 2, %s20
      %p235 = scmp.lt.s32.totalorder %s19, 1
      %s236 = scalar_select %p235, %s19, 1
      %p237 = scmp.lt.s32.totalorder %s234, 1
      %s238 = scalar_select %p237, %s234, 1
      %s239 = smul.addr %s236, 2
      %s240 = sadd.s32 %s238, %s239
      %s241 = smul.addr %s240, 4
      %s242 = scalar_lea.vmem %s4, %s241
      %s243 = smul.u32 2, %s20
      %p244 = scmp.lt.s32.totalorder %s19, 1
      %s245 = scalar_select %p244, %s19, 1
      %p246 = scmp.lt.s32.totalorder %s243, 1
      %s247 = scalar_select %p246, %s243, 1
      %s248 = smul.addr %s245, 2
      %s249 = sadd.s32 %s247, %s248
      %s250 = smul.addr %s249, 4
      %s251 = scalar_lea.vmem %s0, %s250
      %s252 = smul.u32 2, %s20
      %s253 = smul.u32 2, %s20
      %p254 = scmp.lt.s32.totalorder %s19, 1
      %s255 = scalar_select %p254, %s19, 1
      %p256 = scmp.lt.s32.totalorder %s253, 1
      %s257 = scalar_select %p256, %s253, 1
      %s258 = smul.addr %s255, 2
      %s259 = sadd.s32 %s257, %s258
      %s260 = smul.addr %s259, 4
      %s261 = scalar_lea.vmem %s3, %s260
      %s262 = smul.u32 2, %s20
      %s263 = smul.u32 2, %s20
      %p264 = scmp.lt.s32.totalorder %s19, 1
      %s265 = scalar_select %p264, %s19, 1
      %p266 = scmp.lt.s32.totalorder %s263, 1
      %s267 = scalar_select %p266, %s263, 1
      %s268 = smul.addr %s265, 2
      %s269 = sadd.s32 %s267, %s268
      %s270 = smul.addr %s269, 4
      %s271 = scalar_lea.vmem %s4, %s270
      %s272 = smul.u32 2, %s20
      %v273 = vld [vmem:[%s251] sm:$0xff]
      %v274 = vld [vmem:[%s1] sm:$0xf]
      %276 = vset.pattern.permute.xlu0 0
      %277 = vperm.xlu0 %276, %v274
      %v278 = vpop.permute.xlu0 %277
      %v280 = vunpack.c.l.s4 839922192
      %v281 = vunpack.c.0.s8 %v280
      %v282 = vlaneseq
      %v283 = vshrl.u32 %v282, 7
      %v284 = vsub.s32 %v281, %v283
      %v285 = vrot.slane %v278, %v284
      %v287 = vmul.f32 %v273, %v285
      %v288 = vld [vmem:[%s2] sm:$0xf]
      %290 = vset.pattern.permute.xlu0 0
      %291 = vperm.xlu0 %290, %v288
      %v292 = vpop.permute.xlu0 %291
      %v294 = vunpack.c.l.s4 839922192
      %v295 = vunpack.c.0.s8 %v294
      %v296 = vlaneseq
      %v297 = vshrl.u32 %v296, 7
      %v298 = vsub.s32 %v295, %v297
      %v299 = vrot.slane %v292, %v298
      %v301 = vadd.f32 %v287, %v299
      %vm302 = vcmp.ge.f32.partialorder %v301, 0.0
      %v303 = vmul.f32 %v301, 0.1
      %v304 = vsel %vm302, %v301, %v303
      %v305 = vld [vmem:[%s261] sm:$0xff]
      %v306 = vadd.f32 %v304, %v305
      %307 = vst [vmem:[%s271] sm:$0xff] %v306
      %s308 = smul.u32 2, %s20
      %p309 = scmp.lt.s32.totalorder %s19, 1
      %s310 = scalar_select %p309, %s19, 1
      %p311 = scmp.lt.s32.totalorder %s308, 1
      %s312 = scalar_select %p311, %s308, 1
      %s313 = smul.addr %s310, 2
      %s314 = sadd.s32 %s312, %s313
      %s315 = smul.addr %s314, 4
      %s316 = scalar_lea.vmem %s4, %s315
      // Predicated region
      $region37: #{residual_block.5} parent=35 // pred_check
        %p317 = pneg %p145
      $region38: #{residual_block.5} parent=35 // pred_check_branch
        %319 = sbr.rel (%p317) target = $region40
      $region39: #{residual_block.5} parent=35 // pred_region
        %s320 = smul.u32 2, %s20
      $region40: #{residual_block.5} parent=35 // pred_fallthru
        _
    $region36: #{residual_block.5} parent=5 // pred_fallthru
      _
    %p321 = scmp.le.s32.totalorder 2, %s10
    // Predicated region
    $region41: #{residual_block.5} parent=5 // pred_check
      %p322 = pneg %p321
    $region42: #{residual_block.5} parent=5 // pred_check_branch
      %324 = sbr.rel (%p322) target = $region44
    $region43: #{residual_block.5} parent=5 // pred_region
      %s325 = ssub.s32 %s10, 2
      // Predicated region
      $region45: #{residual_block.5} parent=43 // pred_check
        %p326 = pneg %p151
      $region46: #{residual_block.5} parent=43 // pred_check_branch
        %328 = sbr.rel (%p326) target = $region48
      $region47: #{residual_block.5} parent=43 // pred_region
        %s329 = smul.u32 2, %s22
        %p330 = scmp.lt.s32.totalorder %s21, 1
        %s331 = scalar_select %p330, %s21, 1
        %p332 = scmp.lt.s32.totalorder %s329, 1
        %s333 = scalar_select %p332, %s329, 1
        %s334 = smul.addr %s331, 2
        %s335 = sadd.s32 %s333, %s334
        %s336 = smul.addr %s335, 4
        %s337 = scalar_lea.vmem %s4, %s336
      $region48: #{residual_block.5} parent=43 // pred_fallthru
        _
    $region44: #{residual_block.5} parent=5 // pred_fallthru
      _
  $region6: #{residual_block.5} parent=0 // loop_footer
    %s14 = sadd.s32 1, %s10
  $region7: #{residual_block.5} parent=0 // loop_footer_branch
    %9 = sbr.rel target = $region3
  $region8: #{residual_block.5} parent=0 // loop_exit
    _

// kernel: residual_block.4
$region0: #{residual_block.4}
  #allocation0 [shape = 'u32[]', space=smem, size = 0x4, offset = 0x4, fixed_abs, tag = 'smem constant byte address 0x4 - core index']
  #allocation1 [shape = 'u32[144,128]{1,0:T(1,128)}', space=vmem, size = 0x12000, scoped, tag = 'internal scratch']
  #allocation2 [shape = 'bf16[2,18,18]{2,1,0:T(8,128)(2,1)}', space=vmem, size = 0x3000, scoped, tag = 'scratch operand']
  #allocation3 [shape = 'bf16[18,256]{1,0:T(8,128)(2,1)}', space=vmem, size = 0x3000, scoped, tag = 'scratch operand']
  %s0 = inlined_call_operand.vmem [shape: f32[2,2,16,16], index: 0, kind: input, shape index: {}, may-alias: {0,1,2}]
  %s1 = inlined_call_operand.vmem [shape: f32[2,2,16,16], index: 1, kind: input, shape index: {}, may-alias: {0,1,2}]
  %s2 = inlined_call_operand.vmem [shape: f32[2,2,16,16], index: 2, kind: input, shape index: {}, may-alias: {0,1,2}]
  %s3 = inlined_call_operand.vmem [shape: f32[2,1], index: 3, kind: input, shape index: {}]
  %s4 = inlined_call_operand.vmem [shape: f32[2,1], index: 4, kind: input, shape index: {}]
  %s5 = inlined_call_operand.vmem [shape: bf16[4,18], index: 5, kind: input, shape index: {}]
  %s6 = inlined_call_operand.vmem [shape: f32[2,4,16,16], index: 6, kind: output, shape index: {0}]
  %s7 = inlined_call_operand.vmem [shape: f32[2,1,2,4], index: 7, kind: output, shape index: {1}]
  %8 = xla_tuple %s6, %s7
  %s9 = sld [smem:[#allocation0]]
  $region141: #{residual_block.4} parent=0
    _
  %s11 = ssub.s32 1, %s9
  %s12 = scalar_select 0, %s11, %s9
  $region1: #{residual_block.4} parent=0
    #allocation4 [shape = 'u8[16384]{0}', space=vmem, size = 0x4000, scoped, tag = 'input window, operand 1']
    #allocation5 [shape = 'u8[16384]{0}', space=vmem, size = 0x4000, scoped, tag = 'input window, operand 2']
    loop: start=0, step=1, limit=4
    $region2: #{residual_block.4} parent=1 // loop_pre_header
      _
    $region3: #{residual_block.4} parent=1 // loop_header
      %s14 = sphi 0, %s18
      %p15 = scmp.ge.s32.totalorder %s14, 4
      %s21 = sphi 0, %s33
      %s22 = sphi 0, %s29
      %s23 = sphi 0, %s21
      %s24 = sphi 0, %s22
      %s25 = sphi 0, %s23
      %s26 = sphi 0, %s24
      %s38 = sphi 0, %s40
      %s41 = sphi 0, %s38
      %s42 = sphi 0, %s41
      %s58 = sphi 0, %s42
      %s74 = sphi 0, %s76
      %s77 = sphi 0, %s74
      %s78 = sphi 0, %s77
      %s94 = sphi 0, %s78
      %s110 = sphi 0, %s112
      %s113 = sphi 0, %s110
      %s114 = sphi 0, %s113
      %s130 = sphi 0, %s114
      %s134 = sphi 0, %s134
      %s136 = sphi 0, %s134
      %s137 = sphi 0, %s136
      %s151 = sphi 0, %s137
      %s155 = sphi 0, %s155
      %s157 = sphi 0, %s155
      %s158 = sphi 0, %s157
      %s172 = sphi 0, %s158
      %s176 = sphi 0, %s176
      %s178 = sphi 0, %s176
      %s179 = sphi 0, %s178
      %s193 = sphi 0, %s179
      %s201 = sphi 0, %s203
      %s204 = sphi 0, %s201
      %s205 = sphi 0, %s204
      %s221 = sphi 0, %s205
      %s229 = sphi 0, %s231
      %s232 = sphi 0, %s229
      %s233 = sphi 0, %s232
      %s249 = sphi 0, %s233
    $region4: #{residual_block.4} parent=1 // loop_header_branch
      %17 = sbr.rel (%p15) target = $region8
    $region5: #{residual_block.4} parent=1 // loop_body
      %s19 = ssub.s32 %s14, 1
      %s20 = ssub.s32 %s14, 2
      %s27 = sadd.s32 1, %s22
      %p28 = scmp.ge.s32.totalorder %s27, 1
      %s29 = scalar_select %p28, 0, %s27
      %s30 = sadd.s32 1, %s21
      %s31 = scalar_select %p28, %s30, %s21
      %p32 = scmp.ge.s32.totalorder %s31, 2
      %s33 = scalar_select %p32, 0, %s31
      %s34 = ssub.s32 %s21, %s33
      %s35 = ssub.s32 %s22, %s29
      %s36 = sor.u32 %s34, %s35
      %p37 = scmp.eq.s32.totalorder %s36, 0
      %s39 = sadd.s32 %s38, 1
      %s40 = scalar_select %p37, %s38, %s39
      %p43 = pneg %p37
      %p44 = scmp.eq.s32.totalorder %s14, 1
      %p45 = por %p43, %p44
      %p46 = scmp.ne.s32.totalorder %s38, %s41
      %p47 = scmp.eq.s32.totalorder %s14, 0
      %p48 = por %p46, %p47
      %p49 = scmp.ne.s32.totalorder %s38, %s41
      %p50 = scmp.eq.s32.totalorder %s19, 1
      %p51 = por %p49, %p50
      %p52 = scmp.ne.s32.totalorder %s41, %s42
      %p53 = scmp.eq.s32.totalorder %s19, 0
      %p54 = por %p52, %p53
      %p55 = scmp.ne.s32.totalorder %s41, %s42
      %p56 = scmp.eq.s32.totalorder %s20, 1
      %p57 = por %p55, %p56
      %p59 = scmp.ne.s32.totalorder %s42, %s58
      %p60 = scmp.eq.s32.totalorder %s20, 0
      %p61 = por %p59, %p60
      %s62 = smul.u32 %s22, 2
      %s63 = ssub.s32 %s62, 1
      %p64 = scmp.gt.s32.totalorder %s63, 0
      %s65 = scalar_select %p64, %s63, 0
      %s66 = smul.u32 %s29, 2
      %s67 = ssub.s32 %s66, 1
      %p68 = scmp.gt.s32.totalorder %s67, 0
      %s69 = scalar_select %p68, %s67, 0
      %s70 = ssub.s32 %s21, %s33
      %s71 = ssub.s32 %s65, %s69
      %s72 = sor.u32 %s70, %s71
      %p73 = scmp.eq.s32.totalorder %s72, 0
      %s75 = sadd.s32 %s74, 1
      %s76 = scalar_select %p73, %s74, %s75
      %p79 = pneg %p73
      %p80 = scmp.eq.s32.totalorder %s14, 1
      %p81 = por %p79, %p80
      %p82 = scmp.ne.s32.totalorder %s74, %s77
      %p83 = scmp.eq.s32.totalorder %s14, 0
      %p84 = por %p82, %p83
      %p85 = scmp.ne.s32.totalorder %s74, %s77
      %p86 = scmp.eq.s32.totalorder %s19, 1
      %p87 = por %p85, %p86
      %p88 = scmp.ne.s32.totalorder %s77, %s78
      %p89 = scmp.eq.s32.totalorder %s19, 0
      %p90 = por %p88, %p89
      %p91 = scmp.ne.s32.totalorder %s77, %s78
      %p92 = scmp.eq.s32.totalorder %s20, 1
      %p93 = por %p91, %p92
      %p95 = scmp.ne.s32.totalorder %s78, %s94
      %p96 = scmp.eq.s32.totalorder %s20, 0
      %p97 = por %p95, %p96
      %s98 = sadd.s32 %s22, 1
      %s99 = smul.u32 %s98, 2
      %p100 = scmp.lt.s32.totalorder %s99, 1
      %s101 = scalar_select %p100, %s99, 1
      %s102 = sadd.s32 %s29, 1
      %s103 = smul.u32 %s102, 2
      %p104 = scmp.lt.s32.totalorder %s103, 1
      %s105 = scalar_select %p104, %s103, 1
      %s106 = ssub.s32 %s21, %s33
      %s107 = ssub.s32 %s101, %s105
      %s108 = sor.u32 %s106, %s107
      %p109 = scmp.eq.s32.totalorder %s108, 0
      %s111 = sadd.s32 %s110, 1
      %s112 = scalar_select %p109, %s110, %s111
      %p115 = pneg %p109
      %p116 = scmp.eq.s32.totalorder %s14, 1
      %p117 = por %p115, %p116
      %p118 = scmp.ne.s32.totalorder %s110, %s113
      %p119 = scmp.eq.s32.totalorder %s14, 0
      %p120 = por %p118, %p119
      %p121 = scmp.ne.s32.totalorder %s110, %s113
      %p122 = scmp.eq.s32.totalorder %s19, 1
      %p123 = por %p121, %p122
      %p124 = scmp.ne.s32.totalorder %s113, %s114
      %p125 = scmp.eq.s32.totalorder %s19, 0
      %p126 = por %p124, %p125
      %p127 = scmp.ne.s32.totalorder %s113, %s114
      %p128 = scmp.eq.s32.totalorder %s20, 1
      %p129 = por %p127, %p128
      %p131 = scmp.ne.s32.totalorder %s114, %s130
      %p132 = scmp.eq.s32.totalorder %s20, 0
      %p133 = por %p131, %p132
      %s135 = sadd.s32 %s134, 1
      %p138 = scmp.eq.s32.totalorder %s14, 1
      %p139 = scmp.ne.s32.totalorder %s134, %s136
      %p140 = scmp.eq.s32.totalorder %s14, 0
      %p141 = por %p139, %p140
      %p142 = scmp.ne.s32.totalorder %s134, %s136
      %p143 = scmp.eq.s32.totalorder %s19, 1
      %p144 = por %p142, %p143
      %p145 = scmp.ne.s32.totalorder %s136, %s137
      %p146 = scmp.eq.s32.totalorder %s19, 0
      %p147 = por %p145, %p146
      %p148 = scmp.ne.s32.totalorder %s136, %s137
      %p149 = scmp.eq.s32.totalorder %s20, 1
      %p150 = por %p148, %p149
      %p152 = scmp.ne.s32.totalorder %s137, %s151
      %p153 = scmp.eq.s32.totalorder %s20, 0
      %p154 = por %p152, %p153
      %s156 = sadd.s32 %s155, 1
      %p159 = scmp.eq.s32.totalorder %s14, 1
      %p160 = scmp.ne.s32.totalorder %s155, %s157
      %p161 = scmp.eq.s32.totalorder %s14, 0
      %p162 = por %p160, %p161
      %p163 = scmp.ne.s32.totalorder %s155, %s157
      %p164 = scmp.eq.s32.totalorder %s19, 1
      %p165 = por %p163, %p164
      %p166 = scmp.ne.s32.totalorder %s157, %s158
      %p167 = scmp.eq.s32.totalorder %s19, 0
      %p168 = por %p166, %p167
      %p169 = scmp.ne.s32.totalorder %s157, %s158
      %p170 = scmp.eq.s32.totalorder %s20, 1
      %p171 = por %p169, %p170
      %p173 = scmp.ne.s32.totalorder %s158, %s172
      %p174 = scmp.eq.s32.totalorder %s20, 0
      %p175 = por %p173, %p174
      %s177 = sadd.s32 %s176, 1
      %p180 = scmp.eq.s32.totalorder %s14, 1
      %p181 = scmp.ne.s32.totalorder %s176, %s178
      %p182 = scmp.eq.s32.totalorder %s14, 0
      %p183 = por %p181, %p182
      %p184 = scmp.ne.s32.totalorder %s176, %s178
      %p185 = scmp.eq.s32.totalorder %s19, 1
      %p186 = por %p184, %p185
      %p187 = scmp.ne.s32.totalorder %s178, %s179
      %p188 = scmp.eq.s32.totalorder %s19, 0
      %p189 = por %p187, %p188
      %p190 = scmp.ne.s32.totalorder %s178, %s179
      %p191 = scmp.eq.s32.totalorder %s20, 1
      %p192 = por %p190, %p191
      %p194 = scmp.ne.s32.totalorder %s179, %s193
      %p195 = scmp.eq.s32.totalorder %s20, 0
      %p196 = por %p194, %p195
      %s197 = ssub.s32 %s21, %s33
      %s198 = ssub.s32 %s22, %s29
      %s199 = sor.u32 %s197, %s198
      %p200 = scmp.eq.s32.totalorder %s199, 0
      %s202 = sadd.s32 %s201, 1
      %s203 = scalar_select %p200, %s201, %s202
      %p206 = pneg %p200
      %p207 = scmp.eq.s32.totalorder %s14, 1
      %p208 = por %p206, %p207
      %p209 = scmp.ne.s32.totalorder %s201, %s204
      %p210 = scmp.eq.s32.totalorder %s14, 0
      %p211 = por %p209, %p210
      %p212 = scmp.ne.s32.totalorder %s201, %s204
      %p213 = scmp.eq.s32.totalorder %s19, 1
      %p214 = por %p212, %p213
      %p215 = scmp.ne.s32.totalorder %s204, %s205
      %p216 = scmp.eq.s32.totalorder %s19, 0
      %p217 = por %p215, %p216
      %p218 = scmp.ne.s32.totalorder %s204, %s205
      %p219 = scmp.eq.s32.totalorder %s20, 1
      %p220 = por %p218, %p219
      %p222 = scmp.ne.s32.totalorder %s205, %s221
      %p223 = scmp.eq.s32.totalorder %s20, 0
      %p224 = por %p222, %p223
      %s225 = ssub.s32 %s21, %s33
      %s226 = ssub.s32 %s22, %s29
      %s227 = sor.u32 %s225, %s226
      %p228 = scmp.eq.s32.totalorder %s227, 0
      %s230 = sadd.s32 %s229, 1
      %s231 = scalar_select %p228, %s229, %s230
      %p234 = pneg %p228
      %p235 = scmp.eq.s32.totalorder %s14, 1
      %p236 = por %p234, %p235
      %p237 = scmp.ne.s32.totalorder %s229, %s232
      %p238 = scmp.eq.s32.totalorder %s14, 0
      %p239 = por %p237, %p238
      %p240 = scmp.ne.s32.totalorder %s229, %s232
      %p241 = scmp.eq.s32.totalorder %s19, 1
      %p242 = por %p240, %p241
      %p243 = scmp.ne.s32.totalorder %s232, %s233
      %p244 = scmp.eq.s32.totalorder %s19, 0
      %p245 = por %p243, %p244
      %p246 = scmp.ne.s32.totalorder %s232, %s233
      %p247 = scmp.eq.s32.totalorder %s20, 1
      %p248 = por %p246, %p247
      %p250 = scmp.ne.s32.totalorder %s233, %s249
      %p251 = scmp.eq.s32.totalorder %s20, 0
      %p252 = por %p250, %p251
      %p253 = scmp.le.s32.totalorder 1, %s14
      %p254 = scmp.lt.s32.totalorder %s14, 3
      %p255 = pnand %p253, %p254
      %p256 = pneg %p255
      // Predicated region
      $region9: #{residual_block.4} parent=5 // pred_check
        _
      $region10: #{residual_block.4} parent=5 // pred_check_branch
        %258 = sbr.rel (%p255) target = $region12
      $region11: #{residual_block.4} parent=5 // pred_region
        %s259 = ssub.s32 %s14, 1
        // Predicated region
        $region13: #{residual_block.4} parent=11 // pred_check
          %p260 = pneg %p147
        $region14: #{residual_block.4} parent=11 // pred_check_branch
          %262 = sbr.rel (%p260) target = $region16
        $region15: #{residual_block.4} parent=11 // pred_region
          _
        $region16: #{residual_block.4} parent=11 // pred_fallthru
          _
        // Predicated region
        $region17: #{residual_block.4} parent=11 // pred_check
          %p263 = pneg %p168
        $region18: #{residual_block.4} parent=11 // pred_check_branch
          %265 = sbr.rel (%p263) target = $region20
        $region19: #{residual_block.4} parent=11 // pred_region
          _
        $region20: #{residual_block.4} parent=11 // pred_fallthru
          _
        // Predicated region
        $region21: #{residual_block.4} parent=11 // pred_check
          %p266 = pneg %p189
        $region22: #{residual_block.4} parent=11 // pred_check_branch
          %268 = sbr.rel (%p266) target = $region24
        $region23: #{residual_block.4} parent=11 // pred_region
          _
        $region24: #{residual_block.4} parent=11 // pred_fallthru
          _
      $region12: #{residual_block.4} parent=5 // pred_fallthru
        _
      %p269 = scmp.lt.s32.totalorder %s14, 2
      // Predicated region
      $region25: #{residual_block.4} parent=5 // pred_check
        %p270 = pneg %p269
      $region26: #{residual_block.4} parent=5 // pred_check_branch
        %272 = sbr.rel (%p270) target = $region28
      $region27: #{residual_block.4} parent=5 // pred_region
        // Predicated region
        $region29: #{residual_block.4} parent=27 // pred_check
          %p273 = pneg %p48
        $region30: #{residual_block.4} parent=27 // pred_check_branch
          %275 = sbr.rel (%p273) target = $region32
        $region31: #{residual_block.4} parent=27 // pred_region
          %s276 = smul.u32 2, %s22
          %p277 = scmp.lt.s32.totalorder %s21, 1
          %s278 = scalar_select %p277, %s21, 1
          %p279 = scmp.lt.s32.totalorder %s276, 1
          %s280 = scalar_select %p279, %s276, 1
          %s281 = smul.addr %s278, 4
          %s282 = sadd.s32 %s280, %s281
          %s283 = smul.addr %s282, 8
          %s284 = scalar_lea.vmem %s0, %s283
          %s285 = smul.u32 2, %s22
        $region32: #{residual_block.4} parent=27 // pred_fallthru
          _
        // Predicated region
        $region33: #{residual_block.4} parent=27 // pred_check
          %p286 = pneg %p84
        $region34: #{residual_block.4} parent=27 // pred_check_branch
          %288 = sbr.rel (%p286) target = $region36
        $region35: #{residual_block.4} parent=27 // pred_region
          %s289 = sand.u32 %s74, 1
          %s290 = sand.u32 %s74, 1
          %s291 = smul.addr %s290, 16
          %s292 = scalar_lea.vmem [#allocation4], %s291
          %s293 = smul.u32 %s22, 2
          %s294 = ssub.s32 %s293, 1
          %p295 = scmp.gt.s32.totalorder %s294, 0
          %s296 = scalar_select %p295, %s294, 0
          %s297 = smul.addr %s21, 4
          %s298 = sadd.s32 %s296, %s297
          %s299 = smul.addr %s298, 8
          %s300 = scalar_lea.vmem %s1, %s299
          // Predicated region
          $region37: #{residual_block.4} parent=35 // pred_check
            _
          $region38: #{residual_block.4} parent=35 // pred_check_branch
            %302 = sbr.rel (0) target = $region40
          $region39: #{residual_block.4} parent=35 // pred_region
            // Predicated region
            $region41: #{residual_block.4} parent=39 // pred_check
              _
            $region42: #{residual_block.4} parent=39 // pred_check_branch
              %304 = sbr.rel (0) target = $region44
            $region43: #{residual_block.4} parent=39 // pred_region
              // Predicated region
              $region56: #{residual_block.4} parent=43 // pred_check
                _
              $region57: #{residual_block.4} parent=43 // pred_check_branch
                %321 = sbr.rel (0) target = $region59
              $region58: #{residual_block.4} parent=43 // pred_region
                loop: start=0, step=1, limit=1
                $region60: #{residual_block.4} parent=58 // loop_pre_header
                  _
                $region61: #{residual_block.4} parent=58 // loop_header
                  %s323 = sphi 0, %s327
                  %p324 = scmp.ge.s32.totalorder %s323, 1
                  %s328 = sphi %s300, %s300
                  %s329 = sphi %s292, %s292
                $region62: #{residual_block.4} parent=58 // loop_header_branch
                  %326 = sbr.rel (%p324) target = $region66
                $region63: #{residual_block.4} parent=58 // loop_body
                  %v330 = vld [vmem:[%s328] sm:$0xff]
                  %331 = vst [vmem:[%s329] sm:$0xff] %v330
                  %v332 = vld [vmem:[%s328 + $0x10] sm:$0xff]
                  %333 = vst [vmem:[%s329 + $0x8] sm:$0xff] %v332
                $region64: #{residual_block.4} parent=58 // loop_footer
                  %s327 = sadd.s32 1, %s323
                $region65: #{residual_block.4} parent=58 // loop_footer_branch
                  %322 = sbr.rel target = $region61
                $region66: #{residual_block.4} parent=58 // loop_exit
                  _
              $region59: #{residual_block.4} parent=43 // pred_fallthru
                _
              // Predicated region
              $region67: #{residual_block.4} parent=43 // pred_check
                _
              $region68: #{residual_block.4} parent=43 // pred_check_branch
                %335 = sbr.rel target = $region70
              $region69: #{residual_block.4} parent=43 // pred_region
                _
              $region70: #{residual_block.4} parent=43 // pred_fallthru
                _
            $region44: #{residual_block.4} parent=39 // pred_fallthru
              _
            // Predicated region
            $region45: #{residual_block.4} parent=39 // pred_check
              _
            $region46: #{residual_block.4} parent=39 // pred_check_branch
              %306 = sbr.rel target = $region48
            $region47: #{residual_block.4} parent=39 // pred_region
              loop: start=0, step=1, limit=1
              $region49: #{residual_block.4} parent=47 // loop_pre_header
                _
              $region50: #{residual_block.4} parent=47 // loop_header
                %s309 = sphi 0, %s313
                %p310 = scmp.ge.s32.totalorder %s309, 1
                %s314 = sphi %s300, %s300
                %s315 = sphi %s292, %s292
              $region51: #{residual_block.4} parent=47 // loop_header_branch
                %312 = sbr.rel (%p310) target = $region55
              $region52: #{residual_block.4} parent=47 // loop_body
                %v316 = vld [vmem:[%s314] sm:$0xff]
                %317 = vst [vmem:[%s315] sm:$0xff] %v316
                %v318 = vld [vmem:[%s314 + $0x10] sm:$0xff]
                %319 = vst [vmem:[%s315 + $0x8] sm:$0xff] %v318
              $region53: #{residual_block.4} parent=47 // loop_footer
                %s313 = sadd.s32 1, %s309
              $region54: #{residual_block.4} parent=47 // loop_footer_branch
                %308 = sbr.rel target = $region50
              $region55: #{residual_block.4} parent=47 // loop_exit
                _
            $region48: #{residual_block.4} parent=39 // pred_fallthru
              _
          $region40: #{residual_block.4} parent=35 // pred_fallthru
            _
          %336 = vnop
        $region36: #{residual_block.4} parent=27 // pred_fallthru
          _
        // Predicated region
        $region71: #{residual_block.4} parent=27 // pred_check
          %p337 = pneg %p120
        $region72: #{residual_block.4} parent=27 // pred_check_branch
          %339 = sbr.rel (%p337) target = $region74
        $region73: #{residual_block.4} parent=27 // pred_region
          %s340 = sand.u32 %s110, 1
          %s341 = sand.u32 %s110, 1
          %s342 = smul.addr %s341, 16
          %s343 = scalar_lea.vmem [#allocation5], %s342
          %s344 = sadd.s32 %s22, 1
          %s345 = smul.u32 %s344, 2
          %p346 = scmp.lt.s32.totalorder %s345, 1
          %s347 = scalar_select %p346, %s345, 1
          %s348 = smul.addr %s21, 4
          %s349 = sadd.s32 %s347, %s348
          %s350 = smul.addr %s349, 8
          %s351 = scalar_lea.vmem %s2, %s350
          // Predicated region
          $region75: #{residual_block.4} parent=73 // pred_check
            _
          $region76: #{residual_block.4} parent=73 // pred_check_branch
            %353 = sbr.rel (0) target = $region78
          $region77: #{residual_block.4} parent=73 // pred_region
            // Predicated region
            $region79: #{residual_block.4} parent=77 // pred_check
              _
            $region80: #{residual_block.4} parent=77 // pred_check_branch
              %355 = sbr.rel (0) target = $region82
            $region81: #{residual_block.4} parent=77 // pred_region
              // Predicated region
              $region94: #{residual_block.4} parent=81 // pred_check
                _
              $region95: #{residual_block.4} parent=81 // pred_check_branch
                %372 = sbr.rel (0) target = $region97
              $region96: #{residual_block.4} parent=81 // pred_region
                loop: start=0, step=1, limit=1
                $region98: #{residual_block.4} parent=96 // loop_pre_header
                  _
                $region99: #{residual_block.4} parent=96 // loop_header
                  %s374 = sphi 0, %s378
                  %p375 = scmp.ge.s32.totalorder %s374, 1
                  %s379 = sphi %s351, %s351
                  %s380 = sphi %s343, %s343
                $region100: #{residual_block.4} parent=96 // loop_header_branch
                  %377 = sbr.rel (%p375) target = $region104
                $region101: #{residual_block.4} parent=96 // loop_body
                  %v381 = vld [vmem:[%s379] sm:$0xff]
                  %382 = vst [vmem:[%s380] sm:$0xff] %v381
                  %v383 = vld [vmem:[%s379 + $0x10] sm:$0xff]
                  %384 = vst [vmem:[%s380 + $0x8] sm:$0xff] %v383
                $region102: #{residual_block.4} parent=96 // loop_footer
                  %s378 = sadd.s32 1, %s374
                $region103: #{residual_block.4} parent=96 // loop_footer_branch
                  %373 = sbr.rel target = $region99
                $region104: #{residual_block.4} parent=96 // loop_exit
                  _
              $region97: #{residual_block.4} parent=81 // pred_fallthru
                _
              // Predicated region
              $region105: #{residual_block.4} parent=81 // pred_check
                _
              $region106: #{residual_block.4} parent=81 // pred_check_branch
                %386 = sbr.rel target = $region108
              $region107: #{residual_block.4} parent=81 // pred_region
                _
              $region108: #{residual_block.4} parent=81 // pred_fallthru
                _
            $region82: #{residual_block.4} parent=77 // pred_fallthru
              _
            // Predicated region
            $region83: #{residual_block.4} parent=77 // pred_check
              _
            $region84: #{residual_block.4} parent=77 // pred_check_branch
              %357 = sbr.rel target = $region86
            $region85: #{residual_block.4} parent=77 // pred_region
              loop: start=0, step=1, limit=1
              $region87: #{residual_block.4} parent=85 // loop_pre_header
                _
              $region88: #{residual_block.4} parent=85 // loop_header
                %s360 = sphi 0, %s364
                %p361 = scmp.ge.s32.totalorder %s360, 1
                %s365 = sphi %s351, %s351
                %s366 = sphi %s343, %s343
              $region89: #{residual_block.4} parent=85 // loop_header_branch
                %363 = sbr.rel (%p361) target = $region93
              $region90: #{residual_block.4} parent=85 // loop_body
                %v367 = vld [vmem:[%s365] sm:$0xff]
                %368 = vst [vmem:[%s366] sm:$0xff] %v367
                %v369 = vld [vmem:[%s365 + $0x10] sm:$0xff]
                %370 = vst [vmem:[%s366 + $0x8] sm:$0xff] %v369
              $region91: #{residual_block.4} parent=85 // loop_footer
                %s364 = sadd.s32 1, %s360
              $region92: #{residual_block.4} parent=85 // loop_footer_branch
                %359 = sbr.rel target = $region88
              $region93: #{residual_block.4} parent=85 // loop_exit
                _
            $region86: #{residual_block.4} parent=77 // pred_fallthru
              _
          $region78: #{residual_block.4} parent=73 // pred_fallthru
            _
          %387 = vnop
        $region74: #{residual_block.4} parent=27 // pred_fallthru
          _
      $region28: #{residual_block.4} parent=5 // pred_fallthru
        _
      %p388 = scmp.le.s32.totalorder 1, %s14
      %p389 = scmp.lt.s32.totalorder %s14, 3
      %p390 = pnand %p388, %p389
      %p391 = pneg %p390
      // Predicated region
      $region109: #{residual_block.4} parent=5 // pred_check
        _
      $region110: #{residual_block.4} parent=5 // pred_check_branch
        %393 = sbr.rel (%p390) target = $region112
      $region111: #{residual_block.4} parent=5 // pred_region
        %s394 = ssub.s32 %s14, 1
        %s395 = sand.u32 %s77, 1
        %s396 = sand.u32 %s77, 1
        %s397 = smul.addr %s396, 16
        %s398 = scalar_lea.vmem [#allocation4], %s397
        // Predicated region
        $region113: #{residual_block.4} parent=111 // pred_check
          %p399 = pneg %p90
        $region114: #{residual_block.4} parent=111 // pred_check_branch
          %401 = sbr.rel (%p399) target = $region116
        $region115: #{residual_block.4} parent=111 // pred_region
          _
        $region116: #{residual_block.4} parent=111 // pred_fallthru
          _
        %s402 = sand.u32 %s113, 1
        %s403 = sand.u32 %s113, 1
        %s404 = smul.addr %s403, 16
        %s405 = scalar_lea.vmem [#allocation5], %s404
        // Predicated region
        $region117: #{residual_block.4} parent=111 // pred_check
          %p406 = pneg %p126
        $region118: #{residual_block.4} parent=111 // pred_check_branch
          %408 = sbr.rel (%p406) target = $region120
        $region119: #{residual_block.4} parent=111 // pred_region
          _
        $region120: #{residual_block.4} parent=111 // pred_fallthru
          _
        %s409 = smul.u32 2, %s24
        %p410 = scmp.lt.s32.totalorder %s23, 1
        %s411 = scalar_select %p410, %s23, 1
        %p412 = scmp.lt.s32.totalorder %s409, 1
        %s413 = scalar_select %p412, %s409, 1
        %s414 = smul.addr %s411, 4
        %s415 = sadd.s32 %s413, %s414
        %s416 = smul.addr %s415, 8
        %s417 = scalar_lea.vmem %s0, %s416
        %p418 = pneg %p54
        %p419 = pneg %p51
        %s420 = sand.u32 %s77, 1
        %s421 = sand.u32 %s77, 1
        %s422 = smul.addr %s421, 16
        %s423 = scalar_lea.vmem [#allocation4], %s422
        %p424 = pneg %p90
        %p425 = pneg %p87
        %s426 = sand.u32 %s113, 1
        %s427 = sand.u32 %s113, 1
        %s428 = smul.addr %s427, 16
        %s429 = scalar_lea.vmem [#allocation5], %s428
        %p430 = pneg %p126
        %p431 = pneg %p123
        %p432 = pneg %p147
        %p433 = pneg %p144
        %p434 = pneg %p168
        %p435 = pneg %p165
        %p436 = pneg %p189
        %p437 = pneg %p186
        %p438 = pneg %p217
        %p439 = pneg %p214
        %s440 = smul.u32 2, %s24
        %p441 = scmp.lt.s32.totalorder %s23, 1
        %s442 = scalar_select %p441, %s23, 1
        %p443 = scmp.lt.s32.totalorder %s440, 1
        %s444 = scalar_select %p443, %s440, 1
        %s445 = smul.addr %s442, 8
        %s446 = sadd.s32 %s444, %s445
        %s447 = smul.addr %s446, 8
        %s448 = scalar_lea.vmem %s6, %s447
        %p449 = pneg %p245
        %p450 = pneg %p242
        %p451 = scmp.lt.s32.totalorder %s23, 1
        %s452 = scalar_select %p451, %s23, 1
        %p453 = scmp.lt.s32.totalorder %s24, 0
        %s454 = scalar_select %p453, %s24, 0
        %s455 = sadd.s32 %s454, %s452
        %s456 = smul.addr %s455, 2
        %s457 = scalar_lea.vmem %s7, %s456
        %s458 = smul.u32 2, %s24
        %p459 = scmp.lt.s32.totalorder %s23, 1
        %s460 = scalar_select %p459, %s23, 1
        %p461 = scmp.lt.s32.totalorder %s458, 1
        %s462 = scalar_select %p461, %s458, 1
        %s463 = smul.addr %s460, 4
        %s464 = sadd.s32 %s462, %s463
        %s465 = smul.addr %s464, 8
        %s466 = scalar_lea.vmem %s0, %s465
        %s467 = smul.u32 2, %s24
        %s468 = smul.u32 %s24, 2
        %s469 = ssub.s32 %s468, 1
        %p470 = scmp.gt.s32.totalorder %s469, 0
        %s471 = scalar_select %p470, %s469, 0
        %s472 = sadd.s32 %s24, 1
        %s473 = smul.u32 %s472, 2
        %p474 = scmp.lt.s32.totalorder %s473, 1
        %s475 = scalar_select %p474, %s473, 1
        %s476 = smul.u32 2, %s24
        %p477 = scmp.lt.s32.totalorder %s23, 1
        %s478 = scalar_select %p477, %s23, 1
        %p479 = scmp.lt.s32.totalorder %s476, 1
        %s480 = scalar_select %p479, %s476, 1
        %s481 = smul.addr %s478, 8
        %s482 = sadd.s32 %s480, %s481
        %s483 = smul.addr %s482, 8
        %s484 = scalar_lea.vmem %s6, %s483
        %s485 = smul.u32 2, %s24
        %p486 = scmp.lt.s32.totalorder %s23, 1
        %s487 = scalar_select %p486, %s23, 1
        %p488 = scmp.lt.s32.totalorder %s24, 0
        %s489 = scalar_select %p488, %s24, 0
        %s490 = sadd.s32 %s489, %s487
        %s491 = smul.addr %s490, 2
        %s492 = scalar_lea.vmem %s7, %s491
        %v494 = vld [vmem:[%s3] sm:$0x3]
        %v495 = vld [vmem:[%s4] sm:$0x3]
        %v496 = vld [vmem:[%s466] sm:$0xff]
        %v497 = vld [vmem:[%s466 + $0x8] sm:$0xff]
        %v498 = vld [vmem:[%s466 + $0x10] sm:$0xff]
        %v499 = vld [vmem:[%s466 + $0x18] sm:$0xff]
        %v502 = vunpack.c.l.s4 1966171168
        %v503 = vunpack.c.0.s8 %v502
        %v504 = vlaneseq
        %v505 = vshrl.u32 %v504, 7
        %v506 = vsub.s32 %v503, %v505
        %v507 = vrot.slane %v494, %v506
        %v508 = vcombine.high %v507, %v507
        %v510 = vunpack.c.l.s4 1966171168
        %v511 = vunpack.c.0.s8 %v510
        %v512 = vlaneseq
        %v513 = vshrl.u32 %v512, 7
        %v514 = vsub.s32 %v511, %v513
        %v515 = vrot.slane %v507, %v514
        %v517 = vunpack.c.l.s4 1966171168
        %v518 = vunpack.c.0.s8 %v517
        %v519 = vlaneseq
        %v520 = vshrl.u32 %v519, 7
        %v521 = vsub.s32 %v518, %v520
        %v522 = vrot.slane %v508, %v521
        %v523 = vlaneseq
        %v524 = vshrl.u32 %v523, 7
        %v525 = vsub.s32 0, %v524
        %v526 = vrot.slane %v515, %v525
        %v527 = vlaneseq
        %v528 = vshrl.u32 %v527, 7
        %v529 = vsub.s32 0, %v528
        %v530 = vrot.slane %v522, %v529
        %531 = vset.pattern.permute.xlu0 0
        %532 = vperm.xlu0 %531, %v526
        %v533 = vpop.permute.xlu0 %532
        %535 = vset.pattern.permute.xlu0 0
        %536 = vperm.xlu0 %535, %v530
        %v537 = vpop.permute.xlu0 %536
        %v539 = vmul.f32 %v496, %v533
        %v540 = vmul.f32 %v497, %v533
        %v541 = vmul.f32 %v498, %v537
        %v542 = vmul.f32 %v499, %v537
        %v545 = vunpack.c.l.s4 1966171168
        %v546 = vunpack.c.0.s8 %v545
        %v547 = vlaneseq
        %v548 = vshrl.u32 %v547, 7
        %v549 = vsub.s32 %v546, %v548
        %v550 = vrot.slane %v495, %v549
        %v551 = vcombine.high %v550, %v550
        %v553 = vunpack.c.l.s4 1966171168
        %v554 = vunpack.c.0.s8 %v553
        %v555 = vlaneseq
        %v556 = vshrl.u32 %v555, 7
        %v557 = vsub.s32 %v554, %v556
        %v558 = vrot.slane %v550, %v557
        %v560 = vunpack.c.l.s4 1966171168
        %v561 = vunpack.c.0.s8 %v560
        %v562 = vlaneseq
        %v563 = vshrl.u32 %v562, 7
        %v564 = vsub.s32 %v561, %v563
        %v565 = vrot.slane %v551, %v564
        %v566 = vlaneseq
        %v567 = vshrl.u32 %v566, 7
        %v568 = vsub.s32 0, %v567
        %v569 = vrot.slane %v558, %v568
        %v570 = vlaneseq
        %v571 = vshrl.u32 %v570, 7
        %v572 = vsub.s32 0, %v571
        %v573 = vrot.slane %v565, %v572
        %574 = vset.pattern.permute.xlu0 0
        %575 = vperm.xlu0 %574, %v569
        %v576 = vpop.permute.xlu0 %575
        %578 = vset.pattern.permute.xlu0 0
        %579 = vperm.xlu0 %578, %v573
        %v580 = vpop.permute.xlu0 %579
        %v582 = vadd.f32 %v539, %v576
        %v583 = vadd.f32 %v540, %v576
        %v584 = vadd.f32 %v541, %v580
        %v585 = vadd.f32 %v542, %v580
        %vm586 = vcmp.ge.f32.partialorder %v582, 0.0
        %vm587 = vcmp.ge.f32.partialorder %v583, 0.0
        %vm588 = vcmp.ge.f32.partialorder %v584, 0.0
        %vm589 = vcmp.ge.f32.partialorder %v585, 0.0
        %v590 = vmul.f32 %v582, 0.1
        %v591 = vmul.f32 %v583, 0.1
        %v592 = vmul.f32 %v584, 0.1
        %v593 = vmul.f32 %v585, 0.1
        %v594 = vsel %vm586, %v582, %v590
        %v595 = vsel %vm587, %v583, %v591
        %v596 = vsel %vm588, %v584, %v592
        %v597 = vsel %vm589, %v585, %v593
        %v598 = vpack.c.bf16 %v595, %v594
        %v599 = vpack.c.bf16 %v597, %v596
        %v600 = vld [vmem:[%s398 + $0x7] sm:$0x1]
        %v601 = vld [vmem:[%s398 + $0xf] sm:$0x1]
        %602 = vset.pattern.permute.xlu0 0
        %603 = vperm.xlu0 %602, %v494
        %v604 = vpop.permute.xlu0 %603
        %v605 = vrot.slane %v604, 1
        %v608 = vmul.f32 %v600, %v604
        %v609 = vmul.f32 %v601, %v605
        %610 = vset.pattern.permute.xlu0 0
        %611 = vperm.xlu0 %610, %v495
        %v612 = vpop.permute.xlu0 %611
        %v613 = vrot.slane %v612, 1
        %v616 = vadd.f32 %v608, %v612
        %v617 = vadd.f32 %v609, %v613
        %vm618 = vcmp.ge.f32.partialorder %v616, 0.0
        %vm619 = vcmp.ge.f32.partialorder %v617, 0.0
        %v620 = vmul.f32 %v616, 0.1
        %v621 = vmul.f32 %v617, 0.1
        %v622 = vsel %vm618, %v616, %v620
        %v623 = vsel %vm619, %v617, %v621
        %v624 = vld [vmem:[%s405] sm:$0x1]
        %v625 = vld [vmem:[%s405 + $0x8] sm:$0x1]
        %v626 = vmul.f32 %v624, %v604
        %v627 = vmul.f32 %v625, %v605
        %v628 = vadd.f32 %v626, %v612
        %v629 = vadd.f32 %v627, %v613
        %vm630 = vcmp.ge.f32.partialorder %v628, 0.0
        %vm631 = vcmp.ge.f32.partialorder %v629, 0.0
        %v632 = vmul.f32 %v628, 0.1
        %v633 = vmul.f32 %v629, 0.1
        %v634 = vsel %vm630, %v628, %v632
        %v635 = vsel %vm631, %v629, %v633
        %p636 = scmp.eq.s32.totalorder %s24, 0
        %s637 = scalar_select %p636, 1, 0
        %v638 = vstv %s637
        %vm639 = vcmp.eq.s32.totalorder %v638, 1
        %v640 = vsel %vm639, 0.0, %v622
        %v641 = vsel %vm639, 0.0, %v623
        %v642 = vpack.c.bf16 %v640, %v640
        %v643 = vpack.c.bf16 %v641, %v641
        %v644 = vsel %vm639, 0.0, %v634
        %v645 = vsel %vm639, 0.0, %v635
        %v646 = vpack.c.bf16 %v644, %v644
        %v647 = vpack.c.bf16 %v645, %v645
        %vm648 = vcmask 3072
        %649 = vst.msk [vmem:[#allocation2] sm:$0xf] %vm648, 0
        %650 = vst.msk [vmem:[#allocation2 + $0x4] sm:$0xf] %vm648, 0
        %vm651 = vcmask 0
        %652 = vst.msk [vmem:[#allocation2 + $0x8] sm:$0x1] %vm651, 0
        %653 = vst.msk [vmem:[#allocation2 + $0xc] sm:$0xf] %vm648, 0
        %654 = vst.msk [vmem:[#allocation2 + $0x10] sm:$0xf] %vm648, 0
        %655 = vst.msk [vmem:[#allocation2 + $0x14] sm:$0x1] %vm651, 0
        %vm656 = vcmask 142472
        %657 = vst.msk [vmem:[#allocation2] sm:$0xf] %vm656, 0
        %658 = vst.msk [vmem:[#allocation2 + $0x4] sm:$0xf] %vm656, 0
        %vm659 = vcmask 139400
        %660 = vst.msk [vmem:[#allocation2 + $0x8] sm:$0x1] %vm659, 0
        %661 = vst.msk [vmem:[#allocation2 + $0xc] sm:$0xf] %vm656, 0
        %662 = vst.msk [vmem:[#allocation2 + $0x10] sm:$0xf] %vm656, 0
        %663 = vst.msk [vmem:[#allocation2 + $0x14] sm:$0x1] %vm659, 0
        %v666 = vunpack.c.l.b16 %v642
        %v667 = vunpack.c.l.b16 %v643
        %v668 = vpack.c.b16 %v666, %v666
        %v669 = vpack.c.b16 %v667, %v667
        %670 = vrot.lane.b32.xlu0 %v668, 1
        %v671 = vpop.permute.xlu0 %670
        %672 = vrot.lane.b32.xlu0 %v669, 1
        %v673 = vpop.permute.xlu0 %672
        %vm676 = vcmask 131080
        %vm677 = vsmask.f32 256
        %vm678 = vmand %vm676, %vm677
        %v679 = vld [vmem:[#allocation2] sm:$0x1]
        %v680 = vsel %vm678, %v671, %v679
        %681 = vst [vmem:[#allocation2] sm:$0x1] %v680
        %v682 = vld [vmem:[#allocation2 + $0xc] sm:$0x1]
        %v683 = vsel %vm678, %v673, %v682
        %684 = vst [vmem:[#allocation2 + $0xc] sm:$0x1] %v683
        %v687 = vunpack.c.l.b16 %v646
        %v688 = vunpack.c.l.b16 %v647
        %v689 = vpack.c.b16 %v687, %v687
        %v690 = vpack.c.b16 %v688, %v688
        %v692 = vshll.u32 %v689, 16
        %v695 = vshll.u32 %v690, 16
        %697 = vrot.lane.b32.xlu0 %v692, 1
        %v698 = vpop.permute.xlu0 %697
        %699 = vrot.lane.b32.xlu0 %v695, 1
        %v700 = vpop.permute.xlu0 %699
        %vm703 = vsmask.f32 7938
        %vm704 = vmand %vm676, %vm703
        %v705 = vld [vmem:[#allocation2 + $0x8] sm:$0x1]
        %v706 = vsel %vm704, %v698, %v705
        %707 = vst [vmem:[#allocation2 + $0x8] sm:$0x1] %v706
        %v708 = vld [vmem:[#allocation2 + $0x14] sm:$0x1]
        %v709 = vsel %vm704, %v700, %v708
        %710 = vst [vmem:[#allocation2 + $0x14] sm:$0x1] %v709
        %v713 = vunpack.c.l.b16 %v598
        %v714 = vunpack.c.h.b16 %v598
        %v715 = vunpack.c.l.b16 %v599
        %v716 = vunpack.c.h.b16 %v599
        %v717 = vpack.c.b16 %v713, %v713
        %v718 = vpack.c.b16 %v714, %v714
        %v719 = vpack.c.b16 %v715, %v715
        %v720 = vpack.c.b16 %v716, %v716
        %vm721 = vsmask.f32 4368
        %vm722 = vmor %vm677, %vm721
        %v724 = vshrl.u32 %v717, 16
        %v726 = vrot.slane %v724, 7
        %v727 = vshll.u32 %v717, 16
        %v729 = vor.u32 %v726, %v727
        %v730 = vrot.slane %v726, 4
        %v732 = vshrl.u32 %v718, 16
        %v734 = vrot.slane %v732, 7
        %v735 = vshll.u32 %v718, 16
        %v737 = vor.u32 %v734, %v735
        %v738 = vsel %vm722, %v730, %v737
        %v739 = vrot.slane %v734, 4
        %v741 = vshrl.u32 %v719, 16
        %v743 = vrot.slane %v741, 7
        %v744 = vshll.u32 %v719, 16
        %v746 = vor.u32 %v743, %v744
        %v747 = vrot.slane %v743, 4
        %v749 = vshrl.u32 %v720, 16
        %v751 = vrot.slane %v749, 7
        %v752 = vshll.u32 %v720, 16
        %v754 = vor.u32 %v751, %v752
        %v755 = vsel %vm722, %v747, %v754
        %v756 = vrot.slane %v751, 4
        %757 = vrot.lane.b32.xlu0 %v729, 1
        %v758 = vpop.permute.xlu0 %757
        %759 = vrot.lane.b32.xlu0 %v738, 1
        %v760 = vpop.permute.xlu0 %759
        %761 = vrot.lane.b32.xlu0 %v739, 1
        %v762 = vpop.permute.xlu0 %761
        %763 = vrot.lane.b32.xlu0 %v746, 1
        %v764 = vpop.permute.xlu0 %763
        %765 = vrot.lane.b32.xlu0 %v755, 1
        %v766 = vpop.permute.xlu0 %765
        %767 = vrot.lane.b32.xlu0 %v756, 1
        %v768 = vpop.permute.xlu0 %767
        %vm775 = vcmask 134152
        %vm776 = vmand %vm775, %vm703
        %v777 = vld [vmem:[#allocation2] sm:$0xf]
        %v778 = vsel %vm776, %v758, %v777
        %779 = vst [vmem:[#allocation2] sm:$0xf] %v778
        %vm780 = vcmask 134152
        %781 = vst.msk [vmem:[#allocation2 + $0x4] sm:$0xf] %vm780, %v760
        %v782 = vld [vmem:[#allocation2 + $0x8] sm:$0x1]
        %v783 = vsel %vm678, %v762, %v782
        %784 = vst [vmem:[#allocation2 + $0x8] sm:$0x1] %v783
        %v785 = vld [vmem:[#allocation2 + $0xc] sm:$0xf]
        %v786 = vsel %vm776, %v764, %v785
        %787 = vst [vmem:[#allocation2 + $0xc] sm:$0xf] %v786
        %788 = vst.msk [vmem:[#allocation2 + $0x10] sm:$0xf] %vm780, %v766
        %v789 = vld [vmem:[#allocation2 + $0x14] sm:$0x1]
        %v790 = vsel %vm678, %v768, %v789
        %791 = vst [vmem:[#allocation2 + $0x14] sm:$0x1] %v790
        %v792 = vld [vmem:[#allocation2] sm:$0xf]
        %v793 = vld [vmem:[#allocation2 + $0x4] sm:$0xf]
        %v794 = vld [vmem:[#allocation2 + $0xc] sm:$0xf]
        %v795 = vld [vmem:[#allocation2 + $0x10] sm:$0xf]
        %v798 = vpack.i.b16 %v794, %v792
        %v799 = vshrl.u32 %v792, 16
        %v800 = vshrl.u32 %v794, 16
        %v801 = vpack.i.b16 %v800, %v799
        %v804 = vpack.i.b16 %v795, %v793
        %v805 = vshrl.u32 %v793, 16
        %v806 = vshrl.u32 %v795, 16
        %v807 = vpack.i.b16 %v806, %v805
        %v810 = vunpack.c.l.s4 1983009808
        %v811 = vunpack.c.0.s8 %v810
        %v812 = vlaneseq
        %v813 = vshrl.u32 %v812, 7
        %v814 = vsub.s32 %v811, %v813
        %v815 = vrot.slane %v798, %v814
        %v816 = vcombine.high %v815, 0
        %v818 = vunpack.c.l.s4 1934713408
        %v819 = vunpack.c.0.s8 %v818
        %v820 = vlaneseq
        %v821 = vshrl.u32 %v820, 7
        %v822 = vsub.s32 %v819, %v821
        %v823 = vrot.slane %v815, %v822
        %v825 = vunpack.c.l.s4 1934713408
        %v826 = vunpack.c.0.s8 %v825
        %v827 = vlaneseq
        %v828 = vshrl.u32 %v827, 7
        %v829 = vsub.s32 %v826, %v828
        %v830 = vrot.slane %v816, %v829
        %v831 = vcombine.high %v823, 0
        %v832 = vcombine.high %v830, 0
        %v835 = vunpack.c.l.s4 1983009808
        %v836 = vunpack.c.0.s8 %v835
        %v837 = vlaneseq
        %v838 = vshrl.u32 %v837, 7
        %v839 = vsub.s32 %v836, %v838
        %v840 = vrot.slane %v801, %v839
        %v841 = vcombine.high %v840, 0
        %v843 = vunpack.c.l.s4 1934713408
        %v844 = vunpack.c.0.s8 %v843
        %v845 = vlaneseq
        %v846 = vshrl.u32 %v845, 7
        %v847 = vsub.s32 %v844, %v846
        %v848 = vrot.slane %v840, %v847
        %v850 = vunpack.c.l.s4 1934713408
        %v851 = vunpack.c.0.s8 %v850
        %v852 = vlaneseq
        %v853 = vshrl.u32 %v852, 7
        %v854 = vsub.s32 %v851, %v853
        %v855 = vrot.slane %v841, %v854
        %v856 = vcombine.high %v848, 0
        %v857 = vcombine.high %v855, 0
        %v860 = vunpack.c.l.s4 1983009808
        %v861 = vunpack.c.0.s8 %v860
        %v862 = vlaneseq
        %v863 = vshrl.u32 %v862, 7
        %v864 = vsub.s32 %v861, %v863
        %v865 = vrot.slane %v804, %v864
        %v866 = vcombine.high %v865, 0
        %v868 = vunpack.c.l.s4 1934713408
        %v869 = vunpack.c.0.s8 %v868
        %v870 = vlaneseq
        %v871 = vshrl.u32 %v870, 7
        %v872 = vsub.s32 %v869, %v871
        %v873 = vrot.slane %v865, %v872
        %v875 = vunpack.c.l.s4 1934713408
        %v876 = vunpack.c.0.s8 %v875
        %v877 = vlaneseq
        %v878 = vshrl.u32 %v877, 7
        %v879 = vsub.s32 %v876, %v878
        %v880 = vrot.slane %v866, %v879
        %v881 = vcombine.high %v873, 0
        %v882 = vcombine.high %v880, 0
        %v885 = vunpack.c.l.s4 1983009808
        %v886 = vunpack.c.0.s8 %v885
        %v887 = vlaneseq
        %v888 = vshrl.u32 %v887, 7
        %v889 = vsub.s32 %v886, %v888
        %v890 = vrot.slane %v807, %v889
        %v891 = vcombine.high %v890, 0
        %v893 = vunpack.c.l.s4 1934713408
        %v894 = vunpack.c.0.s8 %v893
        %v895 = vlaneseq
        %v896 = vshrl.u32 %v895, 7
        %v897 = vsub.s32 %v894, %v896
        %v898 = vrot.slane %v890, %v897
        %v900 = vunpack.c.l.s4 1934713408
        %v901 = vunpack.c.0.s8 %v900
        %v902 = vlaneseq
        %v903 = vshrl.u32 %v902, 7
        %v904 = vsub.s32 %v901, %v903
        %v905 = vrot.slane %v891, %v904
        %v906 = vcombine.high %v898, 0
        %v907 = vcombine.high %v905, 0
        %v909 = vunpack.c.l.b16 %v848
        %v910 = vpack.c.b16 %v909, %v909
        %911 = vrot.lane.b32.xlu0 %v910, 16
        %v912 = vpop.permute.xlu0 %911
        %v914 = vunpack.c.l.b16 %v831
        %v915 = vpack.c.b16 %v914, %v914
        %916 = vrot.lane.b32.xlu0 %v915, 32
        %v917 = vpop.permute.xlu0 %916
        %v919 = vunpack.c.l.b16 %v856
        %v920 = vpack.c.b16 %v919, %v919
        %921 = vrot.lane.b32.xlu0 %v920, 48
        %v922 = vpop.permute.xlu0 %921
        %v924 = vunpack.c.l.b16 %v830
        %v925 = vpack.c.b16 %v924, %v924
        %926 = vrot.lane.b32.xlu0 %v925, 64
        %v927 = vpop.permute.xlu0 %926
        %v929 = vunpack.c.l.b16 %v855
        %v930 = vpack.c.b16 %v929, %v929
        %931 = vrot.lane.b32.xlu0 %v930, 80
        %v932 = vpop.permute.xlu0 %931
        %v934 = vunpack.c.l.b16 %v832
        %v935 = vpack.c.b16 %v934, %v934
        %936 = vrot.lane.b32.xlu0 %v935, 96
        %v937 = vpop.permute.xlu0 %936
        %v939 = vunpack.c.l.b16 %v857
        %v940 = vpack.c.b16 %v939, %v939
        %941 = vrot.lane.b32.xlu0 %v940, 112
        %v942 = vpop.permute.xlu0 %941
        %v944 = vunpack.c.l.b16 %v898
        %v945 = vpack.c.b16 %v944, %v944
        %946 = vrot.lane.b32.xlu0 %v945, 16
        %v947 = vpop.permute.xlu0 %946
        %v949 = vunpack.c.l.b16 %v881
        %v950 = vpack.c.b16 %v949, %v949
        %951 = vrot.lane.b32.xlu0 %v950, 32
        %v952 = vpop.permute.xlu0 %951
        %v954 = vunpack.c.l.b16 %v906
        %v955 = vpack.c.b16 %v954, %v954
        %956 = vrot.lane.b32.xlu0 %v955, 48
        %v957 = vpop.permute.xlu0 %956
        %v959 = vunpack.c.l.b16 %v880
        %v960 = vpack.c.b16 %v959, %v959
        %961 = vrot.lane.b32.xlu0 %v960, 64
        %v962 = vpop.permute.xlu0 %961
        %v964 = vunpack.c.l.b16 %v905
        %v965 = vpack.c.b16 %v964, %v964
        %966 = vrot.lane.b32.xlu0 %v965, 80
        %v967 = vpop.permute.xlu0 %966
        %v969 = vunpack.c.l.b16 %v882
        %v970 = vpack.c.b16 %v969, %v969
        %971 = vrot.lane.b32.xlu0 %v970, 96
        %v972 = vpop.permute.xlu0 %971
        %v974 = vunpack.c.l.b16 %v907
        %v975 = vpack.c.b16 %v974, %v974
        %976 = vrot.lane.b32.xlu0 %v975, 112
        %v977 = vpop.permute.xlu0 %976
        %vm978 = vcmask 130048
        %v981 = vsel %vm978, %v823, %v912
        %vm982 = vcmask 261120
        %v984 = vsel %vm982, %v981, %v917
        %vm985 = vcmask 392192
        %v987 = vsel %vm985, %v984, %v922
        %vm988 = vcmask 523264
        %v990 = vsel %vm988, %v987, %v927
        %vm991 = vcmask 654336
        %v993 = vsel %vm991, %v990, %v932
        %vm994 = vcmask 785408
        %v996 = vsel %vm994, %v993, %v937
        %vm997 = vcmask 916480
        %v999 = vsel %vm997, %v996, %v942
        %v1002 = vsel %vm978, %v873, %v947
        %v1004 = vsel %vm982, %v1002, %v952
        %v1006 = vsel %vm985, %v1004, %v957
        %v1008 = vsel %vm988, %v1006, %v962
        %v1010 = vsel %vm991, %v1008, %v967
        %v1012 = vsel %vm994, %v1010, %v972
        %v1014 = vsel %vm997, %v1012, %v977
        %v1017 = vunpack.c.l.b16 %v999
        %v1018 = vunpack.c.l.b16 %v1014
        %v1019 = vpack.c.b16 %v1018, %v1017
        %1021 = vst [vmem:[#allocation3] sm:$0x11] %v1019
        %v1022 = vld [vmem:[#allocation2] sm:$0xf]
        %v1023 = vld [vmem:[#allocation2 + $0x4] sm:$0xf]
        %v1024 = vld [vmem:[#allocation2 + $0xc] sm:$0xf]
        %v1025 = vld [vmem:[#allocation2 + $0x10] sm:$0xf]
        %1030 = vrot.lane.b32.xlu0 %v1022, 127
        %v1031 = vpop.permute.xlu0 %1030
        %1032 = vrot.lane.b32.xlu0 %v1023, 127
        %v1033 = vpop.permute.xlu0 %1032
        %1034 = vrot.lane.b32.xlu0 %v1024, 127
        %v1035 = vpop.permute.xlu0 %1034
        %1036 = vrot.lane.b32.xlu0 %v1025, 127
        %v1037 = vpop.permute.xlu0 %1036
        %v1040 = vpack.i.b16 %v1035, %v1031
        %v1041 = vshrl.u32 %v1031, 16
        %v1042 = vshrl.u32 %v1035, 16
        %v1043 = vpack.i.b16 %v1042, %v1041
        %v1046 = vpack.i.b16 %v1037, %v1033
        %v1047 = vshrl.u32 %v1033, 16
        %v1048 = vshrl.u32 %v1037, 16
        %v1049 = vpack.i.b16 %v1048, %v1047
        %v1052 = vunpack.c.l.s4 1983009808
        %v1053 = vunpack.c.0.s8 %v1052
        %v1054 = vlaneseq
        %v1055 = vshrl.u32 %v1054, 7
        %v1056 = vsub.s32 %v1053, %v1055
        %v1057 = vrot.slane %v1040, %v1056
        %v1058 = vcombine.high %v1057, 0
        %v1060 = vunpack.c.l.s4 1934713408
        %v1061 = vunpack.c.0.s8 %v1060
        %v1062 = vlaneseq
        %v1063 = vshrl.u32 %v1062, 7
        %v1064 = vsub.s32 %v1061, %v1063
        %v1065 = vrot.slane %v1057, %v1064
        %v1067 = vunpack.c.l.s4 1934713408
        %v1068 = vunpack.c.0.s8 %v1067
        %v1069 = vlaneseq
        %v1070 = vshrl.u32 %v1069, 7
        %v1071 = vsub.s32 %v1068, %v1070
        %v1072 = vrot.slane %v1058, %v1071
        %v1073 = vcombine.high %v1065, 0
        %v1074 = vcombine.high %v1072, 0
        %v1077 = vunpack.c.l.s4 1983009808
        %v1078 = vunpack.c.0.s8 %v1077
        %v1079 = vlaneseq
        %v1080 = vshrl.u32 %v1079, 7
        %v1081 = vsub.s32 %v1078, %v1080
        %v1082 = vrot.slane %v1043, %v1081
        %v1083 = vcombine.high %v1082, 0
        %v1085 = vunpack.c.l.s4 1934713408
        %v1086 = vunpack.c.0.s8 %v1085
        %v1087 = vlaneseq
        %v1088 = vshrl.u32 %v1087, 7
        %v1089 = vsub.s32 %v1086, %v1088
        %v1090 = vrot.slane %v1082, %v1089
        %v1092 = vunpack.c.l.s4 1934713408
        %v1093 = vunpack.c.0.s8 %v1092
        %v1094 = vlaneseq
        %v1095 = vshrl.u32 %v1094, 7
        %v1096 = vsub.s32 %v1093, %v1095
        %v1097 = vrot.slane %v1083, %v1096
        %v1098 = vcombine.high %v1090, 0
        %v1099 = vcombine.high %v1097, 0
        %v1102 = vunpack.c.l.s4 1983009808
        %v1103 = vunpack.c.0.s8 %v1102
        %v1104 = vlaneseq
        %v1105 = vshrl.u32 %v1104, 7
        %v1106 = vsub.s32 %v1103, %v1105
        %v1107 = vrot.slane %v1046, %v1106
        %v1108 = vcombine.high %v1107, 0
        %v1110 = vunpack.c.l.s4 1934713408
        %v1111 = vunpack.c.0.s8 %v1110
        %v1112 = vlaneseq
        %v1113 = vshrl.u32 %v1112, 7
        %v1114 = vsub.s32 %v1111, %v1113
        %v1115 = vrot.slane %v1107, %v1114
        %v1117 = vunpack.c.l.s4 1934713408
        %v1118 = vunpack.c.0.s8 %v1117
        %v1119 = vlaneseq
        %v1120 = vshrl.u32 %v1119, 7
        %v1121 = vsub.s32 %v1118, %v1120
        %v1122 = vrot.slane %v1108, %v1121
        %v1123 = vcombine.high %v1115, 0
        %v1124 = vcombine.high %v1122, 0
        %v1127 = vunpack.c.l.s4 1983009808
        %v1128 = vunpack.c.0.s8 %v1127
        %v1129 = vlaneseq
        %v1130 = vshrl.u32 %v1129, 7
        %v1131 = vsub.s32 %v1128, %v1130
        %v1132 = vrot.slane %v1049, %v1131
        %v1133 = vcombine.high %v1132, 0
        %v1135 = vunpack.c.l.s4 1934713408
        %v1136 = vunpack.c.0.s8 %v1135
        %v1137 = vlaneseq
        %v1138 = vshrl.u32 %v1137, 7
        %v1139 = vsub.s32 %v1136, %v1138
        %v1140 = vrot.slane %v1132, %v1139
        %v1142 = vunpack.c.l.s4 1934713408
        %v1143 = vunpack.c.0.s8 %v1142
        %v1144 = vlaneseq
        %v1145 = vshrl.u32 %v1144, 7
        %v1146 = vsub.s32 %v1143, %v1145
        %v1147 = vrot.slane %v1133, %v1146
        %v1148 = vcombine.high %v1140, 0
        %v1149 = vcombine.high %v1147, 0
        %v1151 = vunpack.c.l.b16 %v1090
        %v1152 = vpack.c.b16 %v1151, %v1151
        %1153 = vrot.lane.b32.xlu0 %v1152, 16
        %v1154 = vpop.permute.xlu0 %1153
        %v1156 = vunpack.c.l.b16 %v1073
        %v1157 = vpack.c.b16 %v1156, %v1156
        %1158 = vrot.lane.b32.xlu0 %v1157, 32
        %v1159 = vpop.permute.xlu0 %1158
        %v1161 = vunpack.c.l.b16 %v1098
        %v1162 = vpack.c.b16 %v1161, %v1161
        %1163 = vrot.lane.b32.xlu0 %v1162, 48
        %v1164 = vpop.permute.xlu0 %1163
        %v1166 = vunpack.c.l.b16 %v1072
        %v1167 = vpack.c.b16 %v1166, %v1166
        %1168 = vrot.lane.b32.xlu0 %v1167, 64
        %v1169 = vpop.permute.xlu0 %1168
        %v1171 = vunpack.c.l.b16 %v1097
        %v1172 = vpack.c.b16 %v1171, %v1171
        %1173 = vrot.lane.b32.xlu0 %v1172, 80
        %v1174 = vpop.permute.xlu0 %1173
        %v1176 = vunpack.c.l.b16 %v1074
        %v1177 = vpack.c.b16 %v1176, %v1176
        %1178 = vrot.lane.b32.xlu0 %v1177, 96
        %v1179 = vpop.permute.xlu0 %1178
        %v1181 = vunpack.c.l.b16 %v1099
        %v1182 = vpack.c.b16 %v1181, %v1181
        %1183 = vrot.lane.b32.xlu0 %v1182, 112
        %v1184 = vpop.permute.xlu0 %1183
        %v1186 = vunpack.c.l.b16 %v1140
        %v1187 = vpack.c.b16 %v1186, %v1186
        %1188 = vrot.lane.b32.xlu0 %v1187, 16
        %v1189 = vpop.permute.xlu0 %1188
        %v1191 = vunpack.c.l.b16 %v1123
        %v1192 = vpack.c.b16 %v1191, %v1191
        %1193 = vrot.lane.b32.xlu0 %v1192, 32
        %v1194 = vpop.permute.xlu0 %1193
        %v1196 = vunpack.c.l.b16 %v1148
        %v1197 = vpack.c.b16 %v1196, %v1196
        %1198 = vrot.lane.b32.xlu0 %v1197, 48
        %v1199 = vpop.permute.xlu0 %1198
        %v1201 = vunpack.c.l.b16 %v1122
        %v1202 = vpack.c.b16 %v1201, %v1201
        %1203 = vrot.lane.b32.xlu0 %v1202, 64
        %v1204 = vpop.permute.xlu0 %1203
        %v1206 = vunpack.c.l.b16 %v1147
        %v1207 = vpack.c.b16 %v1206, %v1206
        %1208 = vrot.lane.b32.xlu0 %v1207, 80
        %v1209 = vpop.permute.xlu0 %1208
        %v1211 = vunpack.c.l.b16 %v1124
        %v1212 = vpack.c.b16 %v1211, %v1211
        %1213 = vrot.lane.b32.xlu0 %v1212, 96
        %v1214 = vpop.permute.xlu0 %1213
        %v1216 = vunpack.c.l.b16 %v1149
        %v1217 = vpack.c.b16 %v1216, %v1216
        %1218 = vrot.lane.b32.xlu0 %v1217, 112
        %v1219 = vpop.permute.xlu0 %1218
        %v1222 = vsel %vm978, %v1065, %v1154
        %v1224 = vsel %vm982, %v1222, %v1159
        %v1226 = vsel %vm985, %v1224, %v1164
        %v1228 = vsel %vm988, %v1226, %v1169
        %v1230 = vsel %vm991, %v1228, %v1174
        %v1232 = vsel %vm994, %v1230, %v1179
        %v1234 = vsel %vm997, %v1232, %v1184
        %v1237 = vsel %vm978, %v1115, %v1189
        %v1239 = vsel %vm982, %v1237, %v1194
        %v1241 = vsel %vm985, %v1239, %v1199
        %v1243 = vsel %vm988, %v1241, %v1204
        %v1245 = vsel %vm991, %v1243, %v1209
        %v1247 = vsel %vm994, %v1245, %v1214
        %v1249 = vsel %vm997, %v1247, %v1219
        %v1252 = vunpack.c.l.b16 %v1234
        %v1253 = vunpack.c.l.b16 %v1249
        %v1254 = vpack.c.b16 %v1253, %v1252
        %v1255 = vrot.slane %v1254, 7
        %1257 = vst [vmem:[#allocation3] sm:$0x22] %v1255
        %v1258 = vld [vmem:[#allocation2] sm:$0xf]
        %v1259 = vld [vmem:[#allocation2 + $0x4] sm:$0xf]
        %v1260 = vld [vmem:[#allocation2 + $0xc] sm:$0xf]
        %v1261 = vld [vmem:[#allocation2 + $0x10] sm:$0xf]
        %1266 = vrot.lane.b32.xlu0 %v1258, 126
        %v1267 = vpop.permute.xlu0 %1266
        %1268 = vrot.lane.b32.xlu0 %v1259, 126
        %v1269 = vpop.permute.xlu0 %1268
        %1270 = vrot.lane.b32.xlu0 %v1260, 126
        %v1271 = vpop.permute.xlu0 %1270
        %1272 = vrot.lane.b32.xlu0 %v1261, 126
        %v1273 = vpop.permute.xlu0 %1272
        %v1276 = vpack.i.b16 %v1271, %v1267
        %v1277 = vshrl.u32 %v1267, 16
        %v1278 = vshrl.u32 %v1271, 16
        %v1279 = vpack.i.b16 %v1278, %v1277
        %v1282 = vpack.i.b16 %v1273, %v1269
        %v1283 = vshrl.u32 %v1269, 16
        %v1284 = vshrl.u32 %v1273, 16
        %v1285 = vpack.i.b16 %v1284, %v1283
        %v1288 = vunpack.c.l.s4 1983009808
        %v1289 = vunpack.c.0.s8 %v1288
        %v1290 = vlaneseq
        %v1291 = vshrl.u32 %v1290, 7
        %v1292 = vsub.s32 %v1289, %v1291
        %v1293 = vrot.slane %v1276, %v1292
        %v1294 = vcombine.high %v1293, 0
        %v1296 = vunpack.c.l.s4 1934713408
        %v1297 = vunpack.c.0.s8 %v1296
        %v1298 = vlaneseq
        %v1299 = vshrl.u32 %v1298, 7
        %v1300 = vsub.s32 %v1297, %v1299
        %v1301 = vrot.slane %v1293, %v1300
        %v1303 = vunpack.c.l.s4 1934713408
        %v1304 = vunpack.c.0.s8 %v1303
        %v1305 = vlaneseq
        %v1306 = vshrl.u32 %v1305, 7
        %v1307 = vsub.s32 %v1304, %v1306
        %v1308 = vrot.slane %v1294, %v1307
        %v1309 = vcombine.high %v1301, 0
        %v1310 = vcombine.high %v1308, 0
        %v1313 = vunpack.c.l.s4 1983009808
        %v1314 = vunpack.c.0.s8 %v1313
        %v1315 = vlaneseq
        %v1316 = vshrl.u32 %v1315, 7
        %v1317 = vsub.s32 %v1314, %v1316
        %v1318 = vrot.slane %v1279, %v1317
        %v1319 = vcombine.high %v1318, 0
        %v1321 = vunpack.c.l.s4 1934713408
        %v1322 = vunpack.c.0.s8 %v1321
        %v1323 = vlaneseq
        %v1324 = vshrl.u32 %v1323, 7
        %v1325 = vsub.s32 %v1322, %v1324
        %v1326 = vrot.slane %v1318, %v1325
        %v1328 = vunpack.c.l.s4 1934713408
        %v1329 = vunpack.c.0.s8 %v1328
        %v1330 = vlaneseq
        %v1331 = vshrl.u32 %v1330, 7
        %v1332 = vsub.s32 %v1329, %v1331
        %v1333 = vrot.slane %v1319, %v1332
        %v1334 = vcombine.high %v1326, 0
        %v1335 = vcombine.high %v1333, 0
        %v1338 = vunpack.c.l.s4 1983009808
        %v1339 = vunpack.c.0.s8 %v1338
        %v1340 = vlaneseq
        %v1341 = vshrl.u32 %v1340, 7
        %v1342 = vsub.s32 %v1339, %v1341
        %v1343 = vrot.slane %v1282, %v1342
        %v1344 = vcombine.high %v1343, 0
        %v1346 = vunpack.c.l.s4 1934713408
        %v1347 = vunpack.c.0.s8 %v1346
        %v1348 = vlaneseq
        %v1349 = vshrl.u32 %v1348, 7
        %v1350 = vsub.s32 %v1347, %v1349
        %v1351 = vrot.slane %v1343, %v1350
        %v1353 = vunpack.c.l.s4 1934713408
        %v1354 = vunpack.c.0.s8 %v1353
        %v1355 = vlaneseq
        %v1356 = vshrl.u32 %v1355, 7
        %v1357 = vsub.s32 %v1354, %v1356
        %v1358 = vrot.slane %v1344, %v1357
        %v1359 = vcombine.high %v1351, 0
        %v1360 = vcombine.high %v1358, 0
        %v1363 = vunpack.c.l.s4 1983009808
        %v1364 = vunpack.c.0.s8 %v1363
        %v1365 = vlaneseq
        %v1366 = vshrl.u32 %v1365, 7
        %v1367 = vsub.s32 %v1364, %v1366
        %v1368 = vrot.slane %v1285, %v1367
        %v1369 = vcombine.high %v1368, 0
        %v1371 = vunpack.c.l.s4 1934713408
        %v1372 = vunpack.c.0.s8 %v1371
        %v1373 = vlaneseq
        %v1374 = vshrl.u32 %v1373, 7
        %v1375 = vsub.s32 %v1372, %v1374
        %v1376 = vrot.slane %v1368, %v1375
        %v1378 = vunpack.c.l.s4 1934713408
        %v1379 = vunpack.c.0.s8 %v1378
        %v1380 = vlaneseq
        %v1381 = vshrl.u32 %v1380, 7
        %v1382 = vsub.s32 %v1379, %v1381
        %v1383 = vrot.slane %v1369, %v1382
        %v1384 = vcombine.high %v1376, 0
        %v1385 = vcombine.high %v1383, 0
        %v1387 = vunpack.c.l.b16 %v1326
        %v1388 = vpack.c.b16 %v1387, %v1387
        %1389 = vrot.lane.b32.xlu0 %v1388, 16
        %v1390 = vpop.permute.xlu0 %1389
        %v1392 = vunpack.c.l.b16 %v1309
        %v1393 = vpack.c.b16 %v1392, %v1392
        %1394 = vrot.lane.b32.xlu0 %v1393, 32
        %v1395 = vpop.permute.xlu0 %1394
        %v1397 = vunpack.c.l.b16 %v1334
        %v1398 = vpack.c.b16 %v1397, %v1397
        %1399 = vrot.lane.b32.xlu0 %v1398, 48
        %v1400 = vpop.permute.xlu0 %1399
        %v1402 = vunpack.c.l.b16 %v1308
        %v1403 = vpack.c.b16 %v1402, %v1402
        %1404 = vrot.lane.b32.xlu0 %v1403, 64
        %v1405 = vpop.permute.xlu0 %1404
        %v1407 = vunpack.c.l.b16 %v1333
        %v1408 = vpack.c.b16 %v1407, %v1407
        %1409 = vrot.lane.b32.xlu0 %v1408, 80
        %v1410 = vpop.permute.xlu0 %1409
        %v1412 = vunpack.c.l.b16 %v1310
        %v1413 = vpack.c.b16 %v1412, %v1412
        %1414 = vrot.lane.b32.xlu0 %v1413, 96
        %v1415 = vpop.permute.xlu0 %1414
        %v1417 = vunpack.c.l.b16 %v1335
        %v1418 = vpack.c.b16 %v1417, %v1417
        %1419 = vrot.lane.b32.xlu0 %v1418, 112
        %v1420 = vpop.permute.xlu0 %1419
        %v1422 = vunpack.c.l.b16 %v1376
        %v1423 = vpack.c.b16 %v1422, %v1422
        %1424 = vrot.lane.b32.xlu0 %v1423, 16
        %v1425 = vpop.permute.xlu0 %1424
        %v1427 = vunpack.c.l.b16 %v1359
        %v1428 = vpack.c.b16 %v1427, %v1427
        %1429 = vrot.lane.b32.xlu0 %v1428, 32
        %v1430 = vpop.permute.xlu0 %1429
        %v1432 = vunpack.c.l.b16 %v1384
        %v1433 = vpack.c.b16 %v1432, %v1432
        %1434 = vrot.lane.b32.xlu0 %v1433, 48
        %v1435 = vpop.permute.xlu0 %1434
        %v1437 = vunpack.c.l.b16 %v1358
        %v1438 = vpack.c.b16 %v1437, %v1437
        %1439 = vrot.lane.b32.xlu0 %v1438, 64
        %v1440 = vpop.permute.xlu0 %1439
        %v1442 = vunpack.c.l.b16 %v1383
        %v1443 = vpack.c.b16 %v1442, %v1442
        %1444 = vrot.lane.b32.xlu0 %v1443, 80
        %v1445 = vpop.permute.xlu0 %1444
        %v1447 = vunpack.c.l.b16 %v1360
        %v1448 = vpack.c.b16 %v1447, %v1447
        %1449 = vrot.lane.b32.xlu0 %v1448, 96
        %v1450 = vpop.permute.xlu0 %1449
        %v1452 = vunpack.c.l.b16 %v1385
        %v1453 = vpack.c.b16 %v1452, %v1452
        %1454 = vrot.lane.b32.xlu0 %v1453, 112
        %v1455 = vpop.permute.xlu0 %1454
        %v1458 = vsel %vm978, %v1301, %v1390
        %v1460 = vsel %vm982, %v1458, %v1395
        %v1462 = vsel %vm985, %v1460, %v1400
        %v1464 = vsel %vm988, %v1462, %v1405
        %v1466 = vsel %vm991, %v1464, %v1410
        %v1468 = vsel %vm994, %v1466, %v1415
        %v1470 = vsel %vm997, %v1468, %v1420
        %v1473 = vsel %vm978, %v1351, %v1425
        %v1475 = vsel %vm982, %v1473, %v1430
        %v1477 = vsel %vm985, %v1475, %v1435
        %v1479 = vsel %vm988, %v1477, %v1440
        %v1481 = vsel %vm991, %v1479, %v1445
        %v1483 = vsel %vm994, %v1481, %v1450
        %v1485 = vsel %vm997, %v1483, %v1455
        %v1488 = vunpack.c.l.b16 %v1470
        %v1489 = vunpack.c.l.b16 %v1485
        %v1490 = vpack.c.b16 %v1489, %v1488
        %v1491 = vrot.slane %v1490, 6
        %1493 = vst [vmem:[#allocation3] sm:$0x44] %v1491
        %v1494 = vld [vmem:[#allocation2] sm:$0xf]
        %v1495 = vld [vmem:[#allocation2 + $0x4] sm:$0xf]
        %v1496 = vld [vmem:[#allocation2 + $0x8] sm:$0x1]
        %v1497 = vld [vmem:[#allocation2 + $0xc] sm:$0xf]
        %v1498 = vld [vmem:[#allocation2 + $0x10] sm:$0xf]
        %v1499 = vld [vmem:[#allocation2 + $0x14] sm:$0x1]
        %vm1500 = vsmask.f32 3328
        %vm1501 = vsmask.f32 7440
        %vm1502 = vmor %vm1500, %vm1501
        %v1504 = vshrl.u32 %v1494, 16
        %v1506 = vrot.slane %v1504, 4
        %v1507 = vshll.u32 %v1494, 16
        %v1509 = vrot.slane %v1507, 5
        %v1510 = vor.u32 %v1506, %v1509
        %v1511 = vrot.slane %v1510, 4
        %v1513 = vshll.u32 %v1495, 16
        %v1515 = vrot.slane %v1513, 5
        %v1516 = vsel %vm1502, %v1511, %v1515
        %v1517 = vshrl.u32 %v1495, 16
        %v1519 = vrot.slane %v1517, 4
        %v1520 = vor.u32 %v1519, %v1515
        %v1521 = vrot.slane %v1520, 4
        %v1523 = vshll.u32 %v1496, 16
        %v1525 = vrot.slane %v1523, 5
        %v1526 = vsel %vm1502, %v1521, %v1525
        %v1528 = vshrl.u32 %v1497, 16
        %v1530 = vrot.slane %v1528, 4
        %v1531 = vshll.u32 %v1497, 16
        %v1533 = vrot.slane %v1531, 5
        %v1534 = vor.u32 %v1530, %v1533
        %v1535 = vrot.slane %v1534, 4
        %v1537 = vshll.u32 %v1498, 16
        %v1539 = vrot.slane %v1537, 5
        %v1540 = vsel %vm1502, %v1535, %v1539
        %v1541 = vshrl.u32 %v1498, 16
        %v1543 = vrot.slane %v1541, 4
        %v1544 = vor.u32 %v1543, %v1539
        %v1545 = vrot.slane %v1544, 4
        %v1547 = vshll.u32 %v1499, 16
        %v1549 = vrot.slane %v1547, 5
        %v1550 = vsel %vm1502, %v1545, %v1549
        %v1553 = vpack.i.b16 %v1540, %v1516
        %v1554 = vshrl.u32 %v1516, 16
        %v1555 = vshrl.u32 %v1540, 16
        %v1556 = vpack.i.b16 %v1555, %v1554
        %v1559 = vpack.i.b16 %v1550, %v1526
        %v1560 = vshrl.u32 %v1526, 16
        %v1561 = vshrl.u32 %v1550, 16
        %v1562 = vpack.i.b16 %v1561, %v1560
        %v1565 = vunpack.c.l.s4 1983009808
        %v1566 = vunpack.c.0.s8 %v1565
        %v1567 = vlaneseq
        %v1568 = vshrl.u32 %v1567, 7
        %v1569 = vsub.s32 %v1566, %v1568
        %v1570 = vrot.slane %v1553, %v1569
        %v1571 = vcombine.high %v1570, 0
        %v1573 = vunpack.c.l.s4 1934713408
        %v1574 = vunpack.c.0.s8 %v1573
        %v1575 = vlaneseq
        %v1576 = vshrl.u32 %v1575, 7
        %v1577 = vsub.s32 %v1574, %v1576
        %v1578 = vrot.slane %v1570, %v1577
        %v1580 = vunpack.c.l.s4 1934713408
        %v1581 = vunpack.c.0.s8 %v1580
        %v1582 = vlaneseq
        %v1583 = vshrl.u32 %v1582, 7
        %v1584 = vsub.s32 %v1581, %v1583
        %v1585 = vrot.slane %v1571, %v1584
        %v1586 = vcombine.high %v1578, 0
        %v1587 = vcombine.high %v1585, 0
        %v1590 = vunpack.c.l.s4 1983009808
        %v1591 = vunpack.c.0.s8 %v1590
        %v1592 = vlaneseq
        %v1593 = vshrl.u32 %v1592, 7
        %v1594 = vsub.s32 %v1591, %v1593
        %v1595 = vrot.slane %v1556, %v1594
        %v1596 = vcombine.high %v1595, 0
        %v1598 = vunpack.c.l.s4 1934713408
        %v1599 = vunpack.c.0.s8 %v1598
        %v1600 = vlaneseq
        %v1601 = vshrl.u32 %v1600, 7
        %v1602 = vsub.s32 %v1599, %v1601
        %v1603 = vrot.slane %v1595, %v1602
        %v1605 = vunpack.c.l.s4 1934713408
        %v1606 = vunpack.c.0.s8 %v1605
        %v1607 = vlaneseq
        %v1608 = vshrl.u32 %v1607, 7
        %v1609 = vsub.s32 %v1606, %v1608
        %v1610 = vrot.slane %v1596, %v1609
        %v1611 = vcombine.high %v1603, 0
        %v1612 = vcombine.high %v1610, 0
        %v1615 = vunpack.c.l.s4 1983009808
        %v1616 = vunpack.c.0.s8 %v1615
        %v1617 = vlaneseq
        %v1618 = vshrl.u32 %v1617, 7
        %v1619 = vsub.s32 %v1616, %v1618
        %v1620 = vrot.slane %v1559, %v1619
        %v1621 = vcombine.high %v1620, 0
        %v1623 = vunpack.c.l.s4 1934713408
        %v1624 = vunpack.c.0.s8 %v1623
        %v1625 = vlaneseq
        %v1626 = vshrl.u32 %v1625, 7
        %v1627 = vsub.s32 %v1624, %v1626
        %v1628 = vrot.slane %v1620, %v1627
        %v1630 = vunpack.c.l.s4 1934713408
        %v1631 = vunpack.c.0.s8 %v1630
        %v1632 = vlaneseq
        %v1633 = vshrl.u32 %v1632, 7
        %v1634 = vsub.s32 %v1631, %v1633
        %v1635 = vrot.slane %v1621, %v1634
        %v1636 = vcombine.high %v1628, 0
        %v1637 = vcombine.high %v1635, 0
        %v1640 = vunpack.c.l.s4 1983009808
        %v1641 = vunpack.c.0.s8 %v1640
        %v1642 = vlaneseq
        %v1643 = vshrl.u32 %v1642, 7
        %v1644 = vsub.s32 %v1641, %v1643
        %v1645 = vrot.slane %v1562, %v1644
        %v1646 = vcombine.high %v1645, 0
        %v1648 = vunpack.c.l.s4 1934713408
        %v1649 = vunpack.c.0.s8 %v1648
        %v1650 = vlaneseq
        %v1651 = vshrl.u32 %v1650, 7
        %v1652 = vsub.s32 %v1649, %v1651
        %v1653 = vrot.slane %v1645, %v1652
        %v1655 = vunpack.c.l.s4 1934713408
        %v1656 = vunpack.c.0.s8 %v1655
        %v1657 = vlaneseq
        %v1658 = vshrl.u32 %v1657, 7
        %v1659 = vsub.s32 %v1656, %v1658
        %v1660 = vrot.slane %v1646, %v1659
        %v1661 = vcombine.high %v1653, 0
        %v1662 = vcombine.high %v1660, 0
        %v1664 = vunpack.c.l.b16 %v1603
        %v1665 = vpack.c.b16 %v1664, %v1664
        %1666 = vrot.lane.b32.xlu0 %v1665, 16
        %v1667 = vpop.permute.xlu0 %1666
        %v1669 = vunpack.c.l.b16 %v1586
        %v1670 = vpack.c.b16 %v1669, %v1669
        %1671 = vrot.lane.b32.xlu0 %v1670, 32
        %v1672 = vpop.permute.xlu0 %1671
        %v1674 = vunpack.c.l.b16 %v1611
        %v1675 = vpack.c.b16 %v1674, %v1674
        %1676 = vrot.lane.b32.xlu0 %v1675, 48
        %v1677 = vpop.permute.xlu0 %1676
        %v1679 = vunpack.c.l.b16 %v1585
        %v1680 = vpack.c.b16 %v1679, %v1679
        %1681 = vrot.lane.b32.xlu0 %v1680, 64
        %v1682 = vpop.permute.xlu0 %1681
        %v1684 = vunpack.c.l.b16 %v1610
        %v1685 = vpack.c.b16 %v1684, %v1684
        %1686 = vrot.lane.b32.xlu0 %v1685, 80
        %v1687 = vpop.permute.xlu0 %1686
        %v1689 = vunpack.c.l.b16 %v1587
        %v1690 = vpack.c.b16 %v1689, %v1689
        %1691 = vrot.lane.b32.xlu0 %v1690, 96
        %v1692 = vpop.permute.xlu0 %1691
        %v1694 = vunpack.c.l.b16 %v1612
        %v1695 = vpack.c.b16 %v1694, %v1694
        %1696 = vrot.lane.b32.xlu0 %v1695, 112
        %v1697 = vpop.permute.xlu0 %1696
        %v1699 = vunpack.c.l.b16 %v1653
        %v1700 = vpack.c.b16 %v1699, %v1699
        %1701 = vrot.lane.b32.xlu0 %v1700, 16
        %v1702 = vpop.permute.xlu0 %1701
        %v1704 = vunpack.c.l.b16 %v1636
        %v1705 = vpack.c.b16 %v1704, %v1704
        %1706 = vrot.lane.b32.xlu0 %v1705, 32
        %v1707 = vpop.permute.xlu0 %1706
        %v1709 = vunpack.c.l.b16 %v1661
        %v1710 = vpack.c.b16 %v1709, %v1709
        %1711 = vrot.lane.b32.xlu0 %v1710, 48
        %v1712 = vpop.permute.xlu0 %1711
        %v1714 = vunpack.c.l.b16 %v1635
        %v1715 = vpack.c.b16 %v1714, %v1714
        %1716 = vrot.lane.b32.xlu0 %v1715, 64
        %v1717 = vpop.permute.xlu0 %1716
        %v1719 = vunpack.c.l.b16 %v1660
        %v1720 = vpack.c.b16 %v1719, %v1719
        %1721 = vrot.lane.b32.xlu0 %v1720, 80
        %v1722 = vpop.permute.xlu0 %1721
        %v1724 = vunpack.c.l.b16 %v1637
        %v1725 = vpack.c.b16 %v1724, %v1724
        %1726 = vrot.lane.b32.xlu0 %v1725, 96
        %v1727 = vpop.permute.xlu0 %1726
        %v1729 = vunpack.c.l.b16 %v1662
        %v1730 = vpack.c.b16 %v1729, %v1729
        %1731 = vrot.lane.b32.xlu0 %v1730, 112
        %v1732 = vpop.permute.xlu0 %1731
        %v1735 = vsel %vm978, %v1578, %v1667
        %v1737 = vsel %vm982, %v1735, %v1672
        %v1739 = vsel %vm985, %v1737, %v1677
        %v1741 = vsel %vm988, %v1739, %v1682
        %v1743 = vsel %vm991, %v1741, %v1687
        %v1745 = vsel %vm994, %v1743, %v1692
        %v1747 = vsel %vm997, %v1745, %v1697
        %v1750 = vsel %vm978, %v1628, %v1702
        %v1752 = vsel %vm982, %v1750, %v1707
        %v1754 = vsel %vm985, %v1752, %v1712
        %v1756 = vsel %vm988, %v1754, %v1717
        %v1758 = vsel %vm991, %v1756, %v1722
        %v1760 = vsel %vm994, %v1758, %v1727
        %v1762 = vsel %vm997, %v1760, %v1732
        %v1765 = vunpack.c.l.b16 %v1747
        %v1766 = vunpack.c.l.b16 %v1762
        %v1767 = vpack.c.b16 %v1766, %v1765
        %v1768 = vrot.slane %v1767, 5
        %1770 = vst [vmem:[#allocation3] sm:$0x88] %v1768
        %v1771 = vld [vmem:[#allocation2] sm:$0xf]
        %v1772 = vld [vmem:[#allocation2 + $0x4] sm:$0xf]
        %v1773 = vld [vmem:[#allocation2 + $0x8] sm:$0x1]
        %v1774 = vld [vmem:[#allocation2 + $0xc] sm:$0xf]
        %v1775 = vld [vmem:[#allocation2 + $0x10] sm:$0xf]
        %v1776 = vld [vmem:[#allocation2 + $0x14] sm:$0x1]
        %v1778 = vshrl.u32 %v1771, 16
        %v1780 = vrot.slane %v1778, 4
        %v1781 = vshll.u32 %v1771, 16
        %v1783 = vrot.slane %v1781, 5
        %v1784 = vor.u32 %v1780, %v1783
        %v1785 = vrot.slane %v1784, 4
        %v1787 = vshll.u32 %v1772, 16
        %v1789 = vrot.slane %v1787, 5
        %v1790 = vsel %vm1502, %v1785, %v1789
        %v1791 = vshrl.u32 %v1772, 16
        %v1793 = vrot.slane %v1791, 4
        %v1794 = vor.u32 %v1793, %v1789
        %v1795 = vrot.slane %v1794, 4
        %v1797 = vshll.u32 %v1773, 16
        %v1799 = vrot.slane %v1797, 5
        %v1800 = vsel %vm1502, %v1795, %v1799
        %v1802 = vshrl.u32 %v1774, 16
        %v1804 = vrot.slane %v1802, 4
        %v1805 = vshll.u32 %v1774, 16
        %v1807 = vrot.slane %v1805, 5
        %v1808 = vor.u32 %v1804, %v1807
        %v1809 = vrot.slane %v1808, 4
        %v1811 = vshll.u32 %v1775, 16
        %v1813 = vrot.slane %v1811, 5
        %v1814 = vsel %vm1502, %v1809, %v1813
        %v1815 = vshrl.u32 %v1775, 16
        %v1817 = vrot.slane %v1815, 4
        %v1818 = vor.u32 %v1817, %v1813
        %v1819 = vrot.slane %v1818, 4
        %v1821 = vshll.u32 %v1776, 16
        %v1823 = vrot.slane %v1821, 5
        %v1824 = vsel %vm1502, %v1819, %v1823
        %1825 = vrot.lane.b32.xlu0 %v1790, 127
        %v1826 = vpop.permute.xlu0 %1825
        %1827 = vrot.lane.b32.xlu0 %v1800, 127
        %v1828 = vpop.permute.xlu0 %1827
        %1829 = vrot.lane.b32.xlu0 %v1814, 127
        %v1830 = vpop.permute.xlu0 %1829
        %1831 = vrot.lane.b32.xlu0 %v1824, 127
        %v1832 = vpop.permute.xlu0 %1831
        %v1835 = vpack.i.b16 %v1830, %v1826
        %v1836 = vshrl.u32 %v1826, 16
        %v1837 = vshrl.u32 %v1830, 16
        %v1838 = vpack.i.b16 %v1837, %v1836
        %v1841 = vpack.i.b16 %v1832, %v1828
        %v1842 = vshrl.u32 %v1828, 16
        %v1843 = vshrl.u32 %v1832, 16
        %v1844 = vpack.i.b16 %v1843, %v1842
        %v1847 = vunpack.c.l.s4 1983009808
        %v1848 = vunpack.c.0.s8 %v1847
        %v1849 = vlaneseq
        %v1850 = vshrl.u32 %v1849, 7
        %v1851 = vsub.s32 %v1848, %v1850
        %v1852 = vrot.slane %v1835, %v1851
        %v1853 = vcombine.high %v1852, 0
        %v1855 = vunpack.c.l.s4 1934713408
        %v1856 = vunpack.c.0.s8 %v1855
        %v1857 = vlaneseq
        %v1858 = vshrl.u32 %v1857, 7
        %v1859 = vsub.s32 %v1856, %v1858
        %v1860 = vrot.slane %v1852, %v1859
        %v1862 = vunpack.c.l.s4 1934713408
        %v1863 = vunpack.c.0.s8 %v1862
        %v1864 = vlaneseq
        %v1865 = vshrl.u32 %v1864, 7
        %v1866 = vsub.s32 %v1863, %v1865
        %v1867 = vrot.slane %v1853, %v1866
        %v1868 = vcombine.high %v1860, 0
        %v1869 = vcombine.high %v1867, 0
        %v1872 = vunpack.c.l.s4 1983009808
        %v1873 = vunpack.c.0.s8 %v1872
        %v1874 = vlaneseq
        %v1875 = vshrl.u32 %v1874, 7
        %v1876 = vsub.s32 %v1873, %v1875
        %v1877 = vrot.slane %v1838, %v1876
        %v1878 = vcombine.high %v1877, 0
        %v1880 = vunpack.c.l.s4 1934713408
        %v1881 = vunpack.c.0.s8 %v1880
        %v1882 = vlaneseq
        %v1883 = vshrl.u32 %v1882, 7
        %v1884 = vsub.s32 %v1881, %v1883
        %v1885 = vrot.slane %v1877, %v1884
        %v1887 = vunpack.c.l.s4 1934713408
        %v1888 = vunpack.c.0.s8 %v1887
        %v1889 = vlaneseq
        %v1890 = vshrl.u32 %v1889, 7
        %v1891 = vsub.s32 %v1888, %v1890
        %v1892 = vrot.slane %v1878, %v1891
        %v1893 = vcombine.high %v1885, 0
        %v1894 = vcombine.high %v1892, 0
        %v1897 = vunpack.c.l.s4 1983009808
        %v1898 = vunpack.c.0.s8 %v1897
        %v1899 = vlaneseq
        %v1900 = vshrl.u32 %v1899, 7
        %v1901 = vsub.s32 %v1898, %v1900
        %v1902 = vrot.slane %v1841, %v1901
        %v1903 = vcombine.high %v1902, 0
        %v1905 = vunpack.c.l.s4 1934713408
        %v1906 = vunpack.c.0.s8 %v1905
        %v1907 = vlaneseq
        %v1908 = vshrl.u32 %v1907, 7
        %v1909 = vsub.s32 %v1906, %v1908
        %v1910 = vrot.slane %v1902, %v1909
        %v1912 = vunpack.c.l.s4 1934713408
        %v1913 = vunpack.c.0.s8 %v1912
        %v1914 = vlaneseq
        %v1915 = vshrl.u32 %v1914, 7
        %v1916 = vsub.s32 %v1913, %v1915
        %v1917 = vrot.slane %v1903, %v1916
        %v1918 = vcombine.high %v1910, 0
        %v1919 = vcombine.high %v1917, 0
        %v1922 = vunpack.c.l.s4 1983009808
        %v1923 = vunpack.c.0.s8 %v1922
        %v1924 = vlaneseq
        %v1925 = vshrl.u32 %v1924, 7
        %v1926 = vsub.s32 %v1923, %v1925
        %v1927 = vrot.slane %v1844, %v1926
        %v1928 = vcombine.high %v1927, 0
        %v1930 = vunpack.c.l.s4 1934713408
        %v1931 = vunpack.c.0.s8 %v1930
        %v1932 = vlaneseq
        %v1933 = vshrl.u32 %v1932, 7
        %v1934 = vsub.s32 %v1931, %v1933
        %v1935 = vrot.slane %v1927, %v1934
        %v1937 = vunpack.c.l.s4 1934713408
        %v1938 = vunpack.c.0.s8 %v1937
        %v1939 = vlaneseq
        %v1940 = vshrl.u32 %v1939, 7
        %v1941 = vsub.s32 %v1938, %v1940
        %v1942 = vrot.slane %v1928, %v1941
        %v1943 = vcombine.high %v1935, 0
        %v1944 = vcombine.high %v1942, 0
        %v1946 = vunpack.c.l.b16 %v1885
        %v1947 = vpack.c.b16 %v1946, %v1946
        %1948 = vrot.lane.b32.xlu0 %v1947, 16
        %v1949 = vpop.permute.xlu0 %1948
        %v1951 = vunpack.c.l.b16 %v1868
        %v1952 = vpack.c.b16 %v1951, %v1951
        %1953 = vrot.lane.b32.xlu0 %v1952, 32
        %v1954 = vpop.permute.xlu0 %1953
        %v1956 = vunpack.c.l.b16 %v1893
        %v1957 = vpack.c.b16 %v1956, %v1956
        %1958 = vrot.lane.b32.xlu0 %v1957, 48
        %v1959 = vpop.permute.xlu0 %1958
        %v1961 = vunpack.c.l.b16 %v1867
        %v1962 = vpack.c.b16 %v1961, %v1961
        %1963 = vrot.lane.b32.xlu0 %v1962, 64
        %v1964 = vpop.permute.xlu0 %1963
        %v1966 = vunpack.c.l.b16 %v1892
        %v1967 = vpack.c.b16 %v1966, %v1966
        %1968 = vrot.lane.b32.xlu0 %v1967, 80
        %v1969 = vpop.permute.xlu0 %1968
        %v1971 = vunpack.c.l.b16 %v1869
        %v1972 = vpack.c.b16 %v1971, %v1971
        %1973 = vrot.lane.b32.xlu0 %v1972, 96
        %v1974 = vpop.permute.xlu0 %1973
        %v1976 = vunpack.c.l.b16 %v1894
        %v1977 = vpack.c.b16 %v1976, %v1976
        %1978 = vrot.lane.b32.xlu0 %v1977, 112
        %v1979 = vpop.permute.xlu0 %1978
        %v1981 = vunpack.c.l.b16 %v1935
        %v1982 = vpack.c.b16 %v1981, %v1981
        %1983 = vrot.lane.b32.xlu0 %v1982, 16
        %v1984 = vpop.permute.xlu0 %1983
        %v1986 = vunpack.c.l.b16 %v1918
        %v1987 = vpack.c.b16 %v1986, %v1986
        %1988 = vrot.lane.b32.xlu0 %v1987, 32
        %v1989 = vpop.permute.xlu0 %1988
        %v1991 = vunpack.c.l.b16 %v1943
        %v1992 = vpack.c.b16 %v1991, %v1991
        %1993 = vrot.lane.b32.xlu0 %v1992, 48
        %v1994 = vpop.permute.xlu0 %1993
        %v1996 = vunpack.c.l.b16 %v1917
        %v1997 = vpack.c.b16 %v1996, %v1996
        %1998 = vrot.lane.b32.xlu0 %v1997, 64
        %v1999 = vpop.permute.xlu0 %1998
        %v2001 = vunpack.c.l.b16 %v1942
        %v2002 = vpack.c.b16 %v2001, %v2001
        %2003 = vrot.lane.b32.xlu0 %v2002, 80
        %v2004 = vpop.permute.xlu0 %2003
        %v2006 = vunpack.c.l.b16 %v1919
        %v2007 = vpack.c.b16 %v2006, %v2006
        %2008 = vrot.lane.b32.xlu0 %v2007, 96
        %v2009 = vpop.permute.xlu0 %2008
        %v2011 = vunpack.c.l.b16 %v1944
        %v2012 = vpack.c.b16 %v2011, %v2011
        %2013 = vrot.lane.b32.xlu0 %v2012, 112
        %v2014 = vpop.permute.xlu0 %2013
        %v2017 = vsel %vm978, %v1860, %v1949
        %v2019 = vsel %vm982, %v2017, %v1954
        %v2021 = vsel %vm985, %v2019, %v1959
        %v2023 = vsel %vm988, %v2021, %v1964
        %v2025 = vsel %vm991, %v2023, %v1969
        %v2027 = vsel %vm994, %v2025, %v1974
        %v2029 = vsel %vm997, %v2027, %v1979
        %v2032 = vsel %vm978, %v1910, %v1984
        %v2034 = vsel %vm982, %v2032, %v1989
        %v2036 = vsel %vm985, %v2034, %v1994
        %v2038 = vsel %vm988, %v2036, %v1999
        %v2040 = vsel %vm991, %v2038, %v2004
        %v2042 = vsel %vm994, %v2040, %v2009
        %v2044 = vsel %vm997, %v2042, %v2014
        %v2047 = vunpack.c.l.b16 %v2029
        %v2048 = vunpack.c.l.b16 %v2044
        %v2049 = vpack.c.b16 %v2048, %v2047
        %2051 = vst [vmem:[#allocation3 + $0x8] sm:$0x11] %v2049
        %v2052 = vld [vmem:[#allocation2] sm:$0xf]
        %v2053 = vld [vmem:[#allocation2 + $0x4] sm:$0xf]
        %v2054 = vld [vmem:[#allocation2 + $0x8] sm:$0x1]
        %v2055 = vld [vmem:[#allocation2 + $0xc] sm:$0xf]
        %v2056 = vld [vmem:[#allocation2 + $0x10] sm:$0xf]
        %v2057 = vld [vmem:[#allocation2 + $0x14] sm:$0x1]
        %v2059 = vshrl.u32 %v2052, 16
        %v2061 = vrot.slane %v2059, 4
        %v2062 = vshll.u32 %v2052, 16
        %v2064 = vrot.slane %v2062, 5
        %v2065 = vor.u32 %v2061, %v2064
        %v2066 = vrot.slane %v2065, 4
        %v2068 = vshll.u32 %v2053, 16
        %v2070 = vrot.slane %v2068, 5
        %v2071 = vsel %vm1502, %v2066, %v2070
        %v2072 = vshrl.u32 %v2053, 16
        %v2074 = vrot.slane %v2072, 4
        %v2075 = vor.u32 %v2074, %v2070
        %v2076 = vrot.slane %v2075, 4
        %v2078 = vshll.u32 %v2054, 16
        %v2080 = vrot.slane %v2078, 5
        %v2081 = vsel %vm1502, %v2076, %v2080
        %v2083 = vshrl.u32 %v2055, 16
        %v2085 = vrot.slane %v2083, 4
        %v2086 = vshll.u32 %v2055, 16
        %v2088 = vrot.slane %v2086, 5
        %v2089 = vor.u32 %v2085, %v2088
        %v2090 = vrot.slane %v2089, 4
        %v2092 = vshll.u32 %v2056, 16
        %v2094 = vrot.slane %v2092, 5
        %v2095 = vsel %vm1502, %v2090, %v2094
        %v2096 = vshrl.u32 %v2056, 16
        %v2098 = vrot.slane %v2096, 4
        %v2099 = vor.u32 %v2098, %v2094
        %v2100 = vrot.slane %v2099, 4
        %v2102 = vshll.u32 %v2057, 16
        %v2104 = vrot.slane %v2102, 5
        %v2105 = vsel %vm1502, %v2100, %v2104
        %2106 = vrot.lane.b32.xlu0 %v2071, 126
        %v2107 = vpop.permute.xlu0 %2106
        %2108 = vrot.lane.b32.xlu0 %v2081, 126
        %v2109 = vpop.permute.xlu0 %2108
        %2110 = vrot.lane.b32.xlu0 %v2095, 126
        %v2111 = vpop.permute.xlu0 %2110
        %2112 = vrot.lane.b32.xlu0 %v2105, 126
        %v2113 = vpop.permute.xlu0 %2112
        %v2116 = vpack.i.b16 %v2111, %v2107
        %v2117 = vshrl.u32 %v2107, 16
        %v2118 = vshrl.u32 %v2111, 16
        %v2119 = vpack.i.b16 %v2118, %v2117
        %v2122 = vpack.i.b16 %v2113, %v2109
        %v2123 = vshrl.u32 %v2109, 16
        %v2124 = vshrl.u32 %v2113, 16
        %v2125 = vpack.i.b16 %v2124, %v2123
        %v2128 = vunpack.c.l.s4 1983009808
        %v2129 = vunpack.c.0.s8 %v2128
        %v2130 = vlaneseq
        %v2131 = vshrl.u32 %v2130, 7
        %v2132 = vsub.s32 %v2129, %v2131
        %v2133 = vrot.slane %v2116, %v2132
        %v2134 = vcombine.high %v2133, 0
        %v2136 = vunpack.c.l.s4 1934713408
        %v2137 = vunpack.c.0.s8 %v2136
        %v2138 = vlaneseq
        %v2139 = vshrl.u32 %v2138, 7
        %v2140 = vsub.s32 %v2137, %v2139
        %v2141 = vrot.slane %v2133, %v2140
        %v2143 = vunpack.c.l.s4 1934713408
        %v2144 = vunpack.c.0.s8 %v2143
        %v2145 = vlaneseq
        %v2146 = vshrl.u32 %v2145, 7
        %v2147 = vsub.s32 %v2144, %v2146
        %v2148 = vrot.slane %v2134, %v2147
        %v2149 = vcombine.high %v2141, 0
        %v2150 = vcombine.high %v2148, 0
        %v2153 = vunpack.c.l.s4 1983009808
        %v2154 = vunpack.c.0.s8 %v2153
        %v2155 = vlaneseq
        %v2156 = vshrl.u32 %v2155, 7
        %v2157 = vsub.s32 %v2154, %v2156
        %v2158 = vrot.slane %v2119, %v2157
        %v2159 = vcombine.high %v2158, 0
        %v2161 = vunpack.c.l.s4 1934713408
        %v2162 = vunpack.c.0.s8 %v2161
        %v2163 = vlaneseq
        %v2164 = vshrl.u32 %v2163, 7
        %v2165 = vsub.s32 %v2162, %v2164
        %v2166 = vrot.slane %v2158, %v2165
        %v2168 = vunpack.c.l.s4 1934713408
        %v2169 = vunpack.c.0.s8 %v2168
        %v2170 = vlaneseq
        %v2171 = vshrl.u32 %v2170, 7
        %v2172 = vsub.s32 %v2169, %v2171
        %v2173 = vrot.slane %v2159, %v2172
        %v2174 = vcombine.high %v2166, 0
        %v2175 = vcombine.high %v2173, 0
        %v2178 = vunpack.c.l.s4 1983009808
        %v2179 = vunpack.c.0.s8 %v2178
        %v2180 = vlaneseq
        %v2181 = vshrl.u32 %v2180, 7
        %v2182 = vsub.s32 %v2179, %v2181
        %v2183 = vrot.slane %v2122, %v2182
        %v2184 = vcombine.high %v2183, 0
        %v2186 = vunpack.c.l.s4 1934713408
        %v2187 = vunpack.c.0.s8 %v2186
        %v2188 = vlaneseq
        %v2189 = vshrl.u32 %v2188, 7
        %v2190 = vsub.s32 %v2187, %v2189
        %v2191 = vrot.slane %v2183, %v2190
        %v2193 = vunpack.c.l.s4 1934713408
        %v2194 = vunpack.c.0.s8 %v2193
        %v2195 = vlaneseq
        %v2196 = vshrl.u32 %v2195, 7
        %v2197 = vsub.s32 %v2194, %v2196
        %v2198 = vrot.slane %v2184, %v2197
        %v2199 = vcombine.high %v2191, 0
        %v2200 = vcombine.high %v2198, 0
        %v2203 = vunpack.c.l.s4 1983009808
        %v2204 = vunpack.c.0.s8 %v2203
        %v2205 = vlaneseq
        %v2206 = vshrl.u32 %v2205, 7
        %v2207 = vsub.s32 %v2204, %v2206
        %v2208 = vrot.slane %v2125, %v2207
        %v2209 = vcombine.high %v2208, 0
        %v2211 = vunpack.c.l.s4 1934713408
        %v2212 = vunpack.c.0.s8 %v2211
        %v2213 = vlaneseq
        %v2214 = vshrl.u32 %v2213, 7
        %v2215 = vsub.s32 %v2212, %v2214
        %v2216 = vrot.slane %v2208, %v2215
        %v2218 = vunpack.c.l.s4 1934713408
        %v2219 = vunpack.c.0.s8 %v2218
        %v2220 = vlaneseq
        %v2221 = vshrl.u32 %v2220, 7
        %v2222 = vsub.s32 %v2219, %v2221
        %v2223 = vrot.slane %v2209, %v2222
        %v2224 = vcombine.high %v2216, 0
        %v2225 = vcombine.high %v2223, 0
        %v2227 = vunpack.c.l.b16 %v2166
        %v2228 = vpack.c.b16 %v2227, %v2227
        %2229 = vrot.lane.b32.xlu0 %v2228, 16
        %v2230 = vpop.permute.xlu0 %2229
        %v2232 = vunpack.c.l.b16 %v2149
        %v2233 = vpack.c.b16 %v2232, %v2232
        %2234 = vrot.lane.b32.xlu0 %v2233, 32
        %v2235 = vpop.permute.xlu0 %2234
        %v2237 = vunpack.c.l.b16 %v2174
        %v2238 = vpack.c.b16 %v2237, %v2237
        %2239 = vrot.lane.b32.xlu0 %v2238, 48
        %v2240 = vpop.permute.xlu0 %2239
        %v2242 = vunpack.c.l.b16 %v2148
        %v2243 = vpack.c.b16 %v2242, %v2242
        %2244 = vrot.lane.b32.xlu0 %v2243, 64
        %v2245 = vpop.permute.xlu0 %2244
        %v2247 = vunpack.c.l.b16 %v2173
        %v2248 = vpack.c.b16 %v2247, %v2247
        %2249 = vrot.lane.b32.xlu0 %v2248, 80
        %v2250 = vpop.permute.xlu0 %2249
        %v2252 = vunpack.c.l.b16 %v2150
        %v2253 = vpack.c.b16 %v2252, %v2252
        %2254 = vrot.lane.b32.xlu0 %v2253, 96
        %v2255 = vpop.permute.xlu0 %2254
        %v2257 = vunpack.c.l.b16 %v2175
        %v2258 = vpack.c.b16 %v2257, %v2257
        %2259 = vrot.lane.b32.xlu0 %v2258, 112
        %v2260 = vpop.permute.xlu0 %2259
        %v2262 = vunpack.c.l.b16 %v2216
        %v2263 = vpack.c.b16 %v2262, %v2262
        %2264 = vrot.lane.b32.xlu0 %v2263, 16
        %v2265 = vpop.permute.xlu0 %2264
        %v2267 = vunpack.c.l.b16 %v2199
        %v2268 = vpack.c.b16 %v2267, %v2267
        %2269 = vrot.lane.b32.xlu0 %v2268, 32
        %v2270 = vpop.permute.xlu0 %2269
        %v2272 = vunpack.c.l.b16 %v2224
        %v2273 = vpack.c.b16 %v2272, %v2272
        %2274 = vrot.lane.b32.xlu0 %v2273, 48
        %v2275 = vpop.permute.xlu0 %2274
        %v2277 = vunpack.c.l.b16 %v2198
        %v2278 = vpack.c.b16 %v2277, %v2277
        %2279 = vrot.lane.b32.xlu0 %v2278, 64
        %v2280 = vpop.permute.xlu0 %2279
        %v2282 = vunpack.c.l.b16 %v2223
        %v2283 = vpack.c.b16 %v2282, %v2282
        %2284 = vrot.lane.b32.xlu0 %v2283, 80
        %v2285 = vpop.permute.xlu0 %2284
        %v2287 = vunpack.c.l.b16 %v2200
        %v2288 = vpack.c.b16 %v2287, %v2287
        %2289 = vrot.lane.b32.xlu0 %v2288, 96
        %v2290 = vpop.permute.xlu0 %2289
        %v2292 = vunpack.c.l.b16 %v2225
        %v2293 = vpack.c.b16 %v2292, %v2292
        %2294 = vrot.lane.b32.xlu0 %v2293, 112
        %v2295 = vpop.permute.xlu0 %2294
        %v2298 = vsel %vm978, %v2141, %v2230
        %v2300 = vsel %vm982, %v2298, %v2235
        %v2302 = vsel %vm985, %v2300, %v2240
        %v2304 = vsel %vm988, %v2302, %v2245
        %v2306 = vsel %vm991, %v2304, %v2250
        %v2308 = vsel %vm994, %v2306, %v2255
        %v2310 = vsel %vm997, %v2308, %v2260
        %v2313 = vsel %vm978, %v2191, %v2265
        %v2315 = vsel %vm982, %v2313, %v2270
        %v2317 = vsel %vm985, %v2315, %v2275
        %v2319 = vsel %vm988, %v2317, %v2280
        %v2321 = vsel %vm991, %v2319, %v2285
        %v2323 = vsel %vm994, %v2321, %v2290
        %v2325 = vsel %vm997, %v2323, %v2295
        %v2328 = vunpack.c.l.b16 %v2310
        %v2329 = vunpack.c.l.b16 %v2325
        %v2330 = vpack.c.b16 %v2329, %v2328
        %v2331 = vrot.slane %v2330, 7
        %2333 = vst [vmem:[#allocation3 + $0x8] sm:$0x22] %v2331
        %v2334 = vld [vmem:[#allocation2] sm:$0xe]
        %v2335 = vld [vmem:[#allocation2 + $0x4] sm:$0xf]
        %v2336 = vld [vmem:[#allocation2 + $0x8] sm:$0x1]
        %v2337 = vld [vmem:[#allocation2 + $0xc] sm:$0xe]
        %v2338 = vld [vmem:[#allocation2 + $0x10] sm:$0xf]
        %v2339 = vld [vmem:[#allocation2 + $0x14] sm:$0x1]
        %vm2346 = vcmask 1042432
        %vm2347 = vcmask 1046532
        %vm2348 = vmor %vm2346, %vm2347
        %v2349 = vrot.slane %v2334, 5
        %v2350 = vrot.slane %v2349, 4
        %v2351 = vrot.slane %v2335, 5
        %v2352 = vsel %vm2348, %v2350, %v2351
        %v2353 = vrot.slane %v2351, 4
        %v2354 = vrot.slane %v2336, 5
        %v2355 = vsel %vm2348, %v2353, %v2354
        %v2356 = vrot.slane %v2337, 5
        %v2357 = vrot.slane %v2356, 4
        %v2358 = vrot.slane %v2338, 5
        %v2359 = vsel %vm2348, %v2357, %v2358
        %v2360 = vrot.slane %v2358, 4
        %v2361 = vrot.slane %v2339, 5
        %v2362 = vsel %vm2348, %v2360, %v2361
        %v2365 = vpack.i.b16 %v2359, %v2352
        %v2366 = vshrl.u32 %v2352, 16
        %v2367 = vshrl.u32 %v2359, 16
        %v2368 = vpack.i.b16 %v2367, %v2366
        %v2371 = vpack.i.b16 %v2362, %v2355
        %v2372 = vshrl.u32 %v2355, 16
        %v2373 = vshrl.u32 %v2362, 16
        %v2374 = vpack.i.b16 %v2373, %v2372
        %v2377 = vunpack.c.l.s4 1983009808
        %v2378 = vunpack.c.0.s8 %v2377
        %v2379 = vlaneseq
        %v2380 = vshrl.u32 %v2379, 7
        %v2381 = vsub.s32 %v2378, %v2380
        %v2382 = vrot.slane %v2365, %v2381
        %v2383 = vcombine.high %v2382, 0
        %v2385 = vunpack.c.l.s4 1934713408
        %v2386 = vunpack.c.0.s8 %v2385
        %v2387 = vlaneseq
        %v2388 = vshrl.u32 %v2387, 7
        %v2389 = vsub.s32 %v2386, %v2388
        %v2390 = vrot.slane %v2382, %v2389
        %v2392 = vunpack.c.l.s4 1934713408
        %v2393 = vunpack.c.0.s8 %v2392
        %v2394 = vlaneseq
        %v2395 = vshrl.u32 %v2394, 7
        %v2396 = vsub.s32 %v2393, %v2395
        %v2397 = vrot.slane %v2383, %v2396
        %v2398 = vcombine.high %v2390, 0
        %v2399 = vcombine.high %v2397, 0
        %v2402 = vunpack.c.l.s4 1983009808
        %v2403 = vunpack.c.0.s8 %v2402
        %v2404 = vlaneseq
        %v2405 = vshrl.u32 %v2404, 7
        %v2406 = vsub.s32 %v2403, %v2405
        %v2407 = vrot.slane %v2368, %v2406
        %v2408 = vcombine.high %v2407, 0
        %v2410 = vunpack.c.l.s4 1934713408
        %v2411 = vunpack.c.0.s8 %v2410
        %v2412 = vlaneseq
        %v2413 = vshrl.u32 %v2412, 7
        %v2414 = vsub.s32 %v2411, %v2413
        %v2415 = vrot.slane %v2407, %v2414
        %v2417 = vunpack.c.l.s4 1934713408
        %v2418 = vunpack.c.0.s8 %v2417
        %v2419 = vlaneseq
        %v2420 = vshrl.u32 %v2419, 7
        %v2421 = vsub.s32 %v2418, %v2420
        %v2422 = vrot.slane %v2408, %v2421
        %v2423 = vcombine.high %v2415, 0
        %v2424 = vcombine.high %v2422, 0
        %v2427 = vunpack.c.l.s4 1983009808
        %v2428 = vunpack.c.0.s8 %v2427
        %v2429 = vlaneseq
        %v2430 = vshrl.u32 %v2429, 7
        %v2431 = vsub.s32 %v2428, %v2430
        %v2432 = vrot.slane %v2371, %v2431
        %v2433 = vcombine.high %v2432, 0
        %v2435 = vunpack.c.l.s4 1934713408
        %v2436 = vunpack.c.0.s8 %v2435
        %v2437 = vlaneseq
        %v2438 = vshrl.u32 %v2437, 7
        %v2439 = vsub.s32 %v2436, %v2438
        %v2440 = vrot.slane %v2432, %v2439
        %v2442 = vunpack.c.l.s4 1934713408
        %v2443 = vunpack.c.0.s8 %v2442
        %v2444 = vlaneseq
        %v2445 = vshrl.u32 %v2444, 7
        %v2446 = vsub.s32 %v2443, %v2445
        %v2447 = vrot.slane %v2433, %v2446
        %v2448 = vcombine.high %v2440, 0
        %v2449 = vcombine.high %v2447, 0
        %v2452 = vunpack.c.l.s4 1983009808
        %v2453 = vunpack.c.0.s8 %v2452
        %v2454 = vlaneseq
        %v2455 = vshrl.u32 %v2454, 7
        %v2456 = vsub.s32 %v2453, %v2455
        %v2457 = vrot.slane %v2374, %v2456
        %v2458 = vcombine.high %v2457, 0
        %v2460 = vunpack.c.l.s4 1934713408
        %v2461 = vunpack.c.0.s8 %v2460
        %v2462 = vlaneseq
        %v2463 = vshrl.u32 %v2462, 7
        %v2464 = vsub.s32 %v2461, %v2463
        %v2465 = vrot.slane %v2457, %v2464
        %v2467 = vunpack.c.l.s4 1934713408
        %v2468 = vunpack.c.0.s8 %v2467
        %v2469 = vlaneseq
        %v2470 = vshrl.u32 %v2469, 7
        %v2471 = vsub.s32 %v2468, %v2470
        %v2472 = vrot.slane %v2458, %v2471
        %v2473 = vcombine.high %v2465, 0
        %v2474 = vcombine.high %v2472, 0
        %v2476 = vunpack.c.l.b16 %v2415
        %v2477 = vpack.c.b16 %v2476, %v2476
        %2478 = vrot.lane.b32.xlu0 %v2477, 16
        %v2479 = vpop.permute.xlu0 %2478
        %v2481 = vunpack.c.l.b16 %v2398
        %v2482 = vpack.c.b16 %v2481, %v2481
        %2483 = vrot.lane.b32.xlu0 %v2482, 32
        %v2484 = vpop.permute.xlu0 %2483
        %v2486 = vunpack.c.l.b16 %v2423
        %v2487 = vpack.c.b16 %v2486, %v2486
        %2488 = vrot.lane.b32.xlu0 %v2487, 48
        %v2489 = vpop.permute.xlu0 %2488
        %v2491 = vunpack.c.l.b16 %v2397
        %v2492 = vpack.c.b16 %v2491, %v2491
        %2493 = vrot.lane.b32.xlu0 %v2492, 64
        %v2494 = vpop.permute.xlu0 %2493
        %v2496 = vunpack.c.l.b16 %v2422
        %v2497 = vpack.c.b16 %v2496, %v2496
        %2498 = vrot.lane.b32.xlu0 %v2497, 80
        %v2499 = vpop.permute.xlu0 %2498
        %v2501 = vunpack.c.l.b16 %v2399
        %v2502 = vpack.c.b16 %v2501, %v2501
        %2503 = vrot.lane.b32.xlu0 %v2502, 96
        %v2504 = vpop.permute.xlu0 %2503
        %v2506 = vunpack.c.l.b16 %v2424
        %v2507 = vpack.c.b16 %v2506, %v2506
        %2508 = vrot.lane.b32.xlu0 %v2507, 112
        %v2509 = vpop.permute.xlu0 %2508
        %v2511 = vunpack.c.l.b16 %v2465
        %v2512 = vpack.c.b16 %v2511, %v2511
        %2513 = vrot.lane.b32.xlu0 %v2512, 16
        %v2514 = vpop.permute.xlu0 %2513
        %v2516 = vunpack.c.l.b16 %v2448
        %v2517 = vpack.c.b16 %v2516, %v2516
        %2518 = vrot.lane.b32.xlu0 %v2517, 32
        %v2519 = vpop.permute.xlu0 %2518
        %v2521 = vunpack.c.l.b16 %v2473
        %v2522 = vpack.c.b16 %v2521, %v2521
        %2523 = vrot.lane.b32.xlu0 %v2522, 48
        %v2524 = vpop.permute.xlu0 %2523
        %v2526 = vunpack.c.l.b16 %v2447
        %v2527 = vpack.c.b16 %v2526, %v2526
        %2528 = vrot.lane.b32.xlu0 %v2527, 64
        %v2529 = vpop.permute.xlu0 %2528
        %v2531 = vunpack.c.l.b16 %v2472
        %v2532 = vpack.c.b16 %v2531, %v2531
        %2533 = vrot.lane.b32.xlu0 %v2532, 80
        %v2534 = vpop.permute.xlu0 %2533
        %v2536 = vunpack.c.l.b16 %v2449
        %v2537 = vpack.c.b16 %v2536, %v2536
        %2538 = vrot.lane.b32.xlu0 %v2537, 96
        %v2539 = vpop.permute.xlu0 %2538
        %v2541 = vunpack.c.l.b16 %v2474
        %v2542 = vpack.c.b16 %v2541, %v2541
        %2543 = vrot.lane.b32.xlu0 %v2542, 112
        %v2544 = vpop.permute.xlu0 %2543
        %v2547 = vsel %vm978, %v2390, %v2479
        %v2549 = vsel %vm982, %v2547, %v2484
        %v2551 = vsel %vm985, %v2549, %v2489
        %v2553 = vsel %vm988, %v2551, %v2494
        %v2555 = vsel %vm991, %v2553, %v2499
        %v2557 = vsel %vm994, %v2555, %v2504
        %v2559 = vsel %vm997, %v2557, %v2509
        %v2562 = vsel %vm978, %v2440, %v2514
        %v2564 = vsel %vm982, %v2562, %v2519
        %v2566 = vsel %vm985, %v2564, %v2524
        %v2568 = vsel %vm988, %v2566, %v2529
        %v2570 = vsel %vm991, %v2568, %v2534
        %v2572 = vsel %vm994, %v2570, %v2539
        %v2574 = vsel %vm997, %v2572, %v2544
        %v2577 = vunpack.c.l.b16 %v2559
        %v2578 = vunpack.c.l.b16 %v2574
        %v2579 = vpack.c.b16 %v2578, %v2577
        %v2580 = vrot.slane %v2579, 6
        %2582 = vst [vmem:[#allocation3 + $0x8] sm:$0x44] %v2580
        %v2583 = vld [vmem:[#allocation2] sm:$0xe]
        %v2584 = vld [vmem:[#allocation2 + $0x4] sm:$0xf]
        %v2585 = vld [vmem:[#allocation2 + $0x8] sm:$0x1]
        %v2586 = vld [vmem:[#allocation2 + $0xc] sm:$0xe]
        %v2587 = vld [vmem:[#allocation2 + $0x10] sm:$0xf]
        %v2588 = vld [vmem:[#allocation2 + $0x14] sm:$0x1]
        %v2595 = vrot.slane %v2583, 5
        %v2596 = vrot.slane %v2595, 4
        %v2597 = vrot.slane %v2584, 5
        %v2598 = vsel %vm2348, %v2596, %v2597
        %v2599 = vrot.slane %v2597, 4
        %v2600 = vrot.slane %v2585, 5
        %v2601 = vsel %vm2348, %v2599, %v2600
        %v2602 = vrot.slane %v2586, 5
        %v2603 = vrot.slane %v2602, 4
        %v2604 = vrot.slane %v2587, 5
        %v2605 = vsel %vm2348, %v2603, %v2604
        %v2606 = vrot.slane %v2604, 4
        %v2607 = vrot.slane %v2588, 5
        %v2608 = vsel %vm2348, %v2606, %v2607
        %2609 = vrot.lane.b32.xlu0 %v2598, 127
        %v2610 = vpop.permute.xlu0 %2609
        %2611 = vrot.lane.b32.xlu0 %v2601, 127
        %v2612 = vpop.permute.xlu0 %2611
        %2613 = vrot.lane.b32.xlu0 %v2605, 127
        %v2614 = vpop.permute.xlu0 %2613
        %2615 = vrot.lane.b32.xlu0 %v2608, 127
        %v2616 = vpop.permute.xlu0 %2615
        %v2619 = vpack.i.b16 %v2614, %v2610
        %v2620 = vshrl.u32 %v2610, 16
        %v2621 = vshrl.u32 %v2614, 16
        %v2622 = vpack.i.b16 %v2621, %v2620
        %v2625 = vpack.i.b16 %v2616, %v2612
        %v2626 = vshrl.u32 %v2612, 16
        %v2627 = vshrl.u32 %v2616, 16
        %v2628 = vpack.i.b16 %v2627, %v2626
        %v2631 = vunpack.c.l.s4 1983009808
        %v2632 = vunpack.c.0.s8 %v2631
        %v2633 = vlaneseq
        %v2634 = vshrl.u32 %v2633, 7
        %v2635 = vsub.s32 %v2632, %v2634
        %v2636 = vrot.slane %v2619, %v2635
        %v2637 = vcombine.high %v2636, 0
        %v2639 = vunpack.c.l.s4 1934713408
        %v2640 = vunpack.c.0.s8 %v2639
        %v2641 = vlaneseq
        %v2642 = vshrl.u32 %v2641, 7
        %v2643 = vsub.s32 %v2640, %v2642
        %v2644 = vrot.slane %v2636, %v2643
        %v2646 = vunpack.c.l.s4 1934713408
        %v2647 = vunpack.c.0.s8 %v2646
        %v2648 = vlaneseq
        %v2649 = vshrl.u32 %v2648, 7
        %v2650 = vsub.s32 %v2647, %v2649
        %v2651 = vrot.slane %v2637, %v2650
        %v2652 = vcombine.high %v2644, 0
        %v2653 = vcombine.high %v2651, 0
        %v2656 = vunpack.c.l.s4 1983009808
        %v2657 = vunpack.c.0.s8 %v2656
        %v2658 = vlaneseq
        %v2659 = vshrl.u32 %v2658, 7
        %v2660 = vsub.s32 %v2657, %v2659
        %v2661 = vrot.slane %v2622, %v2660
        %v2662 = vcombine.high %v2661, 0
        %v2664 = vunpack.c.l.s4 1934713408
        %v2665 = vunpack.c.0.s8 %v2664
        %v2666 = vlaneseq
        %v2667 = vshrl.u32 %v2666, 7
        %v2668 = vsub.s32 %v2665, %v2667
        %v2669 = vrot.slane %v2661, %v2668
        %v2671 = vunpack.c.l.s4 1934713408
        %v2672 = vunpack.c.0.s8 %v2671
        %v2673 = vlaneseq
        %v2674 = vshrl.u32 %v2673, 7
        %v2675 = vsub.s32 %v2672, %v2674
        %v2676 = vrot.slane %v2662, %v2675
        %v2677 = vcombine.high %v2669, 0
        %v2678 = vcombine.high %v2676, 0
        %v2681 = vunpack.c.l.s4 1983009808
        %v2682 = vunpack.c.0.s8 %v2681
        %v2683 = vlaneseq
        %v2684 = vshrl.u32 %v2683, 7
        %v2685 = vsub.s32 %v2682, %v2684
        %v2686 = vrot.slane %v2625, %v2685
        %v2687 = vcombine.high %v2686, 0
        %v2689 = vunpack.c.l.s4 1934713408
        %v2690 = vunpack.c.0.s8 %v2689
        %v2691 = vlaneseq
        %v2692 = vshrl.u32 %v2691, 7
        %v2693 = vsub.s32 %v2690, %v2692
        %v2694 = vrot.slane %v2686, %v2693
        %v2696 = vunpack.c.l.s4 1934713408
        %v2697 = vunpack.c.0.s8 %v2696
        %v2698 = vlaneseq
        %v2699 = vshrl.u32 %v2698, 7
        %v2700 = vsub.s32 %v2697, %v2699
        %v2701 = vrot.slane %v2687, %v2700
        %v2702 = vcombine.high %v2694, 0
        %v2703 = vcombine.high %v2701, 0
        %v2706 = vunpack.c.l.s4 1983009808
        %v2707 = vunpack.c.0.s8 %v2706
        %v2708 = vlaneseq
        %v2709 = vshrl.u32 %v2708, 7
        %v2710 = vsub.s32 %v2707, %v2709
        %v2711 = vrot.slane %v2628, %v2710
        %v2712 = vcombine.high %v2711, 0
        %v2714 = vunpack.c.l.s4 1934713408
        %v2715 = vunpack.c.0.s8 %v2714
        %v2716 = vlaneseq
        %v2717 = vshrl.u32 %v2716, 7
        %v2718 = vsub.s32 %v2715, %v2717
        %v2719 = vrot.slane %v2711, %v2718
        %v2721 = vunpack.c.l.s4 1934713408
        %v2722 = vunpack.c.0.s8 %v2721
        %v2723 = vlaneseq
        %v2724 = vshrl.u32 %v2723, 7
        %v2725 = vsub.s32 %v2722, %v2724
        %v2726 = vrot.slane %v2712, %v2725
        %v2727 = vcombine.high %v2719, 0
        %v2728 = vcombine.high %v2726, 0
        %v2730 = vunpack.c.l.b16 %v2669
        %v2731 = vpack.c.b16 %v2730, %v2730
        %2732 = vrot.lane.b32.xlu0 %v2731, 16
        %v2733 = vpop.permute.xlu0 %2732
        %v2735 = vunpack.c.l.b16 %v2652
        %v2736 = vpack.c.b16 %v2735, %v2735
        %2737 = vrot.lane.b32.xlu0 %v2736, 32
        %v2738 = vpop.permute.xlu0 %2737
        %v2740 = vunpack.c.l.b16 %v2677
        %v2741 = vpack.c.b16 %v2740, %v2740
        %2742 = vrot.lane.b32.xlu0 %v2741, 48
        %v2743 = vpop.permute.xlu0 %2742
        %v2745 = vunpack.c.l.b16 %v2651
        %v2746 = vpack.c.b16 %v2745, %v2745
        %2747 = vrot.lane.b32.xlu0 %v2746, 64
        %v2748 = vpop.permute.xlu0 %2747
        %v2750 = vunpack.c.l.b16 %v2676
        %v2751 = vpack.c.b16 %v2750, %v2750
        %2752 = vrot.lane.b32.xlu0 %v2751, 80
        %v2753 = vpop.permute.xlu0 %2752
        %v2755 = vunpack.c.l.b16 %v2653
        %v2756 = vpack.c.b16 %v2755, %v2755
        %2757 = vrot.lane.b32.xlu0 %v2756, 96
        %v2758 = vpop.permute.xlu0 %2757
        %v2760 = vunpack.c.l.b16 %v2678
        %v2761 = vpack.c.b16 %v2760, %v2760
        %2762 = vrot.lane.b32.xlu0 %v2761, 112
        %v2763 = vpop.permute.xlu0 %2762
        %v2765 = vunpack.c.l.b16 %v2719
        %v2766 = vpack.c.b16 %v2765, %v2765
        %2767 = vrot.lane.b32.xlu0 %v2766, 16
        %v2768 = vpop.permute.xlu0 %2767
        %v2770 = vunpack.c.l.b16 %v2702
        %v2771 = vpack.c.b16 %v2770, %v2770
        %2772 = vrot.lane.b32.xlu0 %v2771, 32
        %v2773 = vpop.permute.xlu0 %2772
        %v2775 = vunpack.c.l.b16 %v2727
        %v2776 = vpack.c.b16 %v2775, %v2775
        %2777 = vrot.lane.b32.xlu0 %v2776, 48
        %v2778 = vpop.permute.xlu0 %2777
        %v2780 = vunpack.c.l.b16 %v2701
        %v2781 = vpack.c.b16 %v2780, %v2780
        %2782 = vrot.lane.b32.xlu0 %v2781, 64
        %v2783 = vpop.permute.xlu0 %2782
        %v2785 = vunpack.c.l.b16 %v2726
        %v2786 = vpack.c.b16 %v2785, %v2785
        %2787 = vrot.lane.b32.xlu0 %v2786, 80
        %v2788 = vpop.permute.xlu0 %2787
        %v2790 = vunpack.c.l.b16 %v2703
        %v2791 = vpack.c.b16 %v2790, %v2790
        %2792 = vrot.lane.b32.xlu0 %v2791, 96
        %v2793 = vpop.permute.xlu0 %2792
        %v2795 = vunpack.c.l.b16 %v2728
        %v2796 = vpack.c.b16 %v2795, %v2795
        %2797 = vrot.lane.b32.xlu0 %v2796, 112
        %v2798 = vpop.permute.xlu0 %2797
        %v2801 = vsel %vm978, %v2644, %v2733
        %v2803 = vsel %vm982, %v2801, %v2738
        %v2805 = vsel %vm985, %v2803, %v2743
        %v2807 = vsel %vm988, %v2805, %v2748
        %v2809 = vsel %vm991, %v2807, %v2753
        %v2811 = vsel %vm994, %v2809, %v2758
        %v2813 = vsel %vm997, %v2811, %v2763
        %v2816 = vsel %vm978, %v2694, %v2768
        %v2818 = vsel %vm982, %v2816, %v2773
        %v2820 = vsel %vm985, %v2818, %v2778
        %v2822 = vsel %vm988, %v2820, %v2783
        %v2824 = vsel %vm991, %v2822, %v2788
        %v2826 = vsel %vm994, %v2824, %v2793
        %v2828 = vsel %vm997, %v2826, %v2798
        %v2831 = vunpack.c.l.b16 %v2813
        %v2832 = vunpack.c.l.b16 %v2828
        %v2833 = vpack.c.b16 %v2832, %v2831
        %v2834 = vrot.slane %v2833, 5
        %2836 = vst [vmem:[#allocation3 + $0x8] sm:$0x88] %v2834
        %v2837 = vld [vmem:[#allocation2] sm:$0xe]
        %v2838 = vld [vmem:[#allocation2 + $0x4] sm:$0xf]
        %v2839 = vld [vmem:[#allocation2 + $0x8] sm:$0x1]
        %v2840 = vld [vmem:[#allocation2 + $0xc] sm:$0xe]
        %v2841 = vld [vmem:[#allocation2 + $0x10] sm:$0xf]
        %v2842 = vld [vmem:[#allocation2 + $0x14] sm:$0x1]
        %v2849 = vrot.slane %v2837, 5
        %v2850 = vrot.slane %v2849, 4
        %v2851 = vrot.slane %v2838, 5
        %v2852 = vsel %vm2348, %v2850, %v2851
        %v2853 = vrot.slane %v2851, 4
        %v2854 = vrot.slane %v2839, 5
        %v2855 = vsel %vm2348, %v2853, %v2854
        %v2856 = vrot.slane %v2840, 5
        %v2857 = vrot.slane %v2856, 4
        %v2858 = vrot.slane %v2841, 5
        %v2859 = vsel %vm2348, %v2857, %v2858
        %v2860 = vrot.slane %v2858, 4
        %v2861 = vrot.slane %v2842, 5
        %v2862 = vsel %vm2348, %v2860, %v2861
        %2863 = vrot.lane.b32.xlu0 %v2852, 126
        %v2864 = vpop.permute.xlu0 %2863
        %2865 = vrot.lane.b32.xlu0 %v2855, 126
        %v2866 = vpop.permute.xlu0 %2865
        %2867 = vrot.lane.b32.xlu0 %v2859, 126
        %v2868 = vpop.permute.xlu0 %2867
        %2869 = vrot.lane.b32.xlu0 %v2862, 126
        %v2870 = vpop.permute.xlu0 %2869
        %v2873 = vpack.i.b16 %v2868, %v2864
        %v2874 = vshrl.u32 %v2864, 16
        %v2875 = vshrl.u32 %v2868, 16
        %v2876 = vpack.i.b16 %v2875, %v2874
        %v2879 = vpack.i.b16 %v2870, %v2866
        %v2880 = vshrl.u32 %v2866, 16
        %v2881 = vshrl.u32 %v2870, 16
        %v2882 = vpack.i.b16 %v2881, %v2880
        %v2885 = vunpack.c.l.s4 1983009808
        %v2886 = vunpack.c.0.s8 %v2885
        %v2887 = vlaneseq
        %v2888 = vshrl.u32 %v2887, 7
        %v2889 = vsub.s32 %v2886, %v2888
        %v2890 = vrot.slane %v2873, %v2889
        %v2891 = vcombine.high %v2890, 0
        %v2893 = vunpack.c.l.s4 1934713408
        %v2894 = vunpack.c.0.s8 %v2893
        %v2895 = vlaneseq
        %v2896 = vshrl.u32 %v2895, 7
        %v2897 = vsub.s32 %v2894, %v2896
        %v2898 = vrot.slane %v2890, %v2897
        %v2900 = vunpack.c.l.s4 1934713408
        %v2901 = vunpack.c.0.s8 %v2900
        %v2902 = vlaneseq
        %v2903 = vshrl.u32 %v2902, 7
        %v2904 = vsub.s32 %v2901, %v2903
        %v2905 = vrot.slane %v2891, %v2904
        %v2906 = vcombine.high %v2898, 0
        %v2907 = vcombine.high %v2905, 0
        %v2910 = vunpack.c.l.s4 1983009808
        %v2911 = vunpack.c.0.s8 %v2910
        %v2912 = vlaneseq
        %v2913 = vshrl.u32 %v2912, 7
        %v2914 = vsub.s32 %v2911, %v2913
        %v2915 = vrot.slane %v2876, %v2914
        %v2916 = vcombine.high %v2915, 0
        %v2918 = vunpack.c.l.s4 1934713408
        %v2919 = vunpack.c.0.s8 %v2918
        %v2920 = vlaneseq
        %v2921 = vshrl.u32 %v2920, 7
        %v2922 = vsub.s32 %v2919, %v2921
        %v2923 = vrot.slane %v2915, %v2922
        %v2925 = vunpack.c.l.s4 1934713408
        %v2926 = vunpack.c.0.s8 %v2925
        %v2927 = vlaneseq
        %v2928 = vshrl.u32 %v2927, 7
        %v2929 = vsub.s32 %v2926, %v2928
        %v2930 = vrot.slane %v2916, %v2929
        %v2931 = vcombine.high %v2923, 0
        %v2932 = vcombine.high %v2930, 0
        %v2935 = vunpack.c.l.s4 1983009808
        %v2936 = vunpack.c.0.s8 %v2935
        %v2937 = vlaneseq
        %v2938 = vshrl.u32 %v2937, 7
        %v2939 = vsub.s32 %v2936, %v2938
        %v2940 = vrot.slane %v2879, %v2939
        %v2941 = vcombine.high %v2940, 0
        %v2943 = vunpack.c.l.s4 1934713408
        %v2944 = vunpack.c.0.s8 %v2943
        %v2945 = vlaneseq
        %v2946 = vshrl.u32 %v2945, 7
        %v2947 = vsub.s32 %v2944, %v2946
        %v2948 = vrot.slane %v2940, %v2947
        %v2950 = vunpack.c.l.s4 1934713408
        %v2951 = vunpack.c.0.s8 %v2950
        %v2952 = vlaneseq
        %v2953 = vshrl.u32 %v2952, 7
        %v2954 = vsub.s32 %v2951, %v2953
        %v2955 = vrot.slane %v2941, %v2954
        %v2956 = vcombine.high %v2948, 0
        %v2957 = vcombine.high %v2955, 0
        %v2960 = vunpack.c.l.s4 1983009808
        %v2961 = vunpack.c.0.s8 %v2960
        %v2962 = vlaneseq
        %v2963 = vshrl.u32 %v2962, 7
        %v2964 = vsub.s32 %v2961, %v2963
        %v2965 = vrot.slane %v2882, %v2964
        %v2966 = vcombine.high %v2965, 0
        %v2968 = vunpack.c.l.s4 1934713408
        %v2969 = vunpack.c.0.s8 %v2968
        %v2970 = vlaneseq
        %v2971 = vshrl.u32 %v2970, 7
        %v2972 = vsub.s32 %v2969, %v2971
        %v2973 = vrot.slane %v2965, %v2972
        %v2975 = vunpack.c.l.s4 1934713408
        %v2976 = vunpack.c.0.s8 %v2975
        %v2977 = vlaneseq
        %v2978 = vshrl.u32 %v2977, 7
        %v2979 = vsub.s32 %v2976, %v2978
        %v2980 = vrot.slane %v2966, %v2979
        %v2981 = vcombine.high %v2973, 0
        %v2982 = vcombine.high %v2980, 0
        %v2984 = vunpack.c.l.b16 %v2923
        %v2985 = vpack.c.b16 %v2984, %v2984
        %2986 = vrot.lane.b32.xlu0 %v2985, 16
        %v2987 = vpop.permute.xlu0 %2986
        %v2989 = vunpack.c.l.b16 %v2906
        %v2990 = vpack.c.b16 %v2989, %v2989
        %2991 = vrot.lane.b32.xlu0 %v2990, 32
        %v2992 = vpop.permute.xlu0 %2991
        %v2994 = vunpack.c.l.b16 %v2931
        %v2995 = vpack.c.b16 %v2994, %v2994
        %2996 = vrot.lane.b32.xlu0 %v2995, 48
        %v2997 = vpop.permute.xlu0 %2996
        %v2999 = vunpack.c.l.b16 %v2905
        %v3000 = vpack.c.b16 %v2999, %v2999
        %3001 = vrot.lane.b32.xlu0 %v3000, 64
        %v3002 = vpop.permute.xlu0 %3001
        %v3004 = vunpack.c.l.b16 %v2930
        %v3005 = vpack.c.b16 %v3004, %v3004
        %3006 = vrot.lane.b32.xlu0 %v3005, 80
        %v3007 = vpop.permute.xlu0 %3006
        %v3009 = vunpack.c.l.b16 %v2907
        %v3010 = vpack.c.b16 %v3009, %v3009
        %3011 = vrot.lane.b32.xlu0 %v3010, 96
        %v3012 = vpop.permute.xlu0 %3011
        %v3014 = vunpack.c.l.b16 %v2932
        %v3015 = vpack.c.b16 %v3014, %v3014
        %3016 = vrot.lane.b32.xlu0 %v3015, 112
        %v3017 = vpop.permute.xlu0 %3016
        %v3019 = vunpack.c.l.b16 %v2973
        %v3020 = vpack.c.b16 %v3019, %v3019
        %3021 = vrot.lane.b32.xlu0 %v3020, 16
        %v3022 = vpop.permute.xlu0 %3021
        %v3024 = vunpack.c.l.b16 %v2956
        %v3025 = vpack.c.b16 %v3024, %v3024
        %3026 = vrot.lane.b32.xlu0 %v3025, 32
        %v3027 = vpop.permute.xlu0 %3026
        %v3029 = vunpack.c.l.b16 %v2981
        %v3030 = vpack.c.b16 %v3029, %v3029
        %3031 = vrot.lane.b32.xlu0 %v3030, 48
        %v3032 = vpop.permute.xlu0 %3031
        %v3034 = vunpack.c.l.b16 %v2955
        %v3035 = vpack.c.b16 %v3034, %v3034
        %3036 = vrot.lane.b32.xlu0 %v3035, 64
        %v3037 = vpop.permute.xlu0 %3036
        %v3039 = vunpack.c.l.b16 %v2980
        %v3040 = vpack.c.b16 %v3039, %v3039
        %3041 = vrot.lane.b32.xlu0 %v3040, 80
        %v3042 = vpop.permute.xlu0 %3041
        %v3044 = vunpack.c.l.b16 %v2957
        %v3045 = vpack.c.b16 %v3044, %v3044
        %3046 = vrot.lane.b32.xlu0 %v3045, 96
        %v3047 = vpop.permute.xlu0 %3046
        %v3049 = vunpack.c.l.b16 %v2982
        %v3050 = vpack.c.b16 %v3049, %v3049
        %3051 = vrot.lane.b32.xlu0 %v3050, 112
        %v3052 = vpop.permute.xlu0 %3051
        %v3055 = vsel %vm978, %v2898, %v2987
        %v3057 = vsel %vm982, %v3055, %v2992
        %v3059 = vsel %vm985, %v3057, %v2997
        %v3061 = vsel %vm988, %v3059, %v3002
        %v3063 = vsel %vm991, %v3061, %v3007
        %v3065 = vsel %vm994, %v3063, %v3012
        %v3067 = vsel %vm997, %v3065, %v3017
        %v3070 = vsel %vm978, %v2948, %v3022
        %v3072 = vsel %vm982, %v3070, %v3027
        %v3074 = vsel %vm985, %v3072, %v3032
        %v3076 = vsel %vm988, %v3074, %v3037
        %v3078 = vsel %vm991, %v3076, %v3042
        %v3080 = vsel %vm994, %v3078, %v3047
        %v3082 = vsel %vm997, %v3080, %v3052
        %v3085 = vunpack.c.l.b16 %v3067
        %v3086 = vunpack.c.l.b16 %v3082
        %v3087 = vpack.c.b16 %v3086, %v3085
        %3089 = vst [vmem:[#allocation3 + $0x10] sm:$0x11] %v3087
        %v3090 = vld [vmem:[%s5] sm:$0x3]
        %v3091 = vld [vmem:[#allocation3] sm:$0xff]
        %v3092 = vld [vmem:[#allocation3 + $0x8] sm:$0xff]
        %v3093 = vld [vmem:[#allocation3 + $0x10] sm:$0x11]
        %v3097 = vunpack.c.l.b16 %v3091
        %v3098 = vunpack.c.h.b16 %v3091
        %v3099 = vunpack.c.l.b16 %v3092
        %v3100 = vunpack.c.h.b16 %v3092
        %v3101 = vunpack.c.l.b16 %v3093
        %v3102 = vunpack.c.h.b16 %v3093
        %v3103 = vpack.c.b16 %v3099, %v3097
        %v3104 = vpack.c.b16 %v3100, %v3098
        %v3105 = vpack.c.b16 %v3101, %v3101
        %v3106 = vpack.c.b16 %v3102, %v3102
        %vm3109 = vcmask 146432
        %v3111 = vsel %vm3109, %v3090, 0
        %vm3113 = vcmask 1040384
        %v3115 = vsel %vm3113, %v3105, 0
        %v3118 = vsel %vm3113, %v3106, 0
        %3120 = vmatprep.subr.bf16.mxu0 %v3104
        %3121 = vmatpush1.bf16.msra.mxu0 %v3103
        %3122 = vmatprep.subr.bf16.mxu0 %v3118
        %3123 = vmatpush1.bf16.msra.mxu0 %v3115
        %3124 = vmatprep.subr.bf16.mxu0 0
        %3125 = vmatpush1.bf16.msra.mxu0 0
        %3126 = vmatprep.subr.bf16.mxu0 0
        %3127 = vmatpush1.bf16.msra.mxu0 0
        %3128 = vmatprep.subr.bf16.mxu0 0
        %3129 = vmatpush1.bf16.msra.mxu0 0
        %3130 = vmatprep.subr.bf16.mxu0 0
        %3131 = vmatpush1.bf16.msra.mxu0 0
        %3132 = vmatprep.subr.bf16.mxu0 0
        %3133 = vmatpush1.bf16.msra.mxu0 0
        %3134 = vmatprep.subr.bf16.mxu0 0
        %3135 = vmatpush1.bf16.msra.mxu0 0
        %3136 = vmatprep.subr.bf16.mxu0 0
        %3137 = vmatpush1.bf16.msra.mxu0 0
        %3138 = vmatprep.subr.bf16.mxu0 0
        %3139 = vmatpush1.bf16.msra.mxu0 0
        %3140 = vmatprep.subr.bf16.mxu0 0
        %3141 = vmatpush1.bf16.msra.mxu0 0
        %3142 = vmatprep.subr.bf16.mxu0 0
        %3143 = vmatpush1.bf16.msra.mxu0 0
        %3144 = vmatprep.subr.bf16.mxu0 0
        %3145 = vmatpush1.bf16.msra.mxu0 0
        %3146 = vmatprep.subr.bf16.mxu0 0
        %3147 = vmatpush1.bf16.msra.mxu0 0
        %3148 = vmatprep.subr.bf16.mxu0 0
        %3149 = vmatpush1.bf16.msra.mxu0 0
        %3150 = vmatprep.subr.bf16.mxu0 0
        %3151 = vmatpush1.bf16.msra.mxu0 0
        %3152 = vmatprep.mubr.bf16.mxu0 0
        %3153 = vmatmul.mubr.bf16.gmra.mrb[0].mxu0 %v3111
        %v3154 = vpop.f32.mrb[0].mxu0
        %v3155 = vadd.f32 0.0, %v3154
        %v3156 = vpop.f32.mrb[0].mxu0
        %v3157 = vadd.f32 0.0, %v3156
        %v3158 = vpop.f32.mrb[0].mxu0
        %v3159 = vpop.f32.mrb[0].mxu0
        %3160 = vdwg.mxu0
        %3162 = vrot.lane.b32.xlu0 %v3155, 112
        %v3163 = vpop.permute.xlu0 %3162
        %3165 = vrot.lane.b32.xlu0 %v3155, 96
        %v3166 = vpop.permute.xlu0 %3165
        %3168 = vrot.lane.b32.xlu0 %v3155, 80
        %v3169 = vpop.permute.xlu0 %3168
        %3171 = vrot.lane.b32.xlu0 %v3155, 64
        %v3172 = vpop.permute.xlu0 %3171
        %3174 = vrot.lane.b32.xlu0 %v3155, 48
        %v3175 = vpop.permute.xlu0 %3174
        %3177 = vrot.lane.b32.xlu0 %v3155, 32
        %v3178 = vpop.permute.xlu0 %3177
        %3180 = vrot.lane.b32.xlu0 %v3155, 16
        %v3181 = vpop.permute.xlu0 %3180
        %3184 = vrot.lane.b32.xlu0 %v3157, 112
        %v3185 = vpop.permute.xlu0 %3184
        %3187 = vrot.lane.b32.xlu0 %v3157, 96
        %v3188 = vpop.permute.xlu0 %3187
        %3190 = vrot.lane.b32.xlu0 %v3157, 80
        %v3191 = vpop.permute.xlu0 %3190
        %3193 = vrot.lane.b32.xlu0 %v3157, 64
        %v3194 = vpop.permute.xlu0 %3193
        %3196 = vrot.lane.b32.xlu0 %v3157, 48
        %v3197 = vpop.permute.xlu0 %3196
        %3199 = vrot.lane.b32.xlu0 %v3157, 32
        %v3200 = vpop.permute.xlu0 %3199
        %3202 = vrot.lane.b32.xlu0 %v3157, 16
        %v3203 = vpop.permute.xlu0 %3202
        %v3205 = vcombine.low %v3155, %v3166
        %v3207 = vunpack.c.l.s4 1983009808
        %v3208 = vunpack.c.0.s8 %v3207
        %v3209 = vlaneseq
        %v3210 = vshrl.u32 %v3209, 7
        %v3211 = vsub.s32 %v3208, %v3210
        %v3212 = vrot.slane %v3205, %v3211
        %v3213 = vcombine.low %v3163, %v3169
        %v3215 = vunpack.c.l.s4 1983009808
        %v3216 = vunpack.c.0.s8 %v3215
        %v3217 = vlaneseq
        %v3218 = vshrl.u32 %v3217, 7
        %v3219 = vsub.s32 %v3216, %v3218
        %v3220 = vrot.slane %v3213, %v3219
        %v3221 = vcombine.low %v3172, %v3178
        %v3223 = vunpack.c.l.s4 1983009808
        %v3224 = vunpack.c.0.s8 %v3223
        %v3225 = vlaneseq
        %v3226 = vshrl.u32 %v3225, 7
        %v3227 = vsub.s32 %v3224, %v3226
        %v3228 = vrot.slane %v3221, %v3227
        %v3229 = vcombine.low %v3175, %v3181
        %v3231 = vunpack.c.l.s4 1983009808
        %v3232 = vunpack.c.0.s8 %v3231
        %v3233 = vlaneseq
        %v3234 = vshrl.u32 %v3233, 7
        %v3235 = vsub.s32 %v3232, %v3234
        %v3236 = vrot.slane %v3229, %v3235
        %v3237 = vcombine.low %v3212, %v3220
        %v3238 = vcombine.high %v3212, %v3220
        %v3240 = vunpack.c.l.s4 1934713408
        %v3241 = vunpack.c.0.s8 %v3240
        %v3242 = vlaneseq
        %v3243 = vshrl.u32 %v3242, 7
        %v3244 = vsub.s32 %v3241, %v3243
        %v3245 = vrot.slane %v3237, %v3244
        %v3247 = vunpack.c.l.s4 1934713408
        %v3248 = vunpack.c.0.s8 %v3247
        %v3249 = vlaneseq
        %v3250 = vshrl.u32 %v3249, 7
        %v3251 = vsub.s32 %v3248, %v3250
        %v3252 = vrot.slane %v3238, %v3251
        %v3253 = vcombine.low %v3228, %v3236
        %v3254 = vcombine.high %v3228, %v3236
        %v3256 = vunpack.c.l.s4 1934713408
        %v3257 = vunpack.c.0.s8 %v3256
        %v3258 = vlaneseq
        %v3259 = vshrl.u32 %v3258, 7
        %v3260 = vsub.s32 %v3257, %v3259
        %v3261 = vrot.slane %v3253, %v3260
        %v3263 = vunpack.c.l.s4 1934713408
        %v3264 = vunpack.c.0.s8 %v3263
        %v3265 = vlaneseq
        %v3266 = vshrl.u32 %v3265, 7
        %v3267 = vsub.s32 %v3264, %v3266
        %v3268 = vrot.slane %v3254, %v3267
        %v3269 = vcombine.low %v3245, %v3261
        %v3270 = vcombine.high %v3245, %v3261
        %v3271 = vcombine.low %v3252, %v3268
        %v3272 = vcombine.high %v3252, %v3268
        %v3273 = vcombine.low %v3157, %v3188
        %v3275 = vunpack.c.l.s4 1983009808
        %v3276 = vunpack.c.0.s8 %v3275
        %v3277 = vlaneseq
        %v3278 = vshrl.u32 %v3277, 7
        %v3279 = vsub.s32 %v3276, %v3278
        %v3280 = vrot.slane %v3273, %v3279
        %v3281 = vcombine.low %v3185, %v3191
        %v3283 = vunpack.c.l.s4 1983009808
        %v3284 = vunpack.c.0.s8 %v3283
        %v3285 = vlaneseq
        %v3286 = vshrl.u32 %v3285, 7
        %v3287 = vsub.s32 %v3284, %v3286
        %v3288 = vrot.slane %v3281, %v3287
        %v3289 = vcombine.low %v3194, %v3200
        %v3291 = vunpack.c.l.s4 1983009808
        %v3292 = vunpack.c.0.s8 %v3291
        %v3293 = vlaneseq
        %v3294 = vshrl.u32 %v3293, 7
        %v3295 = vsub.s32 %v3292, %v3294
        %v3296 = vrot.slane %v3289, %v3295
        %v3297 = vcombine.low %v3197, %v3203
        %v3299 = vunpack.c.l.s4 1983009808
        %v3300 = vunpack.c.0.s8 %v3299
        %v3301 = vlaneseq
        %v3302 = vshrl.u32 %v3301, 7
        %v3303 = vsub.s32 %v3300, %v3302
        %v3304 = vrot.slane %v3297, %v3303
        %v3305 = vcombine.low %v3280, %v3288
        %v3306 = vcombine.high %v3280, %v3288
        %v3308 = vunpack.c.l.s4 1934713408
        %v3309 = vunpack.c.0.s8 %v3308
        %v3310 = vlaneseq
        %v3311 = vshrl.u32 %v3310, 7
        %v3312 = vsub.s32 %v3309, %v3311
        %v3313 = vrot.slane %v3305, %v3312
        %v3315 = vunpack.c.l.s4 1934713408
        %v3316 = vunpack.c.0.s8 %v3315
        %v3317 = vlaneseq
        %v3318 = vshrl.u32 %v3317, 7
        %v3319 = vsub.s32 %v3316, %v3318
        %v3320 = vrot.slane %v3306, %v3319
        %v3321 = vcombine.low %v3296, %v3304
        %v3322 = vcombine.high %v3296, %v3304
        %v3324 = vunpack.c.l.s4 1934713408
        %v3325 = vunpack.c.0.s8 %v3324
        %v3326 = vlaneseq
        %v3327 = vshrl.u32 %v3326, 7
        %v3328 = vsub.s32 %v3325, %v3327
        %v3329 = vrot.slane %v3321, %v3328
        %v3331 = vunpack.c.l.s4 1934713408
        %v3332 = vunpack.c.0.s8 %v3331
        %v3333 = vlaneseq
        %v3334 = vshrl.u32 %v3333, 7
        %v3335 = vsub.s32 %v3332, %v3334
        %v3336 = vrot.slane %v3322, %v3335
        %v3337 = vcombine.low %v3313, %v3329
        %v3338 = vcombine.high %v3313, %v3329
        %v3339 = vcombine.low %v3320, %v3336
        %v3340 = vcombine.high %v3320, %v3336
        %3341 = vst.msk [vmem:[%s484] sm:$0xff] %vm978, %v3269
        %3342 = vst.msk [vmem:[%s484 + $0x8] sm:$0xff] %vm978, %v3337
        %3343 = vst.msk [vmem:[%s484 + $0x10] sm:$0xff] %vm978, %v3270
        %3344 = vst.msk [vmem:[%s484 + $0x18] sm:$0xff] %vm978, %v3338
        %3345 = vst.msk [vmem:[%s484 + $0x20] sm:$0xff] %vm978, %v3271
        %3346 = vst.msk [vmem:[%s484 + $0x28] sm:$0xff] %vm978, %v3339
        %3347 = vst.msk [vmem:[%s484 + $0x30] sm:$0xff] %vm978, %v3272
        %3348 = vst.msk [vmem:[%s484 + $0x38] sm:$0xff] %vm978, %v3340
        %vm3349 = vcmask 1043456
        %v3350 = vsel %vm3349, %v3155, 0.0
        %v3351 = vsel %vm3349, %v3157, 0.0
        %v3352 = vadd.f32 %v3350, %v3351
        %3353 = vadd.xlane.f32.xlu0 %v3352
        %v3354 = vpop.xlane.xlu0 %3353
        %v3356 = vlaneseq
        %v3357 = vand.u32 %v3356, 127
        %v3358 = vlaneseq
        %v3359 = vshrl.u32 %v3358, 7
        %v3360 = vsub.s32 %v3357, %v3359
        %v3361 = vrot.slane %v3354, %v3360
        %vm3363 = vcmask 24576
        %3364 = vst.msk [vmem:[%s492] sm:$0x1] %vm3363, %v3361
        %v3365 = vmul.f32 %v3155, %v3155
        %v3366 = vmul.f32 %v3157, %v3157
        %v3367 = vsel %vm3349, %v3365, 0.0
        %v3368 = vsel %vm3349, %v3366, 0.0
        %v3369 = vadd.f32 %v3367, %v3368
        %3370 = vadd.xlane.f32.xlu0 %v3369
        %v3371 = vpop.xlane.xlu0 %3370
        %v3373 = vlaneseq
        %v3374 = vshrl.u32 %v3373, 7
        %v3375 = vsub.s32 %v3357, %v3374
        %v3376 = vrot.slane %v3371, %v3375
        %3378 = vst.msk [vmem:[%s492 + $0x1] sm:$0x1] %vm3363, %v3376
        %s3379 = smul.u32 2, %s24
        %p3380 = scmp.lt.s32.totalorder %s23, 1
        %s3381 = scalar_select %p3380, %s23, 1
        %p3382 = scmp.lt.s32.totalorder %s3379, 1
        %s3383 = scalar_select %p3382, %s3379, 1
        %s3384 = smul.addr %s3381, 8
        %s3385 = sadd.s32 %s3383, %s3384
        %s3386 = smul.addr %s3385, 8
        %s3387 = scalar_lea.vmem %s6, %s3386
        %p3388 = scmp.lt.s32.totalorder %s23, 1
        %s3389 = scalar_select %p3388, %s23, 1
        %p3390 = scmp.lt.s32.totalorder %s24, 0
        %s3391 = scalar_select %p3390, %s24, 0
        %s3392 = sadd.s32 %s3391, %s3389
        %s3393 = smul.addr %s3392, 2
        %s3394 = scalar_lea.vmem %s7, %s3393
        // Predicated region
        $region121: #{residual_block.4} parent=111 // pred_check
          %p3395 = pneg %p214
        $region122: #{residual_block.4} parent=111 // pred_check_branch
          %3397 = sbr.rel (%p3395) target = $region124
        $region123: #{residual_block.4} parent=111 // pred_region
          %s3398 = smul.u32 2, %s24
        $region124: #{residual_block.4} parent=111 // pred_fallthru
          _
        // Predicated region
        $region125: #{residual_block.4} parent=111 // pred_check
          %p3399 = pneg %p242
        $region126: #{residual_block.4} parent=111 // pred_check_branch
          %3401 = sbr.rel (%p3399) target = $region128
        $region127: #{residual_block.4} parent=111 // pred_region
          _
        $region128: #{residual_block.4} parent=111 // pred_fallthru
          _
      $region112: #{residual_block.4} parent=5 // pred_fallthru
        _
      %p3402 = scmp.le.s32.totalorder 2, %s14
      // Predicated region
      $region129: #{residual_block.4} parent=5 // pred_check
        %p3403 = pneg %p3402
      $region130: #{residual_block.4} parent=5 // pred_check_branch
        %3405 = sbr.rel (%p3403) target = $region132
      $region131: #{residual_block.4} parent=5 // pred_region
        %s3406 = ssub.s32 %s14, 2
        // Predicated region
        $region133: #{residual_block.4} parent=131 // pred_check
          %p3407 = pneg %p220
        $region134: #{residual_block.4} parent=131 // pred_check_branch
          %3409 = sbr.rel (%p3407) target = $region136
        $region135: #{residual_block.4} parent=131 // pred_region
          %s3410 = smul.u32 2, %s26
          %p3411 = scmp.lt.s32.totalorder %s25, 1
          %s3412 = scalar_select %p3411, %s25, 1
          %p3413 = scmp.lt.s32.totalorder %s3410, 1
          %s3414 = scalar_select %p3413, %s3410, 1
          %s3415 = smul.addr %s3412, 8
          %s3416 = sadd.s32 %s3414, %s3415
          %s3417 = smul.addr %s3416, 8
          %s3418 = scalar_lea.vmem %s6, %s3417
        $region136: #{residual_block.4} parent=131 // pred_fallthru
          _
        // Predicated region
        $region137: #{residual_block.4} parent=131 // pred_check
          %p3419 = pneg %p248
        $region138: #{residual_block.4} parent=131 // pred_check_branch
          %3421 = sbr.rel (%p3419) target = $region140
        $region139: #{residual_block.4} parent=131 // pred_region
          %p3422 = scmp.lt.s32.totalorder %s25, 1
          %s3423 = scalar_select %p3422, %s25, 1
          %p3424 = scmp.lt.s32.totalorder %s26, 0
          %s3425 = scalar_select %p3424, %s26, 0
          %s3426 = sadd.s32 %s3425, %s3423
          %s3427 = smul.addr %s3426, 2
          %s3428 = scalar_lea.vmem %s7, %s3427
        $region140: #{residual_block.4} parent=131 // pred_fallthru
          _
      $region132: #{residual_block.4} parent=5 // pred_fallthru
        _
    $region6: #{residual_block.4} parent=1 // loop_footer
      %s18 = sadd.s32 1, %s14
    $region7: #{residual_block.4} parent=1 // loop_footer_branch
      %13 = sbr.rel target = $region3
    $region8: #{residual_block.4} parent=1 // loop_exit
      _

</llo_original>
